<compile_context>
chip_gen: v6e
topology: v6e:2x2x1
jax: 0.10.0
libtpu: 0.0.40
codegen_flags: <defaults>
</compile_context>

<pallas_src>
import jax
import jax.numpy as jnp
from jax.experimental import pallas as pl
from jax.experimental.pallas import tpu as pltpu

Z_DIM = 100
LABEL_DIM = 10
IN_DIM = Z_DIM + LABEL_DIM        # 110
H1, H2, H3 = 256, 512, 1024
OUT_DIM = 28 * 28                 # 784
OUT_PAD = 896                     # lane-dense output (7 * 128)
MAX_BATCH_TILE = 512              # rows per grid step at large batch


# ---------------------------------------------------------------------------
# Shared layer math (bf16 MXU operands, f32 accumulation / element-wise).
# ---------------------------------------------------------------------------
def _layers_1_2(z_ref, lab_ref, w1z_ref, w1l_ref, b1_ref, w2_ref, b2_ref):
    # Layer 1 as split-K: [z | label] @ W1 == z @ W1[:100] + label @ W1[100:110]
    h = (jnp.dot(z_ref[...].astype(jnp.bfloat16), w1z_ref[...],
                 preferred_element_type=jnp.float32)
         + jnp.dot(lab_ref[...].astype(jnp.bfloat16), w1l_ref[...],
                   preferred_element_type=jnp.float32)
         + b1_ref[...])
    h = jnp.maximum(h, 0.0)
    # Layer 2
    h = jnp.dot(h.astype(jnp.bfloat16), w2_ref[...],
                preferred_element_type=jnp.float32) + b2_ref[...]
    return jnp.maximum(h, 0.0)


def _layer_3(h, w3, b3_ref):
    h = jnp.dot(h.astype(jnp.bfloat16), w3,
                preferred_element_type=jnp.float32) + b3_ref[...]
    return jnp.maximum(h, 0.0)


def _layer_4(h, w4, b4_ref, out_ref):
    h = jnp.dot(h.astype(jnp.bfloat16), w4,
                preferred_element_type=jnp.float32) + b4_ref[...]
    out_ref[...] = jnp.tanh(h).astype(out_ref.dtype)


# ---------------------------------------------------------------------------
# Kernel A: single grid step (batch <= 512 rows). w3/w4 arrive via manual DMA
# that overlaps with layer-1/2 compute.
# ---------------------------------------------------------------------------
def _generator_kernel_fused(z_ref, lab_ref,
                            w1z_ref, w1l_ref, b1_ref,
                            w2_ref, b2_ref,
                            w3_hbm, b3_ref,
                            w4_hbm, b4_ref,
                            out_ref,
                            w3_buf, w4_buf, sem):
    w3_cp = pltpu.make_async_copy(w3_hbm, w3_buf, sem.at[0])
    w4_cp = pltpu.make_async_copy(w4_hbm, w4_buf, sem.at[1])
    w3_cp.start()
    w4_cp.start()

    h = _layers_1_2(z_ref, lab_ref, w1z_ref, w1l_ref, b1_ref, w2_ref, b2_ref)

    w3_cp.wait()
    h = _layer_3(h, w3_buf[...], b3_ref)

    w4_cp.wait()
    _layer_4(h, w4_buf[...], b4_ref, out_ref)


# ---------------------------------------------------------------------------
# Kernel B: multi-step grid (batch > 512 rows). All weights auto-pipelined as
# grid-invariant blocks (fetched once per core, no re-DMA across steps).
# ---------------------------------------------------------------------------
def _generator_kernel_tiled(z_ref, lab_ref,
                            w1z_ref, w1l_ref, b1_ref,
                            w2_ref, b2_ref,
                            w3_ref, b3_ref,
                            w4_ref, b4_ref,
                            out_ref):
    h = _layers_1_2(z_ref, lab_ref, w1z_ref, w1l_ref, b1_ref, w2_ref, b2_ref)
    h = _layer_3(h, w3_ref[...], b3_ref)
    _layer_4(h, w4_ref[...], b4_ref, out_ref)


# ---------------------------------------------------------------------------
# Host-side helpers.
# ---------------------------------------------------------------------------
def _vmem_limit_bytes():
    """Generation-aware scoped-VMEM cap (3/4 of physical, never above 64 MiB)."""
    try:
        cap = pltpu.get_tpu_info().vmem_capacity_bytes
    except Exception:
        cap = 64 << 20   # conservative (v7x per-TC VMEM)
    return min(int(cap * 3 // 4), 64 << 20)


def _choose_batch_tiling(batch):
    """Pick (tile, padded_batch).

    - batch <= 512 rows: one grid step covering the whole (8-padded) batch;
      this regime is weight-HBM / latency bound, extra steps (or splitting
      across v7x's two TCs) would only duplicate weight DMA.
    - batch  > 512 rows: balanced tiles <= 512 rows, >= 2 grid steps so the
      "parallel" axis can shard across v7x's two TensorCores with enough
      per-TC compute to amortize the per-TC weight fetch.
    """
    b8 = ((batch + 7) // 8) * 8
    if b8 <= MAX_BATCH_TILE:
        return b8, b8
    n_steps = -(-b8 // MAX_BATCH_TILE)
    tile = ((-(-b8 // n_steps) + 7) // 8) * 8
    return tile, n_steps * tile


def prepare_params(params):
    """Split/pad to kernel layout and cast weights to bf16 (biases stay f32).

    Returns (w1z, w1l, b1, w2, b2, w3, b3, w4_padded, b4_padded).
    """
    w1, b1, w2, b2, w3, b3, w4, b4 = params
    w4p = jnp.zeros((H3, OUT_PAD), jnp.float32).at[:, :OUT_DIM].set(w4)
    b4p = jnp.zeros((1, OUT_PAD), jnp.float32).at[:, :OUT_DIM].set(b4)
    return (w1[:Z_DIM].astype(jnp.bfloat16),        # (100, 256)
            w1[Z_DIM:].astype(jnp.bfloat16),        # (10, 256)
            b1.astype(jnp.float32),
            w2.astype(jnp.bfloat16), b2.astype(jnp.float32),
            w3.astype(jnp.bfloat16), b3.astype(jnp.float32),
            w4p.astype(jnp.bfloat16), b4p.astype(jnp.float32))


@jax.jit
def generator_forward(z, label, prepared_params):
    """z: (B, 100), label: (B, 10) -> (B, 1, 28, 28) f32."""
    w1z, w1l, b1, w2, b2, w3, b3, w4, b4 = prepared_params
    b = z.shape[0]
    tile, b_pad = _choose_batch_tiling(b)
    n_steps = b_pad // tile

    z = z.astype(jnp.float32)
    label = label.astype(jnp.float32)
    if b_pad != b:
        z = jnp.pad(z, ((0, b_pad - b), (0, 0)))
        label = jnp.pad(label, ((0, b_pad - b), (0, 0)))

    def _rep(shape):
        # Grid-invariant full-array block (fetched once, never re-DMA'd).
        return pl.BlockSpec(shape, lambda i: (0, 0))

    common_weight_specs_front = [
        _rep((Z_DIM, H1)), _rep((LABEL_DIM, H1)), _rep((1, H1)),
        _rep((H1, H2)), _rep((1, H2)),
    ]

    if n_steps == 1:
        out = pl.pallas_call(
            _generator_kernel_fused,
            out_shape=jax.ShapeDtypeStruct((b_pad, OUT_PAD), jnp.bfloat16),
            grid_spec=pltpu.PrefetchScalarGridSpec(
                num_scalar_prefetch=0,
                grid=(1,),
                in_specs=[
                    pl.BlockSpec((tile, Z_DIM), lambda i: (0, 0)),
                    pl.BlockSpec((tile, LABEL_DIM), lambda i: (0, 0)),
                    *common_weight_specs_front,
                    pl.BlockSpec(memory_space=pl.ANY),   # w3: manual DMA
                    _rep((1, H3)),
                    pl.BlockSpec(memory_space=pl.ANY),   # w4: manual DMA
                    _rep((1, OUT_PAD)),
                ],
                out_specs=pl.BlockSpec((tile, OUT_PAD), lambda i: (0, 0)),
                scratch_shapes=[
                    pltpu.VMEM((H2, H3), jnp.bfloat16),       # w3 buffer (1 MB)
                    pltpu.VMEM((H3, OUT_PAD), jnp.bfloat16),  # w4 buffer (1.75 MB)
                    pltpu.SemaphoreType.DMA((2,)),
                ],
            ),
            compiler_params=pltpu.CompilerParams(
                dimension_semantics=("arbitrary",),
                vmem_limit_bytes=_vmem_limit_bytes(),
            ),
        )(z, label, w1z, w1l, b1, w2, b2, w3, b3, w4, b4)
    else:
        out = pl.pallas_call(
            _generator_kernel_tiled,
            out_shape=jax.ShapeDtypeStruct((b_pad, OUT_PAD), jnp.bfloat16),
            grid_spec=pltpu.PrefetchScalarGridSpec(
                num_scalar_prefetch=0,
                grid=(n_steps,),
                in_specs=[
                    pl.BlockSpec((tile, Z_DIM), lambda i: (i, 0)),
                    pl.BlockSpec((tile, LABEL_DIM), lambda i: (i, 0)),
                    *common_weight_specs_front,
                    _rep((H2, H3)), _rep((1, H3)),
                    _rep((H3, OUT_PAD)), _rep((1, OUT_PAD)),
                ],
                out_specs=pl.BlockSpec((tile, OUT_PAD), lambda i: (i, 0)),
            ),
            compiler_params=pltpu.CompilerParams(
                dimension_semantics=("parallel",),
                vmem_limit_bytes=_vmem_limit_bytes(),
            ),
        )(z, label, w1z, w1l, b1, w2, b2, w3, b3, w4, b4)

    return out[:b, :OUT_DIM].astype(jnp.float32).reshape(-1, 1, 28, 28)


# ---------------------------------------------------------------------------
# Init / reference / self-test.
# ---------------------------------------------------------------------------
def init_params(key):
    """Deterministic init mirroring nn.Linear default (U[-1/sqrt(fan_in), +])."""
    dims = [(IN_DIM, H1), (H1, H2), (H2, H3), (H3, OUT_DIM)]
    params = []
    for (fan_in, fan_out) in dims:
        key, kw, kb = jax.random.split(key, 3)
        bound = 1.0 / jnp.sqrt(float(fan_in))
        w = jax.random.uniform(kw, (fan_in, fan_out), jnp.float32, -bound, bound)
        b = jax.random.uniform(kb, (1, fan_out), jnp.float32, -bound, bound)
        params.extend([w, b])
    return tuple(params)


def _reference_forward(z, label, params):
    """Pure-JAX reference using the same bf16-operand / f32-accumulate scheme."""
    w1, b1, w2, b2, w3, b3, w4, b4 = params

    def lin(h, w, b):
        return jnp.dot(h.astype(jnp.bfloat16), w.astype(jnp.bfloat16),
                       preferred_element_type=jnp.float32) + b

    x = jnp.concatenate([z, label], axis=-1)
    h = jax.nn.relu(lin(x, w1, b1))
    h = jax.nn.relu(lin(h, w2, b2))
    h = jax.nn.relu(lin(h, w3, b3))
    h = jnp.tanh(lin(h, w4, b4))
    return h.reshape(-1, 1, 28, 28)


if __name__ == "__main__":
    key = jax.random.PRNGKey(0)
    kp, kdata = jax.random.split(key)

    params = init_params(kp)
    prepared = prepare_params(params)

    # B=8: single-step fused path (manual w3/w4 DMA overlap).
    # B=640: multi-tile path (2 x 320-row steps, megacore-shardable).
    for B in (8, 640):
        kz, kl = jax.random.split(jax.random.fold_in(kdata, B))
        z = jax.random.normal(kz, (B, Z_DIM), jnp.float32)
        label_idx = jax.random.randint(kl, (B,), 0, LABEL_DIM)
        label = jax.nn.one_hot(label_idx, LABEL_DIM, dtype=jnp.float32)

        out = jax.block_until_ready(generator_forward(z, label, prepared))
        ref = _reference_forward(z, label, params)

        assert out.shape == (B, 1, 28, 28), out.shape
        assert jnp.allclose(out, ref, atol=2e-2, rtol=0), "mismatch vs reference"

    print("KERNEL_OK")
</pallas_src>

<mosaic_0001>
module attributes {stable_mosaic.version = 11 : i64} {
  func.func @_generator_kernel_fused(%arg0: i32, %arg1: memref<8x100xf32, #tpu.memory_space<vmem>>, %arg2: memref<8x10xf32, #tpu.memory_space<vmem>>, %arg3: memref<100x256xbf16, #tpu.memory_space<vmem>>, %arg4: memref<10x256xbf16, #tpu.memory_space<vmem>>, %arg5: memref<1x256xf32, #tpu.memory_space<vmem>>, %arg6: memref<256x512xbf16, #tpu.memory_space<vmem>>, %arg7: memref<1x512xf32, #tpu.memory_space<vmem>>, %arg8: memref<512x1024xbf16, #tpu.memory_space<any>>, %arg9: memref<1x1024xf32, #tpu.memory_space<vmem>>, %arg10: memref<1024x896xbf16, #tpu.memory_space<any>>, %arg11: memref<1x896xf32, #tpu.memory_space<vmem>>, %arg12: memref<8x896xbf16, #tpu.memory_space<vmem>>, %arg13: memref<512x1024xbf16, #tpu.memory_space<vmem>>, %arg14: memref<1024x896xbf16, #tpu.memory_space<vmem>>, %arg15: memref<2x!tpu.dma_semaphore, #tpu.memory_space<semaphore_mem>>) attributes {dimension_semantics = [#tpu.dimension_semantics<arbitrary>], iteration_bounds = array<i64: 1>, scalar_prefetch = 0 : i64, scratch_operands = 3 : i64, tpu.core_type = #tpu.core_type<tc>, window_params = [{pipeline_mode = #tpu.pipeline_mode<synchronous>, transform_indices = @transform_0, window_bounds = array<i64: 8, 100>}, {pipeline_mode = #tpu.pipeline_mode<synchronous>, transform_indices = @transform_1, window_bounds = array<i64: 8, 10>}, {pipeline_mode = #tpu.pipeline_mode<synchronous>, transform_indices = @transform_2, window_bounds = array<i64: 100, 256>}, {pipeline_mode = #tpu.pipeline_mode<synchronous>, transform_indices = @transform_3, window_bounds = array<i64: 10, 256>}, {pipeline_mode = #tpu.pipeline_mode<synchronous>, transform_indices = @transform_4, window_bounds = array<i64: 1, 256>}, {pipeline_mode = #tpu.pipeline_mode<synchronous>, transform_indices = @transform_5, window_bounds = array<i64: 256, 512>}, {pipeline_mode = #tpu.pipeline_mode<synchronous>, transform_indices = @transform_6, window_bounds = array<i64: 1, 512>}, {}, {pipeline_mode = #tpu.pipeline_mode<synchronous>, transform_indices = @transform_8, window_bounds = array<i64: 1, 1024>}, {}, {pipeline_mode = #tpu.pipeline_mode<synchronous>, transform_indices = @transform_10, window_bounds = array<i64: 1, 896>}, {pipeline_mode = #tpu.pipeline_mode<synchronous>, transform_indices = @transform_11, window_bounds = array<i64: 8, 896>}]} {
    %c0_i32 = arith.constant 0 : i32
    %0 = tpu.memref_slice %arg15[%c0_i32] : memref<2x!tpu.dma_semaphore, #tpu.memory_space<semaphore_mem>> -> memref<1x!tpu.dma_semaphore, #tpu.memory_space<semaphore_mem>>
    %1 = tpu.memref_squeeze %0 : memref<1x!tpu.dma_semaphore, #tpu.memory_space<semaphore_mem>> -> memref<!tpu.dma_semaphore, #tpu.memory_space<semaphore_mem>>
    tpu.enqueue_dma source(%arg8 : memref<512x1024xbf16, #tpu.memory_space<any>>) target(%arg13 : memref<512x1024xbf16, #tpu.memory_space<vmem>>) target_semaphore(%1 : memref<!tpu.dma_semaphore, #tpu.memory_space<semaphore_mem>>)
    %c1_i32 = arith.constant 1 : i32
    %2 = tpu.memref_slice %arg15[%c1_i32] : memref<2x!tpu.dma_semaphore, #tpu.memory_space<semaphore_mem>> -> memref<1x!tpu.dma_semaphore, #tpu.memory_space<semaphore_mem>>
    %3 = tpu.memref_squeeze %2 : memref<1x!tpu.dma_semaphore, #tpu.memory_space<semaphore_mem>> -> memref<!tpu.dma_semaphore, #tpu.memory_space<semaphore_mem>>
    tpu.enqueue_dma source(%arg10 : memref<1024x896xbf16, #tpu.memory_space<any>>) target(%arg14 : memref<1024x896xbf16, #tpu.memory_space<vmem>>) target_semaphore(%3 : memref<!tpu.dma_semaphore, #tpu.memory_space<semaphore_mem>>)
    %c0 = arith.constant 0 : index
    %c0_0 = arith.constant 0 : index
    %4 = vector.load %arg1[%c0, %c0_0] : memref<8x100xf32, #tpu.memory_space<vmem>>, vector<8x100xf32>
    %5 = arith.truncf %4 : vector<8x100xf32> to vector<8x100xbf16>
    %c0_1 = arith.constant 0 : index
    %c0_2 = arith.constant 0 : index
    %6 = vector.load %arg3[%c0_1, %c0_2] : memref<100x256xbf16, #tpu.memory_space<vmem>>, vector<100x256xbf16>
    %cst = arith.constant dense<0.000000e+00> : vector<8x256xf32>
    %7 = tpu.matmul %5, %6, %cst {dimension_numbers = #tpu.dot_dimension_numbers<[1], [0], [0], [1], [0, 0, 1, 1], [], []>} : vector<8x100xbf16>, vector<100x256xbf16>, vector<8x256xf32> -> vector<8x256xf32>
    %c0_3 = arith.constant 0 : index
    %c0_4 = arith.constant 0 : index
    %8 = vector.load %arg2[%c0_3, %c0_4] : memref<8x10xf32, #tpu.memory_space<vmem>>, vector<8x10xf32>
    %9 = arith.truncf %8 : vector<8x10xf32> to vector<8x10xbf16>
    %c0_5 = arith.constant 0 : index
    %c0_6 = arith.constant 0 : index
    %10 = vector.load %arg4[%c0_5, %c0_6] : memref<10x256xbf16, #tpu.memory_space<vmem>>, vector<10x256xbf16>
    %cst_7 = arith.constant dense<0.000000e+00> : vector<8x256xf32>
    %11 = tpu.matmul %9, %10, %cst_7 {dimension_numbers = #tpu.dot_dimension_numbers<[1], [0], [0], [1], [0, 0, 1, 1], [], []>} : vector<8x10xbf16>, vector<10x256xbf16>, vector<8x256xf32> -> vector<8x256xf32>
    %12 = arith.addf %7, %11 : vector<8x256xf32>
    %c0_8 = arith.constant 0 : index
    %c0_9 = arith.constant 0 : index
    %13 = vector.load %arg5[%c0_8, %c0_9] : memref<1x256xf32, #tpu.memory_space<vmem>>, vector<1x256xf32>
    %14 = vector.broadcast %13 : vector<1x256xf32> to vector<8x256xf32>
    %15 = arith.addf %12, %14 : vector<8x256xf32>
    %cst_10 = arith.constant 0.000000e+00 : f32
    %16 = vector.broadcast %cst_10 : f32 to vector<8x256xf32>
    %17 = arith.maximumf %15, %16 : vector<8x256xf32>
    %18 = arith.truncf %17 : vector<8x256xf32> to vector<8x256xbf16>
    %c0_11 = arith.constant 0 : index
    %c0_12 = arith.constant 0 : index
    %19 = vector.load %arg6[%c0_11, %c0_12] : memref<256x512xbf16, #tpu.memory_space<vmem>>, vector<256x512xbf16>
    %cst_13 = arith.constant dense<0.000000e+00> : vector<8x512xf32>
    %20 = tpu.matmul %18, %19, %cst_13 {dimension_numbers = #tpu.dot_dimension_numbers<[1], [0], [0], [1], [0, 0, 1, 1], [], []>} : vector<8x256xbf16>, vector<256x512xbf16>, vector<8x512xf32> -> vector<8x512xf32>
    %c0_14 = arith.constant 0 : index
    %c0_15 = arith.constant 0 : index
    %21 = vector.load %arg7[%c0_14, %c0_15] : memref<1x512xf32, #tpu.memory_space<vmem>>, vector<1x512xf32>
    %22 = vector.broadcast %21 : vector<1x512xf32> to vector<8x512xf32>
    %23 = arith.addf %20, %22 : vector<8x512xf32>
    %cst_16 = arith.constant 0.000000e+00 : f32
    %24 = vector.broadcast %cst_16 : f32 to vector<8x512xf32>
    %25 = arith.maximumf %23, %24 : vector<8x512xf32>
    %c0_i32_17 = arith.constant 0 : i32
    %26 = tpu.memref_slice %arg15[%c0_i32_17] : memref<2x!tpu.dma_semaphore, #tpu.memory_space<semaphore_mem>> -> memref<1x!tpu.dma_semaphore, #tpu.memory_space<semaphore_mem>>
    %27 = tpu.memref_squeeze %26 : memref<1x!tpu.dma_semaphore, #tpu.memory_space<semaphore_mem>> -> memref<!tpu.dma_semaphore, #tpu.memory_space<semaphore_mem>>
    tpu.wait_dma2 semaphore(%27 : memref<!tpu.dma_semaphore, #tpu.memory_space<semaphore_mem>>) src(%arg8 : memref<512x1024xbf16, #tpu.memory_space<any>>) dst(%arg13 : memref<512x1024xbf16, #tpu.memory_space<vmem>>)
    %c0_18 = arith.constant 0 : index
    %c0_19 = arith.constant 0 : index
    %28 = vector.load %arg13[%c0_18, %c0_19] : memref<512x1024xbf16, #tpu.memory_space<vmem>>, vector<512x1024xbf16>
    %29 = arith.truncf %25 : vector<8x512xf32> to vector<8x512xbf16>
    %cst_20 = arith.constant dense<0.000000e+00> : vector<8x1024xf32>
    %30 = tpu.matmul %29, %28, %cst_20 {dimension_numbers = #tpu.dot_dimension_numbers<[1], [0], [0], [1], [0, 0, 1, 1], [], []>} : vector<8x512xbf16>, vector<512x1024xbf16>, vector<8x1024xf32> -> vector<8x1024xf32>
    %c0_21 = arith.constant 0 : index
    %c0_22 = arith.constant 0 : index
    %31 = vector.load %arg9[%c0_21, %c0_22] : memref<1x1024xf32, #tpu.memory_space<vmem>>, vector<1x1024xf32>
    %32 = vector.broadcast %31 : vector<1x1024xf32> to vector<8x1024xf32>
    %33 = arith.addf %30, %32 : vector<8x1024xf32>
    %cst_23 = arith.constant 0.000000e+00 : f32
    %34 = vector.broadcast %cst_23 : f32 to vector<8x1024xf32>
    %35 = arith.maximumf %33, %34 : vector<8x1024xf32>
    %c1_i32_24 = arith.constant 1 : i32
    %36 = tpu.memref_slice %arg15[%c1_i32_24] : memref<2x!tpu.dma_semaphore, #tpu.memory_space<semaphore_mem>> -> memref<1x!tpu.dma_semaphore, #tpu.memory_space<semaphore_mem>>
    %37 = tpu.memref_squeeze %36 : memref<1x!tpu.dma_semaphore, #tpu.memory_space<semaphore_mem>> -> memref<!tpu.dma_semaphore, #tpu.memory_space<semaphore_mem>>
    tpu.wait_dma2 semaphore(%37 : memref<!tpu.dma_semaphore, #tpu.memory_space<semaphore_mem>>) src(%arg10 : memref<1024x896xbf16, #tpu.memory_space<any>>) dst(%arg14 : memref<1024x896xbf16, #tpu.memory_space<vmem>>)
    %c0_25 = arith.constant 0 : index
    %c0_26 = arith.constant 0 : index
    %38 = vector.load %arg14[%c0_25, %c0_26] : memref<1024x896xbf16, #tpu.memory_space<vmem>>, vector<1024x896xbf16>
    %39 = arith.truncf %35 : vector<8x1024xf32> to vector<8x1024xbf16>
    %cst_27 = arith.constant dense<0.000000e+00> : vector<8x896xf32>
    %40 = tpu.matmul %39, %38, %cst_27 {dimension_numbers = #tpu.dot_dimension_numbers<[1], [0], [0], [1], [0, 0, 1, 1], [], []>} : vector<8x1024xbf16>, vector<1024x896xbf16>, vector<8x896xf32> -> vector<8x896xf32>
    %c0_28 = arith.constant 0 : index
    %c0_29 = arith.constant 0 : index
    %41 = vector.load %arg11[%c0_28, %c0_29] : memref<1x896xf32, #tpu.memory_space<vmem>>, vector<1x896xf32>
    %42 = vector.broadcast %41 : vector<1x896xf32> to vector<8x896xf32>
    %43 = arith.addf %40, %42 : vector<8x896xf32>
    %44 = math.tanh %43 : vector<8x896xf32>
    %45 = arith.truncf %44 : vector<8x896xf32> to vector<8x896xbf16>
    %c0_30 = arith.constant 0 : index
    %c0_31 = arith.constant 0 : index
    %46 = vector.load %arg12[%c0_30, %c0_31] : memref<8x896xbf16, #tpu.memory_space<vmem>>, vector<8x896xbf16>
    tpu.vector_store %arg12[%c0_30, %c0_31], %45 {strides = array<i32>} : memref<8x896xbf16, #tpu.memory_space<vmem>>, vector<8x896xbf16>,
    return
  }
  func.func @transform_0(%arg0: i32) -> (i32, i32) {
    %c0_i32 = arith.constant 0 : i32
    %c0_i32_0 = arith.constant 0 : i32
    %c0_i32_1 = arith.constant 0 : i32
    return %c0_i32, %c0_i32_0 : i32, i32
  }
  func.func @transform_1(%arg0: i32) -> (i32, i32) {
    %c0_i32 = arith.constant 0 : i32
    %c0_i32_0 = arith.constant 0 : i32
    %c0_i32_1 = arith.constant 0 : i32
    return %c0_i32, %c0_i32_0 : i32, i32
  }
  func.func @transform_2(%arg0: i32) -> (i32, i32) {
    %c0_i32 = arith.constant 0 : i32
    %c0_i32_0 = arith.constant 0 : i32
    %c0_i32_1 = arith.constant 0 : i32
    return %c0_i32, %c0_i32_0 : i32, i32
  }
  func.func @transform_3(%arg0: i32) -> (i32, i32) {
    %c0_i32 = arith.constant 0 : i32
    %c0_i32_0 = arith.constant 0 : i32
    %c0_i32_1 = arith.constant 0 : i32
    return %c0_i32, %c0_i32_0 : i32, i32
  }
  func.func @transform_4(%arg0: i32) -> (i32, i32) {
    %c0_i32 = arith.constant 0 : i32
    %c0_i32_0 = arith.constant 0 : i32
    %c0_i32_1 = arith.constant 0 : i32
    return %c0_i32, %c0_i32_0 : i32, i32
  }
  func.func @transform_5(%arg0: i32) -> (i32, i32) {
    %c0_i32 = arith.constant 0 : i32
    %c0_i32_0 = arith.constant 0 : i32
    %c0_i32_1 = arith.constant 0 : i32
    return %c0_i32, %c0_i32_0 : i32, i32
  }
  func.func @transform_6(%arg0: i32) -> (i32, i32) {
    %c0_i32 = arith.constant 0 : i32
    %c0_i32_0 = arith.constant 0 : i32
    %c0_i32_1 = arith.constant 0 : i32
    return %c0_i32, %c0_i32_0 : i32, i32
  }
  func.func @transform_8(%arg0: i32) -> (i32, i32) {
    %c0_i32 = arith.constant 0 : i32
    %c0_i32_0 = arith.constant 0 : i32
    %c0_i32_1 = arith.constant 0 : i32
    return %c0_i32, %c0_i32_0 : i32, i32
  }
  func.func @transform_10(%arg0: i32) -> (i32, i32) {
    %c0_i32 = arith.constant 0 : i32
    %c0_i32_0 = arith.constant 0 : i32
    %c0_i32_1 = arith.constant 0 : i32
    return %c0_i32, %c0_i32_0 : i32, i32
  }
  func.func @transform_11(%arg0: i32) -> (i32, i32) {
    %c0_i32 = arith.constant 0 : i32
    %c0_i32_0 = arith.constant 0 : i32
    %c0_i32_1 = arith.constant 0 : i32
    return %c0_i32, %c0_i32_0 : i32, i32
  }
}

</mosaic_0001>

<llo_original>
// kernel: generator_forward.1
$region0: #{generator_forward.1}
  #allocation0 [shape = 'u32[]', space=smem, size = 0x4, offset = 0x4, fixed_abs, tag = 'smem constant byte address 0x4 - core index']
  #allocation1 [shape = 'u32[144,128]{1,0:T(1,128)}', space=vmem, size = 0x12000, scoped, tag = 'internal scratch']
  #allocation2 [shape = 'bf16[512,1024]{1,0:T(8,128)(2,1)}', space=vmem, size = 0x100000, scoped, tag = 'scratch operand']
  #allocation3 [shape = 'bf16[1024,896]{1,0:T(8,128)(2,1)}', space=vmem, size = 0x1c0000, scoped, tag = 'scratch operand']
  #allocation4 [shape = 's32[2]{0}', space=sflag, size = 0x8, scoped, tag = 'scratch operand']
  #allocation19 [shape = 's32[]', space=sflag, size = 0x4, offset = 0, fixed_abs, tag = 'sflag constant byte address 0x0 - dummy sync flag']
  #allocation20 [shape = 's32[]', space=sflag, size = 0x4, offset = 0, fixed_abs, tag = 'sflag constant byte address 0x0 - dummy sync flag']
  #allocation21 [shape = 'u32[]', space=smem, size = 0x4, offset = 0x44, fixed_abs, tag = 'smem constant byte address 0x44 - assertion arg 0']
  #allocation22 [shape = 'u32[]', space=smem, size = 0x4, offset = 0x48, fixed_abs, tag = 'smem constant byte address 0x48 - assertion arg 1']
  #allocation23 [shape = 's32[]', space=sflag, size = 0x4, offset = 0, fixed_abs, tag = 'sflag constant byte address 0x0 - dummy sync flag']
  #allocation24 [shape = 's32[]', space=sflag, size = 0x4, offset = 0, fixed_abs, tag = 'sflag constant byte address 0x0 - dummy sync flag']
  %s0 = inlined_call_operand.hbm [shape: f32[8,100], index: 0, kind: input, shape index: {}]
  %s1 = inlined_call_operand.hbm [shape: f32[8,10], index: 1, kind: input, shape index: {}]
  %s2 = inlined_call_operand.hbm [shape: bf16[100,256], index: 2, kind: input, shape index: {}]
  %s3 = inlined_call_operand.hbm [shape: bf16[10,256], index: 3, kind: input, shape index: {}]
  %s4 = inlined_call_operand.hbm [shape: f32[1,256], index: 4, kind: input, shape index: {}]
  %s5 = inlined_call_operand.hbm [shape: bf16[256,512], index: 5, kind: input, shape index: {}]
  %s6 = inlined_call_operand.hbm [shape: f32[1,512], index: 6, kind: input, shape index: {}]
  %s7 = inlined_call_operand.hbm [shape: bf16[512,1024], index: 7, kind: input, shape index: {}]
  %s8 = inlined_call_operand.hbm [shape: f32[1,1024], index: 8, kind: input, shape index: {}]
  %s9 = inlined_call_operand.hbm [shape: bf16[1024,896], index: 9, kind: input, shape index: {}]
  %s10 = inlined_call_operand.hbm [shape: f32[1,896], index: 10, kind: input, shape index: {}]
  %s11 = inlined_call_operand.vmem [shape: bf16[8,896], index: 11, kind: output, shape index: {}]
  %s12 = sld [smem:[#allocation0]]
  $region90: #{generator_forward.1} parent=0
    _
  %s14 = ssub.s32 1, %s12
  %s15 = scalar_select 0, %s14, %s12
  $region1: #{generator_forward.1} parent=0
    #allocation5 [shape = 'u8[4096]{0}', space=vmem, size = 0x1000, scoped, tag = 'input window, operand 0, single buffered']
    #allocation6 [shape = 's32[1]{0}', space=sflag, size = 0x4, scoped, tag = 'scoped memory for generator_forward.1']
    #allocation7 [shape = 'u8[4096]{0}', space=vmem, size = 0x1000, scoped, tag = 'input window, operand 1, single buffered']
    #allocation8 [shape = 's32[1]{0}', space=sflag, size = 0x4, scoped, tag = 'scoped memory for generator_forward.1']
    #allocation9 [shape = 'u8[53248]{0}', space=vmem, size = 0xd000, scoped, tag = 'input window, operand 2, single buffered']
    #allocation10 [shape = 'u8[8192]{0}', space=vmem, size = 0x2000, scoped, tag = 'input window, operand 3, single buffered']
    #allocation11 [shape = 's32[1]{0}', space=sflag, size = 0x4, scoped, tag = 'scoped memory for generator_forward.1']
    #allocation12 [shape = 'u8[1024]{0}', space=vmem, size = 0x400, scoped, tag = 'input window, operand 4, single buffered']
    #allocation13 [shape = 'u8[262144]{0}', space=vmem, size = 0x40000, scoped, tag = 'input window, operand 5, single buffered']
    #allocation14 [shape = 's32[1]{0}', space=sflag, size = 0x4, scoped, tag = 'scoped memory for generator_forward.1']
    #allocation15 [shape = 'u8[2048]{0}', space=vmem, size = 0x800, scoped, tag = 'input window, operand 6, single buffered']
    #allocation16 [shape = 'u8[4096]{0}', space=vmem, size = 0x1000, scoped, tag = 'input window, operand 8, single buffered']
    #allocation17 [shape = 's32[1]{0}', space=sflag, size = 0x4, scoped, tag = 'scoped memory for generator_forward.1']
    #allocation18 [shape = 'u8[3584]{0}', space=vmem, size = 0x1000, scoped, tag = 'input window, operand 10, single buffered']
    %16 = vsyncpa [#allocation6], 0
    %17 = vsyncpa [#allocation8], 0
    %18 = vsyncpa [#allocation11], 0
    %19 = vsyncpa [#allocation14], 0
    %20 = vsyncpa [#allocation17], 0
    // Predicated region
    $region2: #{generator_forward.1} parent=1 // pred_check
      _
    $region3: #{generator_forward.1} parent=1 // pred_check_branch
      %22 = sbr.rel (0) target = $region5
    $region4: #{generator_forward.1} parent=1 // pred_region
      %s24 = ssub.s32 128, 128
      %25 = vsyncadd [#allocation6], %s24
      %s27 = sshll.u32 [#allocation5], 4
      %s28 = int_to_ptr.vmem [resolvable:$true] %s27
      %30 = dma.hbm_to_vmem [thread:$0]  %s0, 128, %s28, [#allocation6]
    $region5: #{generator_forward.1} parent=1 // pred_fallthru
      _
    // Predicated region
    $region6: #{generator_forward.1} parent=1 // pred_check
      _
    $region7: #{generator_forward.1} parent=1 // pred_check_branch
      %32 = sbr.rel (0) target = $region9
    $region8: #{generator_forward.1} parent=1 // pred_region
      %s34 = ssub.s32 128, 128
      %35 = vsyncadd [#allocation8], %s34
      %s37 = sshll.u32 [#allocation7], 4
      %s38 = int_to_ptr.vmem [resolvable:$true] %s37
      %40 = dma.hbm_to_vmem [thread:$0]  %s1, 128, %s38, [#allocation8]
    $region9: #{generator_forward.1} parent=1 // pred_fallthru
      _
    // Predicated region
    $region10: #{generator_forward.1} parent=1 // pred_check
      _
    $region11: #{generator_forward.1} parent=1 // pred_check_branch
      %42 = sbr.rel (0) target = $region13
    $region12: #{generator_forward.1} parent=1 // pred_region
      %s44 = ssub.s32 1664, 1664
      %45 = vsyncadd [#allocation8], %s44
      %s46 = sshll.u32 [#allocation9], 4
      %s47 = int_to_ptr.vmem [resolvable:$true] %s46
      %52 = dma.hbm_to_vmem [thread:$0]  %s2, 1664, %s47, [#allocation8], 128, 128, 8
    $region13: #{generator_forward.1} parent=1 // pred_fallthru
      _
    // Predicated region
    $region14: #{generator_forward.1} parent=1 // pred_check
      _
    $region15: #{generator_forward.1} parent=1 // pred_check_branch
      %54 = sbr.rel (0) target = $region17
    $region16: #{generator_forward.1} parent=1 // pred_region
      %s56 = ssub.s32 256, 256
      %57 = vsyncadd [#allocation11], %s56
      %s58 = sshll.u32 [#allocation10], 4
      %s59 = int_to_ptr.vmem [resolvable:$true] %s58
      %64 = dma.hbm_to_vmem [thread:$0]  %s3, 256, %s59, [#allocation11], 128, 128, 8
    $region17: #{generator_forward.1} parent=1 // pred_fallthru
      _
    // Predicated region
    $region18: #{generator_forward.1} parent=1 // pred_check
      _
    $region19: #{generator_forward.1} parent=1 // pred_check_branch
      %66 = sbr.rel (0) target = $region21
    $region20: #{generator_forward.1} parent=1 // pred_region
      %s68 = ssub.s32 32, 32
      %69 = vsyncadd [#allocation11], %s68
      %s71 = sshll.u32 [#allocation12], 4
      %s72 = int_to_ptr.vmem [resolvable:$true] %s71
      %74 = dma.hbm_to_vmem [thread:$0]  %s4, 32, %s72, [#allocation11]
    $region21: #{generator_forward.1} parent=1 // pred_fallthru
      _
    // Predicated region
    $region22: #{generator_forward.1} parent=1 // pred_check
      _
    $region23: #{generator_forward.1} parent=1 // pred_check_branch
      %76 = sbr.rel (0) target = $region25
    $region24: #{generator_forward.1} parent=1 // pred_region
      %s78 = ssub.s32 8192, 8192
      %79 = vsyncadd [#allocation14], %s78
      %s80 = sshll.u32 [#allocation13], 4
      %s81 = int_to_ptr.vmem [resolvable:$true] %s80
      %86 = dma.hbm_to_vmem [thread:$0]  %s5, 8192, %s81, [#allocation14], 256, 256, 16
    $region25: #{generator_forward.1} parent=1 // pred_fallthru
      _
    // Predicated region
    $region26: #{generator_forward.1} parent=1 // pred_check
      _
    $region27: #{generator_forward.1} parent=1 // pred_check_branch
      %88 = sbr.rel (0) target = $region29
    $region28: #{generator_forward.1} parent=1 // pred_region
      %s90 = ssub.s32 64, 64
      %91 = vsyncadd [#allocation14], %s90
      %s93 = sshll.u32 [#allocation15], 4
      %s94 = int_to_ptr.vmem [resolvable:$true] %s93
      %96 = dma.hbm_to_vmem [thread:$0]  %s6, 64, %s94, [#allocation14]
    $region29: #{generator_forward.1} parent=1 // pred_fallthru
      _
    // Predicated region
    $region30: #{generator_forward.1} parent=1 // pred_check
      _
    $region31: #{generator_forward.1} parent=1 // pred_check_branch
      %98 = sbr.rel (0) target = $region33
    $region32: #{generator_forward.1} parent=1 // pred_region
      %s100 = ssub.s32 128, 128
      %101 = vsyncadd [#allocation17], %s100
      %s103 = sshll.u32 [#allocation16], 4
      %s104 = int_to_ptr.vmem [resolvable:$true] %s103
      %106 = dma.hbm_to_vmem [thread:$0]  %s8, 128, %s104, [#allocation17]
    $region33: #{generator_forward.1} parent=1 // pred_fallthru
      _
    // Predicated region
    $region34: #{generator_forward.1} parent=1 // pred_check
      _
    $region35: #{generator_forward.1} parent=1 // pred_check_branch
      %108 = sbr.rel (0) target = $region37
    $region36: #{generator_forward.1} parent=1 // pred_region
      %s110 = ssub.s32 112, 112
      %111 = vsyncadd [#allocation17], %s110
      %s113 = sshll.u32 [#allocation18], 4
      %s114 = int_to_ptr.vmem [resolvable:$true] %s113
      %116 = dma.hbm_to_vmem [thread:$0]  %s10, 112, %s114, [#allocation17]
    $region37: #{generator_forward.1} parent=1 // pred_fallthru
      _
    // Predicated region
    $region38: #{generator_forward.1} parent=1 // pred_check
      _
    $region39: #{generator_forward.1} parent=1 // pred_check_branch
      %118 = sbr.rel (0) target = $region41
    $region40: #{generator_forward.1} parent=1 // pred_region
      %119 = dma.done [#allocation6], 128
    $region41: #{generator_forward.1} parent=1 // pred_fallthru
      _
    // Predicated region
    $region42: #{generator_forward.1} parent=1 // pred_check
      _
    $region43: #{generator_forward.1} parent=1 // pred_check_branch
      %121 = sbr.rel (0) target = $region45
    $region44: #{generator_forward.1} parent=1 // pred_region
      %122 = dma.done [#allocation8], 128
    $region45: #{generator_forward.1} parent=1 // pred_fallthru
      _
    // Predicated region
    $region46: #{generator_forward.1} parent=1 // pred_check
      _
    $region47: #{generator_forward.1} parent=1 // pred_check_branch
      %124 = sbr.rel (0) target = $region49
    $region48: #{generator_forward.1} parent=1 // pred_region
      %125 = dma.done [#allocation8], 1664
    $region49: #{generator_forward.1} parent=1 // pred_fallthru
      _
    // Predicated region
    $region50: #{generator_forward.1} parent=1 // pred_check
      _
    $region51: #{generator_forward.1} parent=1 // pred_check_branch
      %127 = sbr.rel (0) target = $region53
    $region52: #{generator_forward.1} parent=1 // pred_region
      %128 = dma.done [#allocation11], 256
    $region53: #{generator_forward.1} parent=1 // pred_fallthru
      _
    // Predicated region
    $region54: #{generator_forward.1} parent=1 // pred_check
      _
    $region55: #{generator_forward.1} parent=1 // pred_check_branch
      %130 = sbr.rel (0) target = $region57
    $region56: #{generator_forward.1} parent=1 // pred_region
      %131 = dma.done [#allocation11], 32
    $region57: #{generator_forward.1} parent=1 // pred_fallthru
      _
    // Predicated region
    $region58: #{generator_forward.1} parent=1 // pred_check
      _
    $region59: #{generator_forward.1} parent=1 // pred_check_branch
      %133 = sbr.rel (0) target = $region61
    $region60: #{generator_forward.1} parent=1 // pred_region
      %134 = dma.done [#allocation14], 8192
    $region61: #{generator_forward.1} parent=1 // pred_fallthru
      _
    // Predicated region
    $region62: #{generator_forward.1} parent=1 // pred_check
      _
    $region63: #{generator_forward.1} parent=1 // pred_check_branch
      %136 = sbr.rel (0) target = $region65
    $region64: #{generator_forward.1} parent=1 // pred_region
      %137 = dma.done [#allocation14], 64
    $region65: #{generator_forward.1} parent=1 // pred_fallthru
      _
    // Predicated region
    $region66: #{generator_forward.1} parent=1 // pred_check
      _
    $region67: #{generator_forward.1} parent=1 // pred_check_branch
      %139 = sbr.rel (0) target = $region69
    $region68: #{generator_forward.1} parent=1 // pred_region
      %140 = dma.done [#allocation17], 128
    $region69: #{generator_forward.1} parent=1 // pred_fallthru
      _
    // Predicated region
    $region70: #{generator_forward.1} parent=1 // pred_check
      _
    $region71: #{generator_forward.1} parent=1 // pred_check_branch
      %142 = sbr.rel (0) target = $region73
    $region72: #{generator_forward.1} parent=1 // pred_region
      %143 = dma.done [#allocation17], 112
    $region73: #{generator_forward.1} parent=1 // pred_fallthru
      _
    // Predicated region
    $region74: #{generator_forward.1} parent=1 // pred_check
      _
    $region75: #{generator_forward.1} parent=1 // pred_check_branch
      %146 = sbr.rel target = $region77
    $region76: #{generator_forward.1} parent=1 // pred_region
      %147 = sst [smem:[#allocation21]] [#allocation20]
      %148 = sst [smem:[#allocation22]] [#allocation19]
    $region77: #{generator_forward.1} parent=1 // pred_fallthru
      _
    %150 = shalt.err (0)
    %s152 = sshll.u32 [#allocation2], 4
    %s153 = int_to_ptr.vmem [resolvable:$true] %s152
    %155 = dma.hbm_to_vmem [thread:$0]  %s7, 32768, %s153, [#allocation4]
    %s156 = scalar_lea.sflag [#allocation4], 1
    // Predicated region
    $region78: #{generator_forward.1} parent=1 // pred_check
      _
    $region79: #{generator_forward.1} parent=1 // pred_check_branch
      %158 = sbr.rel target = $region81
    $region80: #{generator_forward.1} parent=1 // pred_region
      %159 = sst [smem:[#allocation21]] [#allocation24]
      %160 = sst [smem:[#allocation22]] [#allocation23]
    $region81: #{generator_forward.1} parent=1 // pred_fallthru
      _
    %162 = shalt.err (0)
    %s164 = sshll.u32 [#allocation3], 4
    %s165 = int_to_ptr.vmem [resolvable:$true] %s164
    %167 = dma.hbm_to_vmem [thread:$0]  %s9, 57344, %s165, %s156
    %v168 = vld [vmem:[#allocation5] sm:$0xff]
    %v169 = vpack.c.bf16 %v168, %v168
    %v170 = vld [vmem:[#allocation9] sm:$0xff]
    %v171 = vld [vmem:[#allocation9 + $0x8] sm:$0xff]
    %v172 = vld [vmem:[#allocation9 + $0x10] sm:$0xff]
    %v173 = vld [vmem:[#allocation9 + $0x18] sm:$0xff]
    %v174 = vld [vmem:[#allocation9 + $0x20] sm:$0xff]
    %v175 = vld [vmem:[#allocation9 + $0x28] sm:$0xff]
    %v176 = vld [vmem:[#allocation9 + $0x30] sm:$0xff]
    %v177 = vld [vmem:[#allocation9 + $0x38] sm:$0xff]
    %v178 = vld [vmem:[#allocation9 + $0x40] sm:$0xff]
    %v179 = vld [vmem:[#allocation9 + $0x48] sm:$0xff]
    %v180 = vld [vmem:[#allocation9 + $0x50] sm:$0xff]
    %v181 = vld [vmem:[#allocation9 + $0x58] sm:$0xff]
    %v182 = vld [vmem:[#allocation9 + $0x60] sm:$0x33]
    %v183 = vld [vmem:[#allocation7] sm:$0xff]
    %v184 = vpack.c.bf16 %v183, %v183
    %v185 = vld [vmem:[#allocation10] sm:$0xff]
    %v186 = vld [vmem:[#allocation10 + $0x8] sm:$0x11]
    %v189 = vunpack.c.l.b16 %v185
    %v190 = vunpack.c.h.b16 %v185
    %v191 = vunpack.c.l.b16 %v186
    %v192 = vunpack.c.h.b16 %v186
    %v193 = vpack.c.b16 %v191, %v189
    %v194 = vpack.c.b16 %v192, %v190
    %vm195 = vcmask 80896
    %v197 = vsel %vm195, %v184, 0
    %vm199 = vcmask 1044480
    %v201 = vsel %vm199, %v193, 0
    %v204 = vsel %vm199, %v194, 0
    %206 = vmatprep.subr.bf16.mxu0 0
    %207 = vmatpush1.bf16.msra.mxu0 0
    %208 = vmatprep.subr.bf16.mxu0 0
    %209 = vmatpush1.bf16.msra.mxu0 0
    %210 = vmatprep.subr.bf16.mxu0 0
    %211 = vmatpush1.bf16.msra.mxu0 0
    %212 = vmatprep.subr.bf16.mxu0 0
    %213 = vmatpush1.bf16.msra.mxu0 0
    %214 = vmatprep.subr.bf16.mxu0 0
    %215 = vmatpush1.bf16.msra.mxu0 0
    %216 = vmatprep.subr.bf16.mxu0 0
    %217 = vmatpush1.bf16.msra.mxu0 0
    %218 = vmatprep.subr.bf16.mxu0 0
    %219 = vmatpush1.bf16.msra.mxu0 0
    %220 = vmatprep.subr.bf16.mxu0 %v204
    %221 = vmatpush1.bf16.msra.mxu0 %v201
    %222 = vmatprep.subr.bf16.mxu0 0
    %223 = vmatpush2.bf16.msra.mxu0 0
    %224 = vmatprep.subr.bf16.mxu0 0
    %225 = vmatpush2.bf16.msra.mxu0 0
    %226 = vmatprep.subr.bf16.mxu0 0
    %227 = vmatpush2.bf16.msra.mxu0 0
    %228 = vmatprep.subr.bf16.mxu0 0
    %229 = vmatpush2.bf16.msra.mxu0 0
    %230 = vmatprep.subr.bf16.mxu0 0
    %231 = vmatpush2.bf16.msra.mxu0 0
    %232 = vmatprep.subr.bf16.mxu0 0
    %233 = vmatpush2.bf16.msra.mxu0 0
    %234 = vmatprep.subr.bf16.mxu0 0
    %235 = vmatpush2.bf16.msra.mxu0 0
    %236 = vmatprep.subr.bf16.mxu0 0
    %237 = vmatpush2.bf16.msra.mxu0 0
    %238 = vmatprep.mubr.bf16.mxu0 0
    %239 = vmatmul.mubr.bf16.gmra.mxu0 %v197
    %v240 = vpop.f32.mrf.mxu0
    %v241 = vadd.f32 0.0, %v240
    %v242 = vpop.f32.mrf.mxu0
    %v243 = vadd.f32 0.0, %v242
    %v244 = vpop.f32.mrf.mxu0
    %v245 = vpop.f32.mrf.mxu0
    %246 = vdwg.mxu0
    %v260 = vunpack.c.l.b16 %v170
    %v261 = vunpack.c.h.b16 %v170
    %v262 = vunpack.c.l.b16 %v171
    %v263 = vunpack.c.h.b16 %v171
    %v264 = vunpack.c.l.b16 %v172
    %v265 = vunpack.c.h.b16 %v172
    %v266 = vunpack.c.l.b16 %v173
    %v267 = vunpack.c.h.b16 %v173
    %v268 = vunpack.c.l.b16 %v174
    %v269 = vunpack.c.h.b16 %v174
    %v270 = vunpack.c.l.b16 %v175
    %v271 = vunpack.c.h.b16 %v175
    %v272 = vunpack.c.l.b16 %v176
    %v273 = vunpack.c.h.b16 %v176
    %v274 = vunpack.c.l.b16 %v177
    %v275 = vunpack.c.h.b16 %v177
    %v276 = vunpack.c.l.b16 %v178
    %v277 = vunpack.c.h.b16 %v178
    %v278 = vunpack.c.l.b16 %v179
    %v279 = vunpack.c.h.b16 %v179
    %v280 = vunpack.c.l.b16 %v180
    %v281 = vunpack.c.h.b16 %v180
    %v282 = vunpack.c.l.b16 %v181
    %v283 = vunpack.c.h.b16 %v181
    %v284 = vunpack.c.l.b16 %v182
    %v285 = vunpack.c.h.b16 %v182
    %v286 = vpack.c.b16 %v262, %v260
    %v287 = vpack.c.b16 %v263, %v261
    %v288 = vpack.c.b16 %v266, %v264
    %v289 = vpack.c.b16 %v267, %v265
    %v290 = vpack.c.b16 %v270, %v268
    %v291 = vpack.c.b16 %v271, %v269
    %v292 = vpack.c.b16 %v274, %v272
    %v293 = vpack.c.b16 %v275, %v273
    %v294 = vpack.c.b16 %v278, %v276
    %v295 = vpack.c.b16 %v279, %v277
    %v296 = vpack.c.b16 %v282, %v280
    %v297 = vpack.c.b16 %v283, %v281
    %v298 = vpack.c.b16 %v284, %v284
    %v299 = vpack.c.b16 %v285, %v285
    %vm312 = vcmask 818176
    %v314 = vsel %vm312, %v169, 0
    %vm316 = vcmask 1041408
    %v318 = vsel %vm316, %v298, 0
    %v321 = vsel %vm316, %v299, 0
    %323 = vmatprep.subr.bf16.mxu0 0
    %324 = vmatpush1.bf16.msra.mxu0 0
    %325 = vmatprep.subr.bf16.mxu0 %v321
    %326 = vmatpush1.bf16.msra.mxu0 %v318
    %327 = vmatprep.subr.bf16.mxu0 %v297
    %328 = vmatpush1.bf16.msra.mxu0 %v296
    %329 = vmatprep.subr.bf16.mxu0 %v295
    %330 = vmatpush1.bf16.msra.mxu0 %v294
    %331 = vmatprep.subr.bf16.mxu0 %v293
    %332 = vmatpush1.bf16.msra.mxu0 %v292
    %333 = vmatprep.subr.bf16.mxu0 %v291
    %334 = vmatpush1.bf16.msra.mxu0 %v290
    %335 = vmatprep.subr.bf16.mxu0 %v289
    %336 = vmatpush1.bf16.msra.mxu0 %v288
    %337 = vmatprep.subr.bf16.mxu0 %v287
    %338 = vmatpush1.bf16.msra.mxu0 %v286
    %339 = vmatprep.subr.bf16.mxu0 0
    %340 = vmatpush2.bf16.msra.mxu0 0
    %341 = vmatprep.subr.bf16.mxu0 0
    %342 = vmatpush2.bf16.msra.mxu0 0
    %343 = vmatprep.subr.bf16.mxu0 0
    %344 = vmatpush2.bf16.msra.mxu0 0
    %345 = vmatprep.subr.bf16.mxu0 0
    %346 = vmatpush2.bf16.msra.mxu0 0
    %347 = vmatprep.subr.bf16.mxu0 0
    %348 = vmatpush2.bf16.msra.mxu0 0
    %349 = vmatprep.subr.bf16.mxu0 0
    %350 = vmatpush2.bf16.msra.mxu0 0
    %351 = vmatprep.subr.bf16.mxu0 0
    %352 = vmatpush2.bf16.msra.mxu0 0
    %353 = vmatprep.subr.bf16.mxu0 0
    %354 = vmatpush2.bf16.msra.mxu0 0
    %355 = vmatprep.mubr.bf16.mxu0 0
    %356 = vmatmul.mubr.bf16.gmra.mxu0 %v314
    %v357 = vpop.f32.mrf.mxu0
    %v358 = vadd.f32 %v241, %v357
    %v359 = vpop.f32.mrf.mxu0
    %v360 = vadd.f32 %v243, %v359
    %v361 = vpop.f32.mrf.mxu0
    %v362 = vpop.f32.mrf.mxu0
    %363 = vdwg.mxu0
    %v364 = vld [vmem:[#allocation12] sm:$0x3]
    %v366 = vlaneseq
    %v367 = vshrl.u32 %v366, 7
    %v368 = vsub.s32 0, %v367
    %v369 = vrot.slane %v364, %v368
    %v370 = vlaneseq
    %v371 = vshrl.u32 %v370, 7
    %v372 = vsub.s32 1, %v371
    %v373 = vrot.slane %v364, %v372
    %v376 = vadd.f32 %v358, %v369
    %v377 = vadd.f32 %v360, %v373
    %v378 = vmax.f32 %v376, 0.0
    %v379 = vmax.f32 %v377, 0.0
    %v380 = vpack.c.bf16 %v378, %v378
    %v381 = vpack.c.bf16 %v379, %v379
    %v382 = vld [vmem:[#allocation13] sm:$0xff]
    %v383 = vld [vmem:[#allocation13 + $0x8] sm:$0xff]
    %v384 = vld [vmem:[#allocation13 + $0x10] sm:$0xff]
    %v385 = vld [vmem:[#allocation13 + $0x18] sm:$0xff]
    %v386 = vld [vmem:[#allocation13 + $0x20] sm:$0xff]
    %v387 = vld [vmem:[#allocation13 + $0x28] sm:$0xff]
    %v388 = vld [vmem:[#allocation13 + $0x30] sm:$0xff]
    %v389 = vld [vmem:[#allocation13 + $0x38] sm:$0xff]
    %v390 = vld [vmem:[#allocation13 + $0x40] sm:$0xff]
    %v391 = vld [vmem:[#allocation13 + $0x48] sm:$0xff]
    %v392 = vld [vmem:[#allocation13 + $0x50] sm:$0xff]
    %v393 = vld [vmem:[#allocation13 + $0x58] sm:$0xff]
    %v394 = vld [vmem:[#allocation13 + $0x60] sm:$0xff]
    %v395 = vld [vmem:[#allocation13 + $0x68] sm:$0xff]
    %v396 = vld [vmem:[#allocation13 + $0x70] sm:$0xff]
    %v397 = vld [vmem:[#allocation13 + $0x78] sm:$0xff]
    %v398 = vld [vmem:[#allocation13 + $0x80] sm:$0xff]
    %v399 = vld [vmem:[#allocation13 + $0x88] sm:$0xff]
    %v400 = vld [vmem:[#allocation13 + $0x90] sm:$0xff]
    %v401 = vld [vmem:[#allocation13 + $0x98] sm:$0xff]
    %v402 = vld [vmem:[#allocation13 + $0xa0] sm:$0xff]
    %v403 = vld [vmem:[#allocation13 + $0xa8] sm:$0xff]
    %v404 = vld [vmem:[#allocation13 + $0xb0] sm:$0xff]
    %v405 = vld [vmem:[#allocation13 + $0xb8] sm:$0xff]
    %v406 = vld [vmem:[#allocation13 + $0xc0] sm:$0xff]
    %v407 = vld [vmem:[#allocation13 + $0xc8] sm:$0xff]
    %v408 = vld [vmem:[#allocation13 + $0xd0] sm:$0xff]
    %v409 = vld [vmem:[#allocation13 + $0xd8] sm:$0xff]
    %v410 = vld [vmem:[#allocation13 + $0xe0] sm:$0xff]
    %v411 = vld [vmem:[#allocation13 + $0xe8] sm:$0xff]
    %v412 = vld [vmem:[#allocation13 + $0xf0] sm:$0xff]
    %v413 = vld [vmem:[#allocation13 + $0xf8] sm:$0xff]
    %v414 = vld [vmem:[#allocation13 + $0x100] sm:$0xff]
    %v415 = vld [vmem:[#allocation13 + $0x108] sm:$0xff]
    %v416 = vld [vmem:[#allocation13 + $0x110] sm:$0xff]
    %v417 = vld [vmem:[#allocation13 + $0x118] sm:$0xff]
    %v418 = vld [vmem:[#allocation13 + $0x120] sm:$0xff]
    %v419 = vld [vmem:[#allocation13 + $0x128] sm:$0xff]
    %v420 = vld [vmem:[#allocation13 + $0x130] sm:$0xff]
    %v421 = vld [vmem:[#allocation13 + $0x138] sm:$0xff]
    %v422 = vld [vmem:[#allocation13 + $0x140] sm:$0xff]
    %v423 = vld [vmem:[#allocation13 + $0x148] sm:$0xff]
    %v424 = vld [vmem:[#allocation13 + $0x150] sm:$0xff]
    %v425 = vld [vmem:[#allocation13 + $0x158] sm:$0xff]
    %v426 = vld [vmem:[#allocation13 + $0x160] sm:$0xff]
    %v427 = vld [vmem:[#allocation13 + $0x168] sm:$0xff]
    %v428 = vld [vmem:[#allocation13 + $0x170] sm:$0xff]
    %v429 = vld [vmem:[#allocation13 + $0x178] sm:$0xff]
    %v430 = vld [vmem:[#allocation13 + $0x180] sm:$0xff]
    %v431 = vld [vmem:[#allocation13 + $0x188] sm:$0xff]
    %v432 = vld [vmem:[#allocation13 + $0x190] sm:$0xff]
    %v433 = vld [vmem:[#allocation13 + $0x198] sm:$0xff]
    %v434 = vld [vmem:[#allocation13 + $0x1a0] sm:$0xff]
    %v435 = vld [vmem:[#allocation13 + $0x1a8] sm:$0xff]
    %v436 = vld [vmem:[#allocation13 + $0x1b0] sm:$0xff]
    %v437 = vld [vmem:[#allocation13 + $0x1b8] sm:$0xff]
    %v438 = vld [vmem:[#allocation13 + $0x1c0] sm:$0xff]
    %v439 = vld [vmem:[#allocation13 + $0x1c8] sm:$0xff]
    %v440 = vld [vmem:[#allocation13 + $0x1d0] sm:$0xff]
    %v441 = vld [vmem:[#allocation13 + $0x1d8] sm:$0xff]
    %v442 = vld [vmem:[#allocation13 + $0x1e0] sm:$0xff]
    %v443 = vld [vmem:[#allocation13 + $0x1e8] sm:$0xff]
    %v444 = vld [vmem:[#allocation13 + $0x1f0] sm:$0xff]
    %v445 = vld [vmem:[#allocation13 + $0x1f8] sm:$0xff]
    %v446 = vld [vmem:[#allocation15] sm:$0xf]
    %v448 = vlaneseq
    %v449 = vshrl.u32 %v448, 7
    %v450 = vsub.s32 0, %v449
    %v451 = vrot.slane %v446, %v450
    %v452 = vlaneseq
    %v453 = vshrl.u32 %v452, 7
    %v454 = vsub.s32 1, %v453
    %v455 = vrot.slane %v446, %v454
    %v456 = vlaneseq
    %v457 = vshrl.u32 %v456, 7
    %v458 = vsub.s32 2, %v457
    %v459 = vrot.slane %v446, %v458
    %v460 = vlaneseq
    %v461 = vshrl.u32 %v460, 7
    %v462 = vsub.s32 3, %v461
    %v463 = vrot.slane %v446, %v462
    %v532 = vunpack.c.l.b16 %v382
    %v533 = vunpack.c.h.b16 %v382
    %v534 = vunpack.c.l.b16 %v383
    %v535 = vunpack.c.h.b16 %v383
    %v536 = vunpack.c.l.b16 %v384
    %v537 = vunpack.c.h.b16 %v384
    %v538 = vunpack.c.l.b16 %v385
    %v539 = vunpack.c.h.b16 %v385
    %v540 = vunpack.c.l.b16 %v386
    %v541 = vunpack.c.h.b16 %v386
    %v542 = vunpack.c.l.b16 %v387
    %v543 = vunpack.c.h.b16 %v387
    %v544 = vunpack.c.l.b16 %v388
    %v545 = vunpack.c.h.b16 %v388
    %v546 = vunpack.c.l.b16 %v389
    %v547 = vunpack.c.h.b16 %v389
    %v548 = vunpack.c.l.b16 %v390
    %v549 = vunpack.c.h.b16 %v390
    %v550 = vunpack.c.l.b16 %v391
    %v551 = vunpack.c.h.b16 %v391
    %v552 = vunpack.c.l.b16 %v392
    %v553 = vunpack.c.h.b16 %v392
    %v554 = vunpack.c.l.b16 %v393
    %v555 = vunpack.c.h.b16 %v393
    %v556 = vunpack.c.l.b16 %v394
    %v557 = vunpack.c.h.b16 %v394
    %v558 = vunpack.c.l.b16 %v395
    %v559 = vunpack.c.h.b16 %v395
    %v560 = vunpack.c.l.b16 %v396
    %v561 = vunpack.c.h.b16 %v396
    %v562 = vunpack.c.l.b16 %v397
    %v563 = vunpack.c.h.b16 %v397
    %v564 = vunpack.c.l.b16 %v398
    %v565 = vunpack.c.h.b16 %v398
    %v566 = vunpack.c.l.b16 %v399
    %v567 = vunpack.c.h.b16 %v399
    %v568 = vunpack.c.l.b16 %v400
    %v569 = vunpack.c.h.b16 %v400
    %v570 = vunpack.c.l.b16 %v401
    %v571 = vunpack.c.h.b16 %v401
    %v572 = vunpack.c.l.b16 %v402
    %v573 = vunpack.c.h.b16 %v402
    %v574 = vunpack.c.l.b16 %v403
    %v575 = vunpack.c.h.b16 %v403
    %v576 = vunpack.c.l.b16 %v404
    %v577 = vunpack.c.h.b16 %v404
    %v578 = vunpack.c.l.b16 %v405
    %v579 = vunpack.c.h.b16 %v405
    %v580 = vunpack.c.l.b16 %v406
    %v581 = vunpack.c.h.b16 %v406
    %v582 = vunpack.c.l.b16 %v407
    %v583 = vunpack.c.h.b16 %v407
    %v584 = vunpack.c.l.b16 %v408
    %v585 = vunpack.c.h.b16 %v408
    %v586 = vunpack.c.l.b16 %v409
    %v587 = vunpack.c.h.b16 %v409
    %v588 = vunpack.c.l.b16 %v410
    %v589 = vunpack.c.h.b16 %v410
    %v590 = vunpack.c.l.b16 %v411
    %v591 = vunpack.c.h.b16 %v411
    %v592 = vunpack.c.l.b16 %v412
    %v593 = vunpack.c.h.b16 %v412
    %v594 = vunpack.c.l.b16 %v413
    %v595 = vunpack.c.h.b16 %v413
    %v596 = vunpack.c.l.b16 %v414
    %v597 = vunpack.c.h.b16 %v414
    %v598 = vunpack.c.l.b16 %v415
    %v599 = vunpack.c.h.b16 %v415
    %v600 = vunpack.c.l.b16 %v416
    %v601 = vunpack.c.h.b16 %v416
    %v602 = vunpack.c.l.b16 %v417
    %v603 = vunpack.c.h.b16 %v417
    %v604 = vunpack.c.l.b16 %v418
    %v605 = vunpack.c.h.b16 %v418
    %v606 = vunpack.c.l.b16 %v419
    %v607 = vunpack.c.h.b16 %v419
    %v608 = vunpack.c.l.b16 %v420
    %v609 = vunpack.c.h.b16 %v420
    %v610 = vunpack.c.l.b16 %v421
    %v611 = vunpack.c.h.b16 %v421
    %v612 = vunpack.c.l.b16 %v422
    %v613 = vunpack.c.h.b16 %v422
    %v614 = vunpack.c.l.b16 %v423
    %v615 = vunpack.c.h.b16 %v423
    %v616 = vunpack.c.l.b16 %v424
    %v617 = vunpack.c.h.b16 %v424
    %v618 = vunpack.c.l.b16 %v425
    %v619 = vunpack.c.h.b16 %v425
    %v620 = vunpack.c.l.b16 %v426
    %v621 = vunpack.c.h.b16 %v426
    %v622 = vunpack.c.l.b16 %v427
    %v623 = vunpack.c.h.b16 %v427
    %v624 = vunpack.c.l.b16 %v428
    %v625 = vunpack.c.h.b16 %v428
    %v626 = vunpack.c.l.b16 %v429
    %v627 = vunpack.c.h.b16 %v429
    %v628 = vunpack.c.l.b16 %v430
    %v629 = vunpack.c.h.b16 %v430
    %v630 = vunpack.c.l.b16 %v431
    %v631 = vunpack.c.h.b16 %v431
    %v632 = vunpack.c.l.b16 %v432
    %v633 = vunpack.c.h.b16 %v432
    %v634 = vunpack.c.l.b16 %v433
    %v635 = vunpack.c.h.b16 %v433
    %v636 = vunpack.c.l.b16 %v434
    %v637 = vunpack.c.h.b16 %v434
    %v638 = vunpack.c.l.b16 %v435
    %v639 = vunpack.c.h.b16 %v435
    %v640 = vunpack.c.l.b16 %v436
    %v641 = vunpack.c.h.b16 %v436
    %v642 = vunpack.c.l.b16 %v437
    %v643 = vunpack.c.h.b16 %v437
    %v644 = vunpack.c.l.b16 %v438
    %v645 = vunpack.c.h.b16 %v438
    %v646 = vunpack.c.l.b16 %v439
    %v647 = vunpack.c.h.b16 %v439
    %v648 = vunpack.c.l.b16 %v440
    %v649 = vunpack.c.h.b16 %v440
    %v650 = vunpack.c.l.b16 %v441
    %v651 = vunpack.c.h.b16 %v441
    %v652 = vunpack.c.l.b16 %v442
    %v653 = vunpack.c.h.b16 %v442
    %v654 = vunpack.c.l.b16 %v443
    %v655 = vunpack.c.h.b16 %v443
    %v656 = vunpack.c.l.b16 %v444
    %v657 = vunpack.c.h.b16 %v444
    %v658 = vunpack.c.l.b16 %v445
    %v659 = vunpack.c.h.b16 %v445
    %v660 = vpack.c.b16 %v536, %v532
    %v661 = vpack.c.b16 %v537, %v533
    %v662 = vpack.c.b16 %v538, %v534
    %v663 = vpack.c.b16 %v539, %v535
    %v664 = vpack.c.b16 %v544, %v540
    %v665 = vpack.c.b16 %v545, %v541
    %v666 = vpack.c.b16 %v546, %v542
    %v667 = vpack.c.b16 %v547, %v543
    %v668 = vpack.c.b16 %v552, %v548
    %v669 = vpack.c.b16 %v553, %v549
    %v670 = vpack.c.b16 %v554, %v550
    %v671 = vpack.c.b16 %v555, %v551
    %v672 = vpack.c.b16 %v560, %v556
    %v673 = vpack.c.b16 %v561, %v557
    %v674 = vpack.c.b16 %v562, %v558
    %v675 = vpack.c.b16 %v563, %v559
    %v676 = vpack.c.b16 %v568, %v564
    %v677 = vpack.c.b16 %v569, %v565
    %v678 = vpack.c.b16 %v570, %v566
    %v679 = vpack.c.b16 %v571, %v567
    %v680 = vpack.c.b16 %v576, %v572
    %v681 = vpack.c.b16 %v577, %v573
    %v682 = vpack.c.b16 %v578, %v574
    %v683 = vpack.c.b16 %v579, %v575
    %v684 = vpack.c.b16 %v584, %v580
    %v685 = vpack.c.b16 %v585, %v581
    %v686 = vpack.c.b16 %v586, %v582
    %v687 = vpack.c.b16 %v587, %v583
    %v688 = vpack.c.b16 %v592, %v588
    %v689 = vpack.c.b16 %v593, %v589
    %v690 = vpack.c.b16 %v594, %v590
    %v691 = vpack.c.b16 %v595, %v591
    %v692 = vpack.c.b16 %v600, %v596
    %v693 = vpack.c.b16 %v601, %v597
    %v694 = vpack.c.b16 %v602, %v598
    %v695 = vpack.c.b16 %v603, %v599
    %v696 = vpack.c.b16 %v608, %v604
    %v697 = vpack.c.b16 %v609, %v605
    %v698 = vpack.c.b16 %v610, %v606
    %v699 = vpack.c.b16 %v611, %v607
    %v700 = vpack.c.b16 %v616, %v612
    %v701 = vpack.c.b16 %v617, %v613
    %v702 = vpack.c.b16 %v618, %v614
    %v703 = vpack.c.b16 %v619, %v615
    %v704 = vpack.c.b16 %v624, %v620
    %v705 = vpack.c.b16 %v625, %v621
    %v706 = vpack.c.b16 %v626, %v622
    %v707 = vpack.c.b16 %v627, %v623
    %v708 = vpack.c.b16 %v632, %v628
    %v709 = vpack.c.b16 %v633, %v629
    %v710 = vpack.c.b16 %v634, %v630
    %v711 = vpack.c.b16 %v635, %v631
    %v712 = vpack.c.b16 %v640, %v636
    %v713 = vpack.c.b16 %v641, %v637
    %v714 = vpack.c.b16 %v642, %v638
    %v715 = vpack.c.b16 %v643, %v639
    %v716 = vpack.c.b16 %v648, %v644
    %v717 = vpack.c.b16 %v649, %v645
    %v718 = vpack.c.b16 %v650, %v646
    %v719 = vpack.c.b16 %v651, %v647
    %v720 = vpack.c.b16 %v656, %v652
    %v721 = vpack.c.b16 %v657, %v653
    %v722 = vpack.c.b16 %v658, %v654
    %v723 = vpack.c.b16 %v659, %v655
    %788 = vmatprep.subr.bf16.mxu0 %v689
    %789 = vmatpush1.bf16.msra.mxu0 %v688
    %790 = vmatprep.subr.bf16.mxu0 %v685
    %791 = vmatpush1.bf16.msra.mxu0 %v684
    %792 = vmatprep.subr.bf16.mxu0 %v681
    %793 = vmatpush1.bf16.msra.mxu0 %v680
    %794 = vmatprep.subr.bf16.mxu0 %v677
    %795 = vmatpush1.bf16.msra.mxu0 %v676
    %796 = vmatprep.subr.bf16.mxu0 %v673
    %797 = vmatpush1.bf16.msra.mxu0 %v672
    %798 = vmatprep.subr.bf16.mxu0 %v669
    %799 = vmatpush1.bf16.msra.mxu0 %v668
    %800 = vmatprep.subr.bf16.mxu0 %v665
    %801 = vmatpush1.bf16.msra.mxu0 %v664
    %802 = vmatprep.subr.bf16.mxu0 %v661
    %803 = vmatpush1.bf16.msra.mxu0 %v660
    %804 = vmatprep.subr.bf16.mxu0 %v721
    %805 = vmatpush2.bf16.msra.mxu0 %v720
    %806 = vmatprep.subr.bf16.mxu0 %v717
    %807 = vmatpush2.bf16.msra.mxu0 %v716
    %808 = vmatprep.subr.bf16.mxu0 %v713
    %809 = vmatpush2.bf16.msra.mxu0 %v712
    %810 = vmatprep.subr.bf16.mxu0 %v709
    %811 = vmatpush2.bf16.msra.mxu0 %v708
    %812 = vmatprep.subr.bf16.mxu0 %v705
    %813 = vmatpush2.bf16.msra.mxu0 %v704
    %814 = vmatprep.subr.bf16.mxu0 %v701
    %815 = vmatpush2.bf16.msra.mxu0 %v700
    %816 = vmatprep.subr.bf16.mxu0 %v697
    %817 = vmatpush2.bf16.msra.mxu0 %v696
    %818 = vmatprep.subr.bf16.mxu0 %v693
    %819 = vmatpush2.bf16.msra.mxu0 %v692
    %820 = vmatprep.mubr.bf16.mxu0 %v381
    %821 = vmatmul.mubr.bf16.gmra.mxu0 %v380
    %v822 = vpop.f32.mrf.mxu0
    %v823 = vadd.f32 %v451, %v822
    %v824 = vpop.f32.mrf.mxu0
    %v825 = vadd.f32 %v455, %v824
    %v826 = vpop.f32.mrf.mxu0
    %v827 = vpop.f32.mrf.mxu0
    %828 = vdwg.mxu0
    %829 = vmatprep.subr.bf16.mxu0 %v691
    %830 = vmatpush1.bf16.msra.mxu0 %v690
    %831 = vmatprep.subr.bf16.mxu0 %v687
    %832 = vmatpush1.bf16.msra.mxu0 %v686
    %833 = vmatprep.subr.bf16.mxu0 %v683
    %834 = vmatpush1.bf16.msra.mxu0 %v682
    %835 = vmatprep.subr.bf16.mxu0 %v679
    %836 = vmatpush1.bf16.msra.mxu0 %v678
    %837 = vmatprep.subr.bf16.mxu0 %v675
    %838 = vmatpush1.bf16.msra.mxu0 %v674
    %839 = vmatprep.subr.bf16.mxu0 %v671
    %840 = vmatpush1.bf16.msra.mxu0 %v670
    %841 = vmatprep.subr.bf16.mxu0 %v667
    %842 = vmatpush1.bf16.msra.mxu0 %v666
    %843 = vmatprep.subr.bf16.mxu0 %v663
    %844 = vmatpush1.bf16.msra.mxu0 %v662
    %845 = vmatprep.subr.bf16.mxu0 %v723
    %846 = vmatpush2.bf16.msra.mxu0 %v722
    %847 = vmatprep.subr.bf16.mxu0 %v719
    %848 = vmatpush2.bf16.msra.mxu0 %v718
    %849 = vmatprep.subr.bf16.mxu0 %v715
    %850 = vmatpush2.bf16.msra.mxu0 %v714
    %851 = vmatprep.subr.bf16.mxu0 %v711
    %852 = vmatpush2.bf16.msra.mxu0 %v710
    %853 = vmatprep.subr.bf16.mxu0 %v707
    %854 = vmatpush2.bf16.msra.mxu0 %v706
    %855 = vmatprep.subr.bf16.mxu0 %v703
    %856 = vmatpush2.bf16.msra.mxu0 %v702
    %857 = vmatprep.subr.bf16.mxu0 %v699
    %858 = vmatpush2.bf16.msra.mxu0 %v698
    %859 = vmatprep.subr.bf16.mxu0 %v695
    %860 = vmatpush2.bf16.msra.mxu0 %v694
    %861 = vmatprep.mubr.bf16.mxu0 %v381
    %862 = vmatmul.mubr.bf16.gmra.mxu0 %v380
    %v863 = vpop.f32.mrf.mxu0
    %v864 = vadd.f32 %v459, %v863
    %v865 = vpop.f32.mrf.mxu0
    %v866 = vadd.f32 %v463, %v865
    %v867 = vpop.f32.mrf.mxu0
    %v868 = vpop.f32.mrf.mxu0
    %869 = vdwg.mxu0
    %v870 = vmax.f32 %v823, 0.0
    %v871 = vmax.f32 %v825, 0.0
    %v872 = vmax.f32 %v864, 0.0
    %v873 = vmax.f32 %v866, 0.0
    %s874 = smul.u32 4, 64
    %s875 = smul.u32 %s874, 8
    %s876 = sshll.u32 %s875, 4
    %877 = dma.done [#allocation4], %s876
    %v878 = vld [vmem:[#allocation2] sm:$0xff]
    %v879 = vld [vmem:[#allocation2 + $0x8] sm:$0xff]
    %v880 = vld [vmem:[#allocation2 + $0x10] sm:$0xff]
    %v881 = vld [vmem:[#allocation2 + $0x18] sm:$0xff]
    %v882 = vld [vmem:[#allocation2 + $0x20] sm:$0xff]
    %v883 = vld [vmem:[#allocation2 + $0x28] sm:$0xff]
    %v884 = vld [vmem:[#allocation2 + $0x30] sm:$0xff]
    %v885 = vld [vmem:[#allocation2 + $0x38] sm:$0xff]
    %v886 = vld [vmem:[#allocation2 + $0x40] sm:$0xff]
    %v887 = vld [vmem:[#allocation2 + $0x48] sm:$0xff]
    %v888 = vld [vmem:[#allocation2 + $0x50] sm:$0xff]
    %v889 = vld [vmem:[#allocation2 + $0x58] sm:$0xff]
    %v890 = vld [vmem:[#allocation2 + $0x60] sm:$0xff]
    %v891 = vld [vmem:[#allocation2 + $0x68] sm:$0xff]
    %v892 = vld [vmem:[#allocation2 + $0x70] sm:$0xff]
    %v893 = vld [vmem:[#allocation2 + $0x78] sm:$0xff]
    %v894 = vld [vmem:[#allocation2 + $0x80] sm:$0xff]
    %v895 = vld [vmem:[#allocation2 + $0x88] sm:$0xff]
    %v896 = vld [vmem:[#allocation2 + $0x90] sm:$0xff]
    %v897 = vld [vmem:[#allocation2 + $0x98] sm:$0xff]
    %v898 = vld [vmem:[#allocation2 + $0xa0] sm:$0xff]
    %v899 = vld [vmem:[#allocation2 + $0xa8] sm:$0xff]
    %v900 = vld [vmem:[#allocation2 + $0xb0] sm:$0xff]
    %v901 = vld [vmem:[#allocation2 + $0xb8] sm:$0xff]
    %v902 = vld [vmem:[#allocation2 + $0xc0] sm:$0xff]
    %v903 = vld [vmem:[#allocation2 + $0xc8] sm:$0xff]
    %v904 = vld [vmem:[#allocation2 + $0xd0] sm:$0xff]
    %v905 = vld [vmem:[#allocation2 + $0xd8] sm:$0xff]
    %v906 = vld [vmem:[#allocation2 + $0xe0] sm:$0xff]
    %v907 = vld [vmem:[#allocation2 + $0xe8] sm:$0xff]
    %v908 = vld [vmem:[#allocation2 + $0xf0] sm:$0xff]
    %v909 = vld [vmem:[#allocation2 + $0xf8] sm:$0xff]
    %v910 = vld [vmem:[#allocation2 + $0x100] sm:$0xff]
    %v911 = vld [vmem:[#allocation2 + $0x108] sm:$0xff]
    %v912 = vld [vmem:[#allocation2 + $0x110] sm:$0xff]
    %v913 = vld [vmem:[#allocation2 + $0x118] sm:$0xff]
    %v914 = vld [vmem:[#allocation2 + $0x120] sm:$0xff]
    %v915 = vld [vmem:[#allocation2 + $0x128] sm:$0xff]
    %v916 = vld [vmem:[#allocation2 + $0x130] sm:$0xff]
    %v917 = vld [vmem:[#allocation2 + $0x138] sm:$0xff]
    %v918 = vld [vmem:[#allocation2 + $0x140] sm:$0xff]
    %v919 = vld [vmem:[#allocation2 + $0x148] sm:$0xff]
    %v920 = vld [vmem:[#allocation2 + $0x150] sm:$0xff]
    %v921 = vld [vmem:[#allocation2 + $0x158] sm:$0xff]
    %v922 = vld [vmem:[#allocation2 + $0x160] sm:$0xff]
    %v923 = vld [vmem:[#allocation2 + $0x168] sm:$0xff]
    %v924 = vld [vmem:[#allocation2 + $0x170] sm:$0xff]
    %v925 = vld [vmem:[#allocation2 + $0x178] sm:$0xff]
    %v926 = vld [vmem:[#allocation2 + $0x180] sm:$0xff]
    %v927 = vld [vmem:[#allocation2 + $0x188] sm:$0xff]
    %v928 = vld [vmem:[#allocation2 + $0x190] sm:$0xff]
    %v929 = vld [vmem:[#allocation2 + $0x198] sm:$0xff]
    %v930 = vld [vmem:[#allocation2 + $0x1a0] sm:$0xff]
    %v931 = vld [vmem:[#allocation2 + $0x1a8] sm:$0xff]
    %v932 = vld [vmem:[#allocation2 + $0x1b0] sm:$0xff]
    %v933 = vld [vmem:[#allocation2 + $0x1b8] sm:$0xff]
    %v934 = vld [vmem:[#allocation2 + $0x1c0] sm:$0xff]
    %v935 = vld [vmem:[#allocation2 + $0x1c8] sm:$0xff]
    %v936 = vld [vmem:[#allocation2 + $0x1d0] sm:$0xff]
    %v937 = vld [vmem:[#allocation2 + $0x1d8] sm:$0xff]
    %v938 = vld [vmem:[#allocation2 + $0x1e0] sm:$0xff]
    %v939 = vld [vmem:[#allocation2 + $0x1e8] sm:$0xff]
    %v940 = vld [vmem:[#allocation2 + $0x1f0] sm:$0xff]
    %v941 = vld [vmem:[#allocation2 + $0x1f8] sm:$0xff]
    %v942 = vld [vmem:[#allocation2 + $0x200] sm:$0xff]
    %v943 = vld [vmem:[#allocation2 + $0x208] sm:$0xff]
    %v944 = vld [vmem:[#allocation2 + $0x210] sm:$0xff]
    %v945 = vld [vmem:[#allocation2 + $0x218] sm:$0xff]
    %v946 = vld [vmem:[#allocation2 + $0x220] sm:$0xff]
    %v947 = vld [vmem:[#allocation2 + $0x228] sm:$0xff]
    %v948 = vld [vmem:[#allocation2 + $0x230] sm:$0xff]
    %v949 = vld [vmem:[#allocation2 + $0x238] sm:$0xff]
    %v950 = vld [vmem:[#allocation2 + $0x240] sm:$0xff]
    %v951 = vld [vmem:[#allocation2 + $0x248] sm:$0xff]
    %v952 = vld [vmem:[#allocation2 + $0x250] sm:$0xff]
    %v953 = vld [vmem:[#allocation2 + $0x258] sm:$0xff]
    %v954 = vld [vmem:[#allocation2 + $0x260] sm:$0xff]
    %v955 = vld [vmem:[#allocation2 + $0x268] sm:$0xff]
    %v956 = vld [vmem:[#allocation2 + $0x270] sm:$0xff]
    %v957 = vld [vmem:[#allocation2 + $0x278] sm:$0xff]
    %v958 = vld [vmem:[#allocation2 + $0x280] sm:$0xff]
    %v959 = vld [vmem:[#allocation2 + $0x288] sm:$0xff]
    %v960 = vld [vmem:[#allocation2 + $0x290] sm:$0xff]
    %v961 = vld [vmem:[#allocation2 + $0x298] sm:$0xff]
    %v962 = vld [vmem:[#allocation2 + $0x2a0] sm:$0xff]
    %v963 = vld [vmem:[#allocation2 + $0x2a8] sm:$0xff]
    %v964 = vld [vmem:[#allocation2 + $0x2b0] sm:$0xff]
    %v965 = vld [vmem:[#allocation2 + $0x2b8] sm:$0xff]
    %v966 = vld [vmem:[#allocation2 + $0x2c0] sm:$0xff]
    %v967 = vld [vmem:[#allocation2 + $0x2c8] sm:$0xff]
    %v968 = vld [vmem:[#allocation2 + $0x2d0] sm:$0xff]
    %v969 = vld [vmem:[#allocation2 + $0x2d8] sm:$0xff]
    %v970 = vld [vmem:[#allocation2 + $0x2e0] sm:$0xff]
    %v971 = vld [vmem:[#allocation2 + $0x2e8] sm:$0xff]
    %v972 = vld [vmem:[#allocation2 + $0x2f0] sm:$0xff]
    %v973 = vld [vmem:[#allocation2 + $0x2f8] sm:$0xff]
    %v974 = vld [vmem:[#allocation2 + $0x300] sm:$0xff]
    %v975 = vld [vmem:[#allocation2 + $0x308] sm:$0xff]
    %v976 = vld [vmem:[#allocation2 + $0x310] sm:$0xff]
    %v977 = vld [vmem:[#allocation2 + $0x318] sm:$0xff]
    %v978 = vld [vmem:[#allocation2 + $0x320] sm:$0xff]
    %v979 = vld [vmem:[#allocation2 + $0x328] sm:$0xff]
    %v980 = vld [vmem:[#allocation2 + $0x330] sm:$0xff]
    %v981 = vld [vmem:[#allocation2 + $0x338] sm:$0xff]
    %v982 = vld [vmem:[#allocation2 + $0x340] sm:$0xff]
    %v983 = vld [vmem:[#allocation2 + $0x348] sm:$0xff]
    %v984 = vld [vmem:[#allocation2 + $0x350] sm:$0xff]
    %v985 = vld [vmem:[#allocation2 + $0x358] sm:$0xff]
    %v986 = vld [vmem:[#allocation2 + $0x360] sm:$0xff]
    %v987 = vld [vmem:[#allocation2 + $0x368] sm:$0xff]
    %v988 = vld [vmem:[#allocation2 + $0x370] sm:$0xff]
    %v989 = vld [vmem:[#allocation2 + $0x378] sm:$0xff]
    %v990 = vld [vmem:[#allocation2 + $0x380] sm:$0xff]
    %v991 = vld [vmem:[#allocation2 + $0x388] sm:$0xff]
    %v992 = vld [vmem:[#allocation2 + $0x390] sm:$0xff]
    %v993 = vld [vmem:[#allocation2 + $0x398] sm:$0xff]
    %v994 = vld [vmem:[#allocation2 + $0x3a0] sm:$0xff]
    %v995 = vld [vmem:[#allocation2 + $0x3a8] sm:$0xff]
    %v996 = vld [vmem:[#allocation2 + $0x3b0] sm:$0xff]
    %v997 = vld [vmem:[#allocation2 + $0x3b8] sm:$0xff]
    %v998 = vld [vmem:[#allocation2 + $0x3c0] sm:$0xff]
    %v999 = vld [vmem:[#allocation2 + $0x3c8] sm:$0xff]
    %v1000 = vld [vmem:[#allocation2 + $0x3d0] sm:$0xff]
    %v1001 = vld [vmem:[#allocation2 + $0x3d8] sm:$0xff]
    %v1002 = vld [vmem:[#allocation2 + $0x3e0] sm:$0xff]
    %v1003 = vld [vmem:[#allocation2 + $0x3e8] sm:$0xff]
    %v1004 = vld [vmem:[#allocation2 + $0x3f0] sm:$0xff]
    %v1005 = vld [vmem:[#allocation2 + $0x3f8] sm:$0xff]
    %v1006 = vld [vmem:[#allocation2 + $0x400] sm:$0xff]
    %v1007 = vld [vmem:[#allocation2 + $0x408] sm:$0xff]
    %v1008 = vld [vmem:[#allocation2 + $0x410] sm:$0xff]
    %v1009 = vld [vmem:[#allocation2 + $0x418] sm:$0xff]
    %v1010 = vld [vmem:[#allocation2 + $0x420] sm:$0xff]
    %v1011 = vld [vmem:[#allocation2 + $0x428] sm:$0xff]
    %v1012 = vld [vmem:[#allocation2 + $0x430] sm:$0xff]
    %v1013 = vld [vmem:[#allocation2 + $0x438] sm:$0xff]
    %v1014 = vld [vmem:[#allocation2 + $0x440] sm:$0xff]
    %v1015 = vld [vmem:[#allocation2 + $0x448] sm:$0xff]
    %v1016 = vld [vmem:[#allocation2 + $0x450] sm:$0xff]
    %v1017 = vld [vmem:[#allocation2 + $0x458] sm:$0xff]
    %v1018 = vld [vmem:[#allocation2 + $0x460] sm:$0xff]
    %v1019 = vld [vmem:[#allocation2 + $0x468] sm:$0xff]
    %v1020 = vld [vmem:[#allocation2 + $0x470] sm:$0xff]
    %v1021 = vld [vmem:[#allocation2 + $0x478] sm:$0xff]
    %v1022 = vld [vmem:[#allocation2 + $0x480] sm:$0xff]
    %v1023 = vld [vmem:[#allocation2 + $0x488] sm:$0xff]
    %v1024 = vld [vmem:[#allocation2 + $0x490] sm:$0xff]
    %v1025 = vld [vmem:[#allocation2 + $0x498] sm:$0xff]
    %v1026 = vld [vmem:[#allocation2 + $0x4a0] sm:$0xff]
    %v1027 = vld [vmem:[#allocation2 + $0x4a8] sm:$0xff]
    %v1028 = vld [vmem:[#allocation2 + $0x4b0] sm:$0xff]
    %v1029 = vld [vmem:[#allocation2 + $0x4b8] sm:$0xff]
    %v1030 = vld [vmem:[#allocation2 + $0x4c0] sm:$0xff]
    %v1031 = vld [vmem:[#allocation2 + $0x4c8] sm:$0xff]
    %v1032 = vld [vmem:[#allocation2 + $0x4d0] sm:$0xff]
    %v1033 = vld [vmem:[#allocation2 + $0x4d8] sm:$0xff]
    %v1034 = vld [vmem:[#allocation2 + $0x4e0] sm:$0xff]
    %v1035 = vld [vmem:[#allocation2 + $0x4e8] sm:$0xff]
    %v1036 = vld [vmem:[#allocation2 + $0x4f0] sm:$0xff]
    %v1037 = vld [vmem:[#allocation2 + $0x4f8] sm:$0xff]
    %v1038 = vld [vmem:[#allocation2 + $0x500] sm:$0xff]
    %v1039 = vld [vmem:[#allocation2 + $0x508] sm:$0xff]
    %v1040 = vld [vmem:[#allocation2 + $0x510] sm:$0xff]
    %v1041 = vld [vmem:[#allocation2 + $0x518] sm:$0xff]
    %v1042 = vld [vmem:[#allocation2 + $0x520] sm:$0xff]
    %v1043 = vld [vmem:[#allocation2 + $0x528] sm:$0xff]
    %v1044 = vld [vmem:[#allocation2 + $0x530] sm:$0xff]
    %v1045 = vld [vmem:[#allocation2 + $0x538] sm:$0xff]
    %v1046 = vld [vmem:[#allocation2 + $0x540] sm:$0xff]
    %v1047 = vld [vmem:[#allocation2 + $0x548] sm:$0xff]
    %v1048 = vld [vmem:[#allocation2 + $0x550] sm:$0xff]
    %v1049 = vld [vmem:[#allocation2 + $0x558] sm:$0xff]
    %v1050 = vld [vmem:[#allocation2 + $0x560] sm:$0xff]
    %v1051 = vld [vmem:[#allocation2 + $0x568] sm:$0xff]
    %v1052 = vld [vmem:[#allocation2 + $0x570] sm:$0xff]
    %v1053 = vld [vmem:[#allocation2 + $0x578] sm:$0xff]
    %v1054 = vld [vmem:[#allocation2 + $0x580] sm:$0xff]
    %v1055 = vld [vmem:[#allocation2 + $0x588] sm:$0xff]
    %v1056 = vld [vmem:[#allocation2 + $0x590] sm:$0xff]
    %v1057 = vld [vmem:[#allocation2 + $0x598] sm:$0xff]
    %v1058 = vld [vmem:[#allocation2 + $0x5a0] sm:$0xff]
    %v1059 = vld [vmem:[#allocation2 + $0x5a8] sm:$0xff]
    %v1060 = vld [vmem:[#allocation2 + $0x5b0] sm:$0xff]
    %v1061 = vld [vmem:[#allocation2 + $0x5b8] sm:$0xff]
    %v1062 = vld [vmem:[#allocation2 + $0x5c0] sm:$0xff]
    %v1063 = vld [vmem:[#allocation2 + $0x5c8] sm:$0xff]
    %v1064 = vld [vmem:[#allocation2 + $0x5d0] sm:$0xff]
    %v1065 = vld [vmem:[#allocation2 + $0x5d8] sm:$0xff]
    %v1066 = vld [vmem:[#allocation2 + $0x5e0] sm:$0xff]
    %v1067 = vld [vmem:[#allocation2 + $0x5e8] sm:$0xff]
    %v1068 = vld [vmem:[#allocation2 + $0x5f0] sm:$0xff]
    %v1069 = vld [vmem:[#allocation2 + $0x5f8] sm:$0xff]
    %v1070 = vld [vmem:[#allocation2 + $0x600] sm:$0xff]
    %v1071 = vld [vmem:[#allocation2 + $0x608] sm:$0xff]
    %v1072 = vld [vmem:[#allocation2 + $0x610] sm:$0xff]
    %v1073 = vld [vmem:[#allocation2 + $0x618] sm:$0xff]
    %v1074 = vld [vmem:[#allocation2 + $0x620] sm:$0xff]
    %v1075 = vld [vmem:[#allocation2 + $0x628] sm:$0xff]
    %v1076 = vld [vmem:[#allocation2 + $0x630] sm:$0xff]
    %v1077 = vld [vmem:[#allocation2 + $0x638] sm:$0xff]
    %v1078 = vld [vmem:[#allocation2 + $0x640] sm:$0xff]
    %v1079 = vld [vmem:[#allocation2 + $0x648] sm:$0xff]
    %v1080 = vld [vmem:[#allocation2 + $0x650] sm:$0xff]
    %v1081 = vld [vmem:[#allocation2 + $0x658] sm:$0xff]
    %v1082 = vld [vmem:[#allocation2 + $0x660] sm:$0xff]
    %v1083 = vld [vmem:[#allocation2 + $0x668] sm:$0xff]
    %v1084 = vld [vmem:[#allocation2 + $0x670] sm:$0xff]
    %v1085 = vld [vmem:[#allocation2 + $0x678] sm:$0xff]
    %v1086 = vld [vmem:[#allocation2 + $0x680] sm:$0xff]
    %v1087 = vld [vmem:[#allocation2 + $0x688] sm:$0xff]
    %v1088 = vld [vmem:[#allocation2 + $0x690] sm:$0xff]
    %v1089 = vld [vmem:[#allocation2 + $0x698] sm:$0xff]
    %v1090 = vld [vmem:[#allocation2 + $0x6a0] sm:$0xff]
    %v1091 = vld [vmem:[#allocation2 + $0x6a8] sm:$0xff]
    %v1092 = vld [vmem:[#allocation2 + $0x6b0] sm:$0xff]
    %v1093 = vld [vmem:[#allocation2 + $0x6b8] sm:$0xff]
    %v1094 = vld [vmem:[#allocation2 + $0x6c0] sm:$0xff]
    %v1095 = vld [vmem:[#allocation2 + $0x6c8] sm:$0xff]
    %v1096 = vld [vmem:[#allocation2 + $0x6d0] sm:$0xff]
    %v1097 = vld [vmem:[#allocation2 + $0x6d8] sm:$0xff]
    %v1098 = vld [vmem:[#allocation2 + $0x6e0] sm:$0xff]
    %v1099 = vld [vmem:[#allocation2 + $0x6e8] sm:$0xff]
    %v1100 = vld [vmem:[#allocation2 + $0x6f0] sm:$0xff]
    %v1101 = vld [vmem:[#allocation2 + $0x6f8] sm:$0xff]
    %v1102 = vld [vmem:[#allocation2 + $0x700] sm:$0xff]
    %v1103 = vld [vmem:[#allocation2 + $0x708] sm:$0xff]
    %v1104 = vld [vmem:[#allocation2 + $0x710] sm:$0xff]
    %v1105 = vld [vmem:[#allocation2 + $0x718] sm:$0xff]
    %v1106 = vld [vmem:[#allocation2 + $0x720] sm:$0xff]
    %v1107 = vld [vmem:[#allocation2 + $0x728] sm:$0xff]
    %v1108 = vld [vmem:[#allocation2 + $0x730] sm:$0xff]
    %v1109 = vld [vmem:[#allocation2 + $0x738] sm:$0xff]
    %v1110 = vld [vmem:[#allocation2 + $0x740] sm:$0xff]
    %v1111 = vld [vmem:[#allocation2 + $0x748] sm:$0xff]
    %v1112 = vld [vmem:[#allocation2 + $0x750] sm:$0xff]
    %v1113 = vld [vmem:[#allocation2 + $0x758] sm:$0xff]
    %v1114 = vld [vmem:[#allocation2 + $0x760] sm:$0xff]
    %v1115 = vld [vmem:[#allocation2 + $0x768] sm:$0xff]
    %v1116 = vld [vmem:[#allocation2 + $0x770] sm:$0xff]
    %v1117 = vld [vmem:[#allocation2 + $0x778] sm:$0xff]
    %v1118 = vld [vmem:[#allocation2 + $0x780] sm:$0xff]
    %v1119 = vld [vmem:[#allocation2 + $0x788] sm:$0xff]
    %v1120 = vld [vmem:[#allocation2 + $0x790] sm:$0xff]
    %v1121 = vld [vmem:[#allocation2 + $0x798] sm:$0xff]
    %v1122 = vld [vmem:[#allocation2 + $0x7a0] sm:$0xff]
    %v1123 = vld [vmem:[#allocation2 + $0x7a8] sm:$0xff]
    %v1124 = vld [vmem:[#allocation2 + $0x7b0] sm:$0xff]
    %v1125 = vld [vmem:[#allocation2 + $0x7b8] sm:$0xff]
    %v1126 = vld [vmem:[#allocation2 + $0x7c0] sm:$0xff]
    %v1127 = vld [vmem:[#allocation2 + $0x7c8] sm:$0xff]
    %v1128 = vld [vmem:[#allocation2 + $0x7d0] sm:$0xff]
    %v1129 = vld [vmem:[#allocation2 + $0x7d8] sm:$0xff]
    %v1130 = vld [vmem:[#allocation2 + $0x7e0] sm:$0xff]
    %v1131 = vld [vmem:[#allocation2 + $0x7e8] sm:$0xff]
    %v1132 = vld [vmem:[#allocation2 + $0x7f0] sm:$0xff]
    %v1133 = vld [vmem:[#allocation2 + $0x7f8] sm:$0xff]
    %v1134 = vpack.c.bf16 %v870, %v870
    %v1135 = vpack.c.bf16 %v871, %v871
    %v1136 = vpack.c.bf16 %v872, %v872
    %v1137 = vpack.c.bf16 %v873, %v873
    %v1138 = vld [vmem:[#allocation16] sm:$0xff]
    %v1140 = vlaneseq
    %v1141 = vshrl.u32 %v1140, 7
    %v1142 = vsub.s32 0, %v1141
    %v1143 = vrot.slane %v1138, %v1142
    %v1144 = vlaneseq
    %v1145 = vshrl.u32 %v1144, 7
    %v1146 = vsub.s32 1, %v1145
    %v1147 = vrot.slane %v1138, %v1146
    %v1148 = vlaneseq
    %v1149 = vshrl.u32 %v1148, 7
    %v1150 = vsub.s32 2, %v1149
    %v1151 = vrot.slane %v1138, %v1150
    %v1152 = vlaneseq
    %v1153 = vshrl.u32 %v1152, 7
    %v1154 = vsub.s32 3, %v1153
    %v1155 = vrot.slane %v1138, %v1154
    %v1156 = vlaneseq
    %v1157 = vshrl.u32 %v1156, 7
    %v1158 = vsub.s32 4, %v1157
    %v1159 = vrot.slane %v1138, %v1158
    %v1160 = vlaneseq
    %v1161 = vshrl.u32 %v1160, 7
    %v1162 = vsub.s32 5, %v1161
    %v1163 = vrot.slane %v1138, %v1162
    %v1164 = vlaneseq
    %v1165 = vshrl.u32 %v1164, 7
    %v1166 = vsub.s32 6, %v1165
    %v1167 = vrot.slane %v1138, %v1166
    %v1168 = vlaneseq
    %v1169 = vshrl.u32 %v1168, 7
    %v1170 = vsub.s32 7, %v1169
    %v1171 = vrot.slane %v1138, %v1170
    %v1436 = vunpack.c.l.b16 %v878
    %v1437 = vunpack.c.h.b16 %v878
    %v1438 = vunpack.c.l.b16 %v879
    %v1439 = vunpack.c.h.b16 %v879
    %v1440 = vunpack.c.l.b16 %v880
    %v1441 = vunpack.c.h.b16 %v880
    %v1442 = vunpack.c.l.b16 %v881
    %v1443 = vunpack.c.h.b16 %v881
    %v1444 = vunpack.c.l.b16 %v882
    %v1445 = vunpack.c.h.b16 %v882
    %v1446 = vunpack.c.l.b16 %v883
    %v1447 = vunpack.c.h.b16 %v883
    %v1448 = vunpack.c.l.b16 %v884
    %v1449 = vunpack.c.h.b16 %v884
    %v1450 = vunpack.c.l.b16 %v885
    %v1451 = vunpack.c.h.b16 %v885
    %v1452 = vunpack.c.l.b16 %v886
    %v1453 = vunpack.c.h.b16 %v886
    %v1454 = vunpack.c.l.b16 %v887
    %v1455 = vunpack.c.h.b16 %v887
    %v1456 = vunpack.c.l.b16 %v888
    %v1457 = vunpack.c.h.b16 %v888
    %v1458 = vunpack.c.l.b16 %v889
    %v1459 = vunpack.c.h.b16 %v889
    %v1460 = vunpack.c.l.b16 %v890
    %v1461 = vunpack.c.h.b16 %v890
    %v1462 = vunpack.c.l.b16 %v891
    %v1463 = vunpack.c.h.b16 %v891
    %v1464 = vunpack.c.l.b16 %v892
    %v1465 = vunpack.c.h.b16 %v892
    %v1466 = vunpack.c.l.b16 %v893
    %v1467 = vunpack.c.h.b16 %v893
    %v1468 = vunpack.c.l.b16 %v894
    %v1469 = vunpack.c.h.b16 %v894
    %v1470 = vunpack.c.l.b16 %v895
    %v1471 = vunpack.c.h.b16 %v895
    %v1472 = vunpack.c.l.b16 %v896
    %v1473 = vunpack.c.h.b16 %v896
    %v1474 = vunpack.c.l.b16 %v897
    %v1475 = vunpack.c.h.b16 %v897
    %v1476 = vunpack.c.l.b16 %v898
    %v1477 = vunpack.c.h.b16 %v898
    %v1478 = vunpack.c.l.b16 %v899
    %v1479 = vunpack.c.h.b16 %v899
    %v1480 = vunpack.c.l.b16 %v900
    %v1481 = vunpack.c.h.b16 %v900
    %v1482 = vunpack.c.l.b16 %v901
    %v1483 = vunpack.c.h.b16 %v901
    %v1484 = vunpack.c.l.b16 %v902
    %v1485 = vunpack.c.h.b16 %v902
    %v1486 = vunpack.c.l.b16 %v903
    %v1487 = vunpack.c.h.b16 %v903
    %v1488 = vunpack.c.l.b16 %v904
    %v1489 = vunpack.c.h.b16 %v904
    %v1490 = vunpack.c.l.b16 %v905
    %v1491 = vunpack.c.h.b16 %v905
    %v1492 = vunpack.c.l.b16 %v906
    %v1493 = vunpack.c.h.b16 %v906
    %v1494 = vunpack.c.l.b16 %v907
    %v1495 = vunpack.c.h.b16 %v907
    %v1496 = vunpack.c.l.b16 %v908
    %v1497 = vunpack.c.h.b16 %v908
    %v1498 = vunpack.c.l.b16 %v909
    %v1499 = vunpack.c.h.b16 %v909
    %v1500 = vunpack.c.l.b16 %v910
    %v1501 = vunpack.c.h.b16 %v910
    %v1502 = vunpack.c.l.b16 %v911
    %v1503 = vunpack.c.h.b16 %v911
    %v1504 = vunpack.c.l.b16 %v912
    %v1505 = vunpack.c.h.b16 %v912
    %v1506 = vunpack.c.l.b16 %v913
    %v1507 = vunpack.c.h.b16 %v913
    %v1508 = vunpack.c.l.b16 %v914
    %v1509 = vunpack.c.h.b16 %v914
    %v1510 = vunpack.c.l.b16 %v915
    %v1511 = vunpack.c.h.b16 %v915
    %v1512 = vunpack.c.l.b16 %v916
    %v1513 = vunpack.c.h.b16 %v916
    %v1514 = vunpack.c.l.b16 %v917
    %v1515 = vunpack.c.h.b16 %v917
    %v1516 = vunpack.c.l.b16 %v918
    %v1517 = vunpack.c.h.b16 %v918
    %v1518 = vunpack.c.l.b16 %v919
    %v1519 = vunpack.c.h.b16 %v919
    %v1520 = vunpack.c.l.b16 %v920
    %v1521 = vunpack.c.h.b16 %v920
    %v1522 = vunpack.c.l.b16 %v921
    %v1523 = vunpack.c.h.b16 %v921
    %v1524 = vunpack.c.l.b16 %v922
    %v1525 = vunpack.c.h.b16 %v922
    %v1526 = vunpack.c.l.b16 %v923
    %v1527 = vunpack.c.h.b16 %v923
    %v1528 = vunpack.c.l.b16 %v924
    %v1529 = vunpack.c.h.b16 %v924
    %v1530 = vunpack.c.l.b16 %v925
    %v1531 = vunpack.c.h.b16 %v925
    %v1532 = vunpack.c.l.b16 %v926
    %v1533 = vunpack.c.h.b16 %v926
    %v1534 = vunpack.c.l.b16 %v927
    %v1535 = vunpack.c.h.b16 %v927
    %v1536 = vunpack.c.l.b16 %v928
    %v1537 = vunpack.c.h.b16 %v928
    %v1538 = vunpack.c.l.b16 %v929
    %v1539 = vunpack.c.h.b16 %v929
    %v1540 = vunpack.c.l.b16 %v930
    %v1541 = vunpack.c.h.b16 %v930
    %v1542 = vunpack.c.l.b16 %v931
    %v1543 = vunpack.c.h.b16 %v931
    %v1544 = vunpack.c.l.b16 %v932
    %v1545 = vunpack.c.h.b16 %v932
    %v1546 = vunpack.c.l.b16 %v933
    %v1547 = vunpack.c.h.b16 %v933
    %v1548 = vunpack.c.l.b16 %v934
    %v1549 = vunpack.c.h.b16 %v934
    %v1550 = vunpack.c.l.b16 %v935
    %v1551 = vunpack.c.h.b16 %v935
    %v1552 = vunpack.c.l.b16 %v936
    %v1553 = vunpack.c.h.b16 %v936
    %v1554 = vunpack.c.l.b16 %v937
    %v1555 = vunpack.c.h.b16 %v937
    %v1556 = vunpack.c.l.b16 %v938
    %v1557 = vunpack.c.h.b16 %v938
    %v1558 = vunpack.c.l.b16 %v939
    %v1559 = vunpack.c.h.b16 %v939
    %v1560 = vunpack.c.l.b16 %v940
    %v1561 = vunpack.c.h.b16 %v940
    %v1562 = vunpack.c.l.b16 %v941
    %v1563 = vunpack.c.h.b16 %v941
    %v1564 = vunpack.c.l.b16 %v942
    %v1565 = vunpack.c.h.b16 %v942
    %v1566 = vunpack.c.l.b16 %v943
    %v1567 = vunpack.c.h.b16 %v943
    %v1568 = vunpack.c.l.b16 %v944
    %v1569 = vunpack.c.h.b16 %v944
    %v1570 = vunpack.c.l.b16 %v945
    %v1571 = vunpack.c.h.b16 %v945
    %v1572 = vunpack.c.l.b16 %v946
    %v1573 = vunpack.c.h.b16 %v946
    %v1574 = vunpack.c.l.b16 %v947
    %v1575 = vunpack.c.h.b16 %v947
    %v1576 = vunpack.c.l.b16 %v948
    %v1577 = vunpack.c.h.b16 %v948
    %v1578 = vunpack.c.l.b16 %v949
    %v1579 = vunpack.c.h.b16 %v949
    %v1580 = vunpack.c.l.b16 %v950
    %v1581 = vunpack.c.h.b16 %v950
    %v1582 = vunpack.c.l.b16 %v951
    %v1583 = vunpack.c.h.b16 %v951
    %v1584 = vunpack.c.l.b16 %v952
    %v1585 = vunpack.c.h.b16 %v952
    %v1586 = vunpack.c.l.b16 %v953
    %v1587 = vunpack.c.h.b16 %v953
    %v1588 = vunpack.c.l.b16 %v954
    %v1589 = vunpack.c.h.b16 %v954
    %v1590 = vunpack.c.l.b16 %v955
    %v1591 = vunpack.c.h.b16 %v955
    %v1592 = vunpack.c.l.b16 %v956
    %v1593 = vunpack.c.h.b16 %v956
    %v1594 = vunpack.c.l.b16 %v957
    %v1595 = vunpack.c.h.b16 %v957
    %v1596 = vunpack.c.l.b16 %v958
    %v1597 = vunpack.c.h.b16 %v958
    %v1598 = vunpack.c.l.b16 %v959
    %v1599 = vunpack.c.h.b16 %v959
    %v1600 = vunpack.c.l.b16 %v960
    %v1601 = vunpack.c.h.b16 %v960
    %v1602 = vunpack.c.l.b16 %v961
    %v1603 = vunpack.c.h.b16 %v961
    %v1604 = vunpack.c.l.b16 %v962
    %v1605 = vunpack.c.h.b16 %v962
    %v1606 = vunpack.c.l.b16 %v963
    %v1607 = vunpack.c.h.b16 %v963
    %v1608 = vunpack.c.l.b16 %v964
    %v1609 = vunpack.c.h.b16 %v964
    %v1610 = vunpack.c.l.b16 %v965
    %v1611 = vunpack.c.h.b16 %v965
    %v1612 = vunpack.c.l.b16 %v966
    %v1613 = vunpack.c.h.b16 %v966
    %v1614 = vunpack.c.l.b16 %v967
    %v1615 = vunpack.c.h.b16 %v967
    %v1616 = vunpack.c.l.b16 %v968
    %v1617 = vunpack.c.h.b16 %v968
    %v1618 = vunpack.c.l.b16 %v969
    %v1619 = vunpack.c.h.b16 %v969
    %v1620 = vunpack.c.l.b16 %v970
    %v1621 = vunpack.c.h.b16 %v970
    %v1622 = vunpack.c.l.b16 %v971
    %v1623 = vunpack.c.h.b16 %v971
    %v1624 = vunpack.c.l.b16 %v972
    %v1625 = vunpack.c.h.b16 %v972
    %v1626 = vunpack.c.l.b16 %v973
    %v1627 = vunpack.c.h.b16 %v973
    %v1628 = vunpack.c.l.b16 %v974
    %v1629 = vunpack.c.h.b16 %v974
    %v1630 = vunpack.c.l.b16 %v975
    %v1631 = vunpack.c.h.b16 %v975
    %v1632 = vunpack.c.l.b16 %v976
    %v1633 = vunpack.c.h.b16 %v976
    %v1634 = vunpack.c.l.b16 %v977
    %v1635 = vunpack.c.h.b16 %v977
    %v1636 = vunpack.c.l.b16 %v978
    %v1637 = vunpack.c.h.b16 %v978
    %v1638 = vunpack.c.l.b16 %v979
    %v1639 = vunpack.c.h.b16 %v979
    %v1640 = vunpack.c.l.b16 %v980
    %v1641 = vunpack.c.h.b16 %v980
    %v1642 = vunpack.c.l.b16 %v981
    %v1643 = vunpack.c.h.b16 %v981
    %v1644 = vunpack.c.l.b16 %v982
    %v1645 = vunpack.c.h.b16 %v982
    %v1646 = vunpack.c.l.b16 %v983
    %v1647 = vunpack.c.h.b16 %v983
    %v1648 = vunpack.c.l.b16 %v984
    %v1649 = vunpack.c.h.b16 %v984
    %v1650 = vunpack.c.l.b16 %v985
    %v1651 = vunpack.c.h.b16 %v985
    %v1652 = vunpack.c.l.b16 %v986
    %v1653 = vunpack.c.h.b16 %v986
    %v1654 = vunpack.c.l.b16 %v987
    %v1655 = vunpack.c.h.b16 %v987
    %v1656 = vunpack.c.l.b16 %v988
    %v1657 = vunpack.c.h.b16 %v988
    %v1658 = vunpack.c.l.b16 %v989
    %v1659 = vunpack.c.h.b16 %v989
    %v1660 = vunpack.c.l.b16 %v990
    %v1661 = vunpack.c.h.b16 %v990
    %v1662 = vunpack.c.l.b16 %v991
    %v1663 = vunpack.c.h.b16 %v991
    %v1664 = vunpack.c.l.b16 %v992
    %v1665 = vunpack.c.h.b16 %v992
    %v1666 = vunpack.c.l.b16 %v993
    %v1667 = vunpack.c.h.b16 %v993
    %v1668 = vunpack.c.l.b16 %v994
    %v1669 = vunpack.c.h.b16 %v994
    %v1670 = vunpack.c.l.b16 %v995
    %v1671 = vunpack.c.h.b16 %v995
    %v1672 = vunpack.c.l.b16 %v996
    %v1673 = vunpack.c.h.b16 %v996
    %v1674 = vunpack.c.l.b16 %v997
    %v1675 = vunpack.c.h.b16 %v997
    %v1676 = vunpack.c.l.b16 %v998
    %v1677 = vunpack.c.h.b16 %v998
    %v1678 = vunpack.c.l.b16 %v999
    %v1679 = vunpack.c.h.b16 %v999
    %v1680 = vunpack.c.l.b16 %v1000
    %v1681 = vunpack.c.h.b16 %v1000
    %v1682 = vunpack.c.l.b16 %v1001
    %v1683 = vunpack.c.h.b16 %v1001
    %v1684 = vunpack.c.l.b16 %v1002
    %v1685 = vunpack.c.h.b16 %v1002
    %v1686 = vunpack.c.l.b16 %v1003
    %v1687 = vunpack.c.h.b16 %v1003
    %v1688 = vunpack.c.l.b16 %v1004
    %v1689 = vunpack.c.h.b16 %v1004
    %v1690 = vunpack.c.l.b16 %v1005
    %v1691 = vunpack.c.h.b16 %v1005
    %v1692 = vunpack.c.l.b16 %v1006
    %v1693 = vunpack.c.h.b16 %v1006
    %v1694 = vunpack.c.l.b16 %v1007
    %v1695 = vunpack.c.h.b16 %v1007
    %v1696 = vunpack.c.l.b16 %v1008
    %v1697 = vunpack.c.h.b16 %v1008
    %v1698 = vunpack.c.l.b16 %v1009
    %v1699 = vunpack.c.h.b16 %v1009
    %v1700 = vunpack.c.l.b16 %v1010
    %v1701 = vunpack.c.h.b16 %v1010
    %v1702 = vunpack.c.l.b16 %v1011
    %v1703 = vunpack.c.h.b16 %v1011
    %v1704 = vunpack.c.l.b16 %v1012
    %v1705 = vunpack.c.h.b16 %v1012
    %v1706 = vunpack.c.l.b16 %v1013
    %v1707 = vunpack.c.h.b16 %v1013
    %v1708 = vunpack.c.l.b16 %v1014
    %v1709 = vunpack.c.h.b16 %v1014
    %v1710 = vunpack.c.l.b16 %v1015
    %v1711 = vunpack.c.h.b16 %v1015
    %v1712 = vunpack.c.l.b16 %v1016
    %v1713 = vunpack.c.h.b16 %v1016
    %v1714 = vunpack.c.l.b16 %v1017
    %v1715 = vunpack.c.h.b16 %v1017
    %v1716 = vunpack.c.l.b16 %v1018
    %v1717 = vunpack.c.h.b16 %v1018
    %v1718 = vunpack.c.l.b16 %v1019
    %v1719 = vunpack.c.h.b16 %v1019
    %v1720 = vunpack.c.l.b16 %v1020
    %v1721 = vunpack.c.h.b16 %v1020
    %v1722 = vunpack.c.l.b16 %v1021
    %v1723 = vunpack.c.h.b16 %v1021
    %v1724 = vunpack.c.l.b16 %v1022
    %v1725 = vunpack.c.h.b16 %v1022
    %v1726 = vunpack.c.l.b16 %v1023
    %v1727 = vunpack.c.h.b16 %v1023
    %v1728 = vunpack.c.l.b16 %v1024
    %v1729 = vunpack.c.h.b16 %v1024
    %v1730 = vunpack.c.l.b16 %v1025
    %v1731 = vunpack.c.h.b16 %v1025
    %v1732 = vunpack.c.l.b16 %v1026
    %v1733 = vunpack.c.h.b16 %v1026
    %v1734 = vunpack.c.l.b16 %v1027
    %v1735 = vunpack.c.h.b16 %v1027
    %v1736 = vunpack.c.l.b16 %v1028
    %v1737 = vunpack.c.h.b16 %v1028
    %v1738 = vunpack.c.l.b16 %v1029
    %v1739 = vunpack.c.h.b16 %v1029
    %v1740 = vunpack.c.l.b16 %v1030
    %v1741 = vunpack.c.h.b16 %v1030
    %v1742 = vunpack.c.l.b16 %v1031
    %v1743 = vunpack.c.h.b16 %v1031
    %v1744 = vunpack.c.l.b16 %v1032
    %v1745 = vunpack.c.h.b16 %v1032
    %v1746 = vunpack.c.l.b16 %v1033
    %v1747 = vunpack.c.h.b16 %v1033
    %v1748 = vunpack.c.l.b16 %v1034
    %v1749 = vunpack.c.h.b16 %v1034
    %v1750 = vunpack.c.l.b16 %v1035
    %v1751 = vunpack.c.h.b16 %v1035
    %v1752 = vunpack.c.l.b16 %v1036
    %v1753 = vunpack.c.h.b16 %v1036
    %v1754 = vunpack.c.l.b16 %v1037
    %v1755 = vunpack.c.h.b16 %v1037
    %v1756 = vunpack.c.l.b16 %v1038
    %v1757 = vunpack.c.h.b16 %v1038
    %v1758 = vunpack.c.l.b16 %v1039
    %v1759 = vunpack.c.h.b16 %v1039
    %v1760 = vunpack.c.l.b16 %v1040
    %v1761 = vunpack.c.h.b16 %v1040
    %v1762 = vunpack.c.l.b16 %v1041
    %v1763 = vunpack.c.h.b16 %v1041
    %v1764 = vunpack.c.l.b16 %v1042
    %v1765 = vunpack.c.h.b16 %v1042
    %v1766 = vunpack.c.l.b16 %v1043
    %v1767 = vunpack.c.h.b16 %v1043
    %v1768 = vunpack.c.l.b16 %v1044
    %v1769 = vunpack.c.h.b16 %v1044
    %v1770 = vunpack.c.l.b16 %v1045
    %v1771 = vunpack.c.h.b16 %v1045
    %v1772 = vunpack.c.l.b16 %v1046
    %v1773 = vunpack.c.h.b16 %v1046
    %v1774 = vunpack.c.l.b16 %v1047
    %v1775 = vunpack.c.h.b16 %v1047
    %v1776 = vunpack.c.l.b16 %v1048
    %v1777 = vunpack.c.h.b16 %v1048
    %v1778 = vunpack.c.l.b16 %v1049
    %v1779 = vunpack.c.h.b16 %v1049
    %v1780 = vunpack.c.l.b16 %v1050
    %v1781 = vunpack.c.h.b16 %v1050
    %v1782 = vunpack.c.l.b16 %v1051
    %v1783 = vunpack.c.h.b16 %v1051
    %v1784 = vunpack.c.l.b16 %v1052
    %v1785 = vunpack.c.h.b16 %v1052
    %v1786 = vunpack.c.l.b16 %v1053
    %v1787 = vunpack.c.h.b16 %v1053
    %v1788 = vunpack.c.l.b16 %v1054
    %v1789 = vunpack.c.h.b16 %v1054
    %v1790 = vunpack.c.l.b16 %v1055
    %v1791 = vunpack.c.h.b16 %v1055
    %v1792 = vunpack.c.l.b16 %v1056
    %v1793 = vunpack.c.h.b16 %v1056
    %v1794 = vunpack.c.l.b16 %v1057
    %v1795 = vunpack.c.h.b16 %v1057
    %v1796 = vunpack.c.l.b16 %v1058
    %v1797 = vunpack.c.h.b16 %v1058
    %v1798 = vunpack.c.l.b16 %v1059
    %v1799 = vunpack.c.h.b16 %v1059
    %v1800 = vunpack.c.l.b16 %v1060
    %v1801 = vunpack.c.h.b16 %v1060
    %v1802 = vunpack.c.l.b16 %v1061
    %v1803 = vunpack.c.h.b16 %v1061
    %v1804 = vunpack.c.l.b16 %v1062
    %v1805 = vunpack.c.h.b16 %v1062
    %v1806 = vunpack.c.l.b16 %v1063
    %v1807 = vunpack.c.h.b16 %v1063
    %v1808 = vunpack.c.l.b16 %v1064
    %v1809 = vunpack.c.h.b16 %v1064
    %v1810 = vunpack.c.l.b16 %v1065
    %v1811 = vunpack.c.h.b16 %v1065
    %v1812 = vunpack.c.l.b16 %v1066
    %v1813 = vunpack.c.h.b16 %v1066
    %v1814 = vunpack.c.l.b16 %v1067
    %v1815 = vunpack.c.h.b16 %v1067
    %v1816 = vunpack.c.l.b16 %v1068
    %v1817 = vunpack.c.h.b16 %v1068
    %v1818 = vunpack.c.l.b16 %v1069
    %v1819 = vunpack.c.h.b16 %v1069
    %v1820 = vunpack.c.l.b16 %v1070
    %v1821 = vunpack.c.h.b16 %v1070
    %v1822 = vunpack.c.l.b16 %v1071
    %v1823 = vunpack.c.h.b16 %v1071
    %v1824 = vunpack.c.l.b16 %v1072
    %v1825 = vunpack.c.h.b16 %v1072
    %v1826 = vunpack.c.l.b16 %v1073
    %v1827 = vunpack.c.h.b16 %v1073
    %v1828 = vunpack.c.l.b16 %v1074
    %v1829 = vunpack.c.h.b16 %v1074
    %v1830 = vunpack.c.l.b16 %v1075
    %v1831 = vunpack.c.h.b16 %v1075
    %v1832 = vunpack.c.l.b16 %v1076
    %v1833 = vunpack.c.h.b16 %v1076
    %v1834 = vunpack.c.l.b16 %v1077
    %v1835 = vunpack.c.h.b16 %v1077
    %v1836 = vunpack.c.l.b16 %v1078
    %v1837 = vunpack.c.h.b16 %v1078
    %v1838 = vunpack.c.l.b16 %v1079
    %v1839 = vunpack.c.h.b16 %v1079
    %v1840 = vunpack.c.l.b16 %v1080
    %v1841 = vunpack.c.h.b16 %v1080
    %v1842 = vunpack.c.l.b16 %v1081
    %v1843 = vunpack.c.h.b16 %v1081
    %v1844 = vunpack.c.l.b16 %v1082
    %v1845 = vunpack.c.h.b16 %v1082
    %v1846 = vunpack.c.l.b16 %v1083
    %v1847 = vunpack.c.h.b16 %v1083
    %v1848 = vunpack.c.l.b16 %v1084
    %v1849 = vunpack.c.h.b16 %v1084
    %v1850 = vunpack.c.l.b16 %v1085
    %v1851 = vunpack.c.h.b16 %v1085
    %v1852 = vunpack.c.l.b16 %v1086
    %v1853 = vunpack.c.h.b16 %v1086
    %v1854 = vunpack.c.l.b16 %v1087
    %v1855 = vunpack.c.h.b16 %v1087
    %v1856 = vunpack.c.l.b16 %v1088
    %v1857 = vunpack.c.h.b16 %v1088
    %v1858 = vunpack.c.l.b16 %v1089
    %v1859 = vunpack.c.h.b16 %v1089
    %v1860 = vunpack.c.l.b16 %v1090
    %v1861 = vunpack.c.h.b16 %v1090
    %v1862 = vunpack.c.l.b16 %v1091
    %v1863 = vunpack.c.h.b16 %v1091
    %v1864 = vunpack.c.l.b16 %v1092
    %v1865 = vunpack.c.h.b16 %v1092
    %v1866 = vunpack.c.l.b16 %v1093
    %v1867 = vunpack.c.h.b16 %v1093
    %v1868 = vunpack.c.l.b16 %v1094
    %v1869 = vunpack.c.h.b16 %v1094
    %v1870 = vunpack.c.l.b16 %v1095
    %v1871 = vunpack.c.h.b16 %v1095
    %v1872 = vunpack.c.l.b16 %v1096
    %v1873 = vunpack.c.h.b16 %v1096
    %v1874 = vunpack.c.l.b16 %v1097
    %v1875 = vunpack.c.h.b16 %v1097
    %v1876 = vunpack.c.l.b16 %v1098
    %v1877 = vunpack.c.h.b16 %v1098
    %v1878 = vunpack.c.l.b16 %v1099
    %v1879 = vunpack.c.h.b16 %v1099
    %v1880 = vunpack.c.l.b16 %v1100
    %v1881 = vunpack.c.h.b16 %v1100
    %v1882 = vunpack.c.l.b16 %v1101
    %v1883 = vunpack.c.h.b16 %v1101
    %v1884 = vunpack.c.l.b16 %v1102
    %v1885 = vunpack.c.h.b16 %v1102
    %v1886 = vunpack.c.l.b16 %v1103
    %v1887 = vunpack.c.h.b16 %v1103
    %v1888 = vunpack.c.l.b16 %v1104
    %v1889 = vunpack.c.h.b16 %v1104
    %v1890 = vunpack.c.l.b16 %v1105
    %v1891 = vunpack.c.h.b16 %v1105
    %v1892 = vunpack.c.l.b16 %v1106
    %v1893 = vunpack.c.h.b16 %v1106
    %v1894 = vunpack.c.l.b16 %v1107
    %v1895 = vunpack.c.h.b16 %v1107
    %v1896 = vunpack.c.l.b16 %v1108
    %v1897 = vunpack.c.h.b16 %v1108
    %v1898 = vunpack.c.l.b16 %v1109
    %v1899 = vunpack.c.h.b16 %v1109
    %v1900 = vunpack.c.l.b16 %v1110
    %v1901 = vunpack.c.h.b16 %v1110
    %v1902 = vunpack.c.l.b16 %v1111
    %v1903 = vunpack.c.h.b16 %v1111
    %v1904 = vunpack.c.l.b16 %v1112
    %v1905 = vunpack.c.h.b16 %v1112
    %v1906 = vunpack.c.l.b16 %v1113
    %v1907 = vunpack.c.h.b16 %v1113
    %v1908 = vunpack.c.l.b16 %v1114
    %v1909 = vunpack.c.h.b16 %v1114
    %v1910 = vunpack.c.l.b16 %v1115
    %v1911 = vunpack.c.h.b16 %v1115
    %v1912 = vunpack.c.l.b16 %v1116
    %v1913 = vunpack.c.h.b16 %v1116
    %v1914 = vunpack.c.l.b16 %v1117
    %v1915 = vunpack.c.h.b16 %v1117
    %v1916 = vunpack.c.l.b16 %v1118
    %v1917 = vunpack.c.h.b16 %v1118
    %v1918 = vunpack.c.l.b16 %v1119
    %v1919 = vunpack.c.h.b16 %v1119
    %v1920 = vunpack.c.l.b16 %v1120
    %v1921 = vunpack.c.h.b16 %v1120
    %v1922 = vunpack.c.l.b16 %v1121
    %v1923 = vunpack.c.h.b16 %v1121
    %v1924 = vunpack.c.l.b16 %v1122
    %v1925 = vunpack.c.h.b16 %v1122
    %v1926 = vunpack.c.l.b16 %v1123
    %v1927 = vunpack.c.h.b16 %v1123
    %v1928 = vunpack.c.l.b16 %v1124
    %v1929 = vunpack.c.h.b16 %v1124
    %v1930 = vunpack.c.l.b16 %v1125
    %v1931 = vunpack.c.h.b16 %v1125
    %v1932 = vunpack.c.l.b16 %v1126
    %v1933 = vunpack.c.h.b16 %v1126
    %v1934 = vunpack.c.l.b16 %v1127
    %v1935 = vunpack.c.h.b16 %v1127
    %v1936 = vunpack.c.l.b16 %v1128
    %v1937 = vunpack.c.h.b16 %v1128
    %v1938 = vunpack.c.l.b16 %v1129
    %v1939 = vunpack.c.h.b16 %v1129
    %v1940 = vunpack.c.l.b16 %v1130
    %v1941 = vunpack.c.h.b16 %v1130
    %v1942 = vunpack.c.l.b16 %v1131
    %v1943 = vunpack.c.h.b16 %v1131
    %v1944 = vunpack.c.l.b16 %v1132
    %v1945 = vunpack.c.h.b16 %v1132
    %v1946 = vunpack.c.l.b16 %v1133
    %v1947 = vunpack.c.h.b16 %v1133
    %v1948 = vpack.c.b16 %v1444, %v1436
    %v1949 = vpack.c.b16 %v1445, %v1437
    %v1950 = vpack.c.b16 %v1446, %v1438
    %v1951 = vpack.c.b16 %v1447, %v1439
    %v1952 = vpack.c.b16 %v1448, %v1440
    %v1953 = vpack.c.b16 %v1449, %v1441
    %v1954 = vpack.c.b16 %v1450, %v1442
    %v1955 = vpack.c.b16 %v1451, %v1443
    %v1956 = vpack.c.b16 %v1460, %v1452
    %v1957 = vpack.c.b16 %v1461, %v1453
    %v1958 = vpack.c.b16 %v1462, %v1454
    %v1959 = vpack.c.b16 %v1463, %v1455
    %v1960 = vpack.c.b16 %v1464, %v1456
    %v1961 = vpack.c.b16 %v1465, %v1457
    %v1962 = vpack.c.b16 %v1466, %v1458
    %v1963 = vpack.c.b16 %v1467, %v1459
    %v1964 = vpack.c.b16 %v1476, %v1468
    %v1965 = vpack.c.b16 %v1477, %v1469
    %v1966 = vpack.c.b16 %v1478, %v1470
    %v1967 = vpack.c.b16 %v1479, %v1471
    %v1968 = vpack.c.b16 %v1480, %v1472
    %v1969 = vpack.c.b16 %v1481, %v1473
    %v1970 = vpack.c.b16 %v1482, %v1474
    %v1971 = vpack.c.b16 %v1483, %v1475
    %v1972 = vpack.c.b16 %v1492, %v1484
    %v1973 = vpack.c.b16 %v1493, %v1485
    %v1974 = vpack.c.b16 %v1494, %v1486
    %v1975 = vpack.c.b16 %v1495, %v1487
    %v1976 = vpack.c.b16 %v1496, %v1488
    %v1977 = vpack.c.b16 %v1497, %v1489
    %v1978 = vpack.c.b16 %v1498, %v1490
    %v1979 = vpack.c.b16 %v1499, %v1491
    %v1980 = vpack.c.b16 %v1508, %v1500
    %v1981 = vpack.c.b16 %v1509, %v1501
    %v1982 = vpack.c.b16 %v1510, %v1502
    %v1983 = vpack.c.b16 %v1511, %v1503
    %v1984 = vpack.c.b16 %v1512, %v1504
    %v1985 = vpack.c.b16 %v1513, %v1505
    %v1986 = vpack.c.b16 %v1514, %v1506
    %v1987 = vpack.c.b16 %v1515, %v1507
    %v1988 = vpack.c.b16 %v1524, %v1516
    %v1989 = vpack.c.b16 %v1525, %v1517
    %v1990 = vpack.c.b16 %v1526, %v1518
    %v1991 = vpack.c.b16 %v1527, %v1519
    %v1992 = vpack.c.b16 %v1528, %v1520
    %v1993 = vpack.c.b16 %v1529, %v1521
    %v1994 = vpack.c.b16 %v1530, %v1522
    %v1995 = vpack.c.b16 %v1531, %v1523
    %v1996 = vpack.c.b16 %v1540, %v1532
    %v1997 = vpack.c.b16 %v1541, %v1533
    %v1998 = vpack.c.b16 %v1542, %v1534
    %v1999 = vpack.c.b16 %v1543, %v1535
    %v2000 = vpack.c.b16 %v1544, %v1536
    %v2001 = vpack.c.b16 %v1545, %v1537
    %v2002 = vpack.c.b16 %v1546, %v1538
    %v2003 = vpack.c.b16 %v1547, %v1539
    %v2004 = vpack.c.b16 %v1556, %v1548
    %v2005 = vpack.c.b16 %v1557, %v1549
    %v2006 = vpack.c.b16 %v1558, %v1550
    %v2007 = vpack.c.b16 %v1559, %v1551
    %v2008 = vpack.c.b16 %v1560, %v1552
    %v2009 = vpack.c.b16 %v1561, %v1553
    %v2010 = vpack.c.b16 %v1562, %v1554
    %v2011 = vpack.c.b16 %v1563, %v1555
    %v2012 = vpack.c.b16 %v1572, %v1564
    %v2013 = vpack.c.b16 %v1573, %v1565
    %v2014 = vpack.c.b16 %v1574, %v1566
    %v2015 = vpack.c.b16 %v1575, %v1567
    %v2016 = vpack.c.b16 %v1576, %v1568
    %v2017 = vpack.c.b16 %v1577, %v1569
    %v2018 = vpack.c.b16 %v1578, %v1570
    %v2019 = vpack.c.b16 %v1579, %v1571
    %v2020 = vpack.c.b16 %v1588, %v1580
    %v2021 = vpack.c.b16 %v1589, %v1581
    %v2022 = vpack.c.b16 %v1590, %v1582
    %v2023 = vpack.c.b16 %v1591, %v1583
    %v2024 = vpack.c.b16 %v1592, %v1584
    %v2025 = vpack.c.b16 %v1593, %v1585
    %v2026 = vpack.c.b16 %v1594, %v1586
    %v2027 = vpack.c.b16 %v1595, %v1587
    %v2028 = vpack.c.b16 %v1604, %v1596
    %v2029 = vpack.c.b16 %v1605, %v1597
    %v2030 = vpack.c.b16 %v1606, %v1598
    %v2031 = vpack.c.b16 %v1607, %v1599
    %v2032 = vpack.c.b16 %v1608, %v1600
    %v2033 = vpack.c.b16 %v1609, %v1601
    %v2034 = vpack.c.b16 %v1610, %v1602
    %v2035 = vpack.c.b16 %v1611, %v1603
    %v2036 = vpack.c.b16 %v1620, %v1612
    %v2037 = vpack.c.b16 %v1621, %v1613
    %v2038 = vpack.c.b16 %v1622, %v1614
    %v2039 = vpack.c.b16 %v1623, %v1615
    %v2040 = vpack.c.b16 %v1624, %v1616
    %v2041 = vpack.c.b16 %v1625, %v1617
    %v2042 = vpack.c.b16 %v1626, %v1618
    %v2043 = vpack.c.b16 %v1627, %v1619
    %v2044 = vpack.c.b16 %v1636, %v1628
    %v2045 = vpack.c.b16 %v1637, %v1629
    %v2046 = vpack.c.b16 %v1638, %v1630
    %v2047 = vpack.c.b16 %v1639, %v1631
    %v2048 = vpack.c.b16 %v1640, %v1632
    %v2049 = vpack.c.b16 %v1641, %v1633
    %v2050 = vpack.c.b16 %v1642, %v1634
    %v2051 = vpack.c.b16 %v1643, %v1635
    %v2052 = vpack.c.b16 %v1652, %v1644
    %v2053 = vpack.c.b16 %v1653, %v1645
    %v2054 = vpack.c.b16 %v1654, %v1646
    %v2055 = vpack.c.b16 %v1655, %v1647
    %v2056 = vpack.c.b16 %v1656, %v1648
    %v2057 = vpack.c.b16 %v1657, %v1649
    %v2058 = vpack.c.b16 %v1658, %v1650
    %v2059 = vpack.c.b16 %v1659, %v1651
    %v2060 = vpack.c.b16 %v1668, %v1660
    %v2061 = vpack.c.b16 %v1669, %v1661
    %v2062 = vpack.c.b16 %v1670, %v1662
    %v2063 = vpack.c.b16 %v1671, %v1663
    %v2064 = vpack.c.b16 %v1672, %v1664
    %v2065 = vpack.c.b16 %v1673, %v1665
    %v2066 = vpack.c.b16 %v1674, %v1666
    %v2067 = vpack.c.b16 %v1675, %v1667
    %v2068 = vpack.c.b16 %v1684, %v1676
    %v2069 = vpack.c.b16 %v1685, %v1677
    %v2070 = vpack.c.b16 %v1686, %v1678
    %v2071 = vpack.c.b16 %v1687, %v1679
    %v2072 = vpack.c.b16 %v1688, %v1680
    %v2073 = vpack.c.b16 %v1689, %v1681
    %v2074 = vpack.c.b16 %v1690, %v1682
    %v2075 = vpack.c.b16 %v1691, %v1683
    %v2076 = vpack.c.b16 %v1700, %v1692
    %v2077 = vpack.c.b16 %v1701, %v1693
    %v2078 = vpack.c.b16 %v1702, %v1694
    %v2079 = vpack.c.b16 %v1703, %v1695
    %v2080 = vpack.c.b16 %v1704, %v1696
    %v2081 = vpack.c.b16 %v1705, %v1697
    %v2082 = vpack.c.b16 %v1706, %v1698
    %v2083 = vpack.c.b16 %v1707, %v1699
    %v2084 = vpack.c.b16 %v1716, %v1708
    %v2085 = vpack.c.b16 %v1717, %v1709
    %v2086 = vpack.c.b16 %v1718, %v1710
    %v2087 = vpack.c.b16 %v1719, %v1711
    %v2088 = vpack.c.b16 %v1720, %v1712
    %v2089 = vpack.c.b16 %v1721, %v1713
    %v2090 = vpack.c.b16 %v1722, %v1714
    %v2091 = vpack.c.b16 %v1723, %v1715
    %v2092 = vpack.c.b16 %v1732, %v1724
    %v2093 = vpack.c.b16 %v1733, %v1725
    %v2094 = vpack.c.b16 %v1734, %v1726
    %v2095 = vpack.c.b16 %v1735, %v1727
    %v2096 = vpack.c.b16 %v1736, %v1728
    %v2097 = vpack.c.b16 %v1737, %v1729
    %v2098 = vpack.c.b16 %v1738, %v1730
    %v2099 = vpack.c.b16 %v1739, %v1731
    %v2100 = vpack.c.b16 %v1748, %v1740
    %v2101 = vpack.c.b16 %v1749, %v1741
    %v2102 = vpack.c.b16 %v1750, %v1742
    %v2103 = vpack.c.b16 %v1751, %v1743
    %v2104 = vpack.c.b16 %v1752, %v1744
    %v2105 = vpack.c.b16 %v1753, %v1745
    %v2106 = vpack.c.b16 %v1754, %v1746
    %v2107 = vpack.c.b16 %v1755, %v1747
    %v2108 = vpack.c.b16 %v1764, %v1756
    %v2109 = vpack.c.b16 %v1765, %v1757
    %v2110 = vpack.c.b16 %v1766, %v1758
    %v2111 = vpack.c.b16 %v1767, %v1759
    %v2112 = vpack.c.b16 %v1768, %v1760
    %v2113 = vpack.c.b16 %v1769, %v1761
    %v2114 = vpack.c.b16 %v1770, %v1762
    %v2115 = vpack.c.b16 %v1771, %v1763
    %v2116 = vpack.c.b16 %v1780, %v1772
    %v2117 = vpack.c.b16 %v1781, %v1773
    %v2118 = vpack.c.b16 %v1782, %v1774
    %v2119 = vpack.c.b16 %v1783, %v1775
    %v2120 = vpack.c.b16 %v1784, %v1776
    %v2121 = vpack.c.b16 %v1785, %v1777
    %v2122 = vpack.c.b16 %v1786, %v1778
    %v2123 = vpack.c.b16 %v1787, %v1779
    %v2124 = vpack.c.b16 %v1796, %v1788
    %v2125 = vpack.c.b16 %v1797, %v1789
    %v2126 = vpack.c.b16 %v1798, %v1790
    %v2127 = vpack.c.b16 %v1799, %v1791
    %v2128 = vpack.c.b16 %v1800, %v1792
    %v2129 = vpack.c.b16 %v1801, %v1793
    %v2130 = vpack.c.b16 %v1802, %v1794
    %v2131 = vpack.c.b16 %v1803, %v1795
    %v2132 = vpack.c.b16 %v1812, %v1804
    %v2133 = vpack.c.b16 %v1813, %v1805
    %v2134 = vpack.c.b16 %v1814, %v1806
    %v2135 = vpack.c.b16 %v1815, %v1807
    %v2136 = vpack.c.b16 %v1816, %v1808
    %v2137 = vpack.c.b16 %v1817, %v1809
    %v2138 = vpack.c.b16 %v1818, %v1810
    %v2139 = vpack.c.b16 %v1819, %v1811
    %v2140 = vpack.c.b16 %v1828, %v1820
    %v2141 = vpack.c.b16 %v1829, %v1821
    %v2142 = vpack.c.b16 %v1830, %v1822
    %v2143 = vpack.c.b16 %v1831, %v1823
    %v2144 = vpack.c.b16 %v1832, %v1824
    %v2145 = vpack.c.b16 %v1833, %v1825
    %v2146 = vpack.c.b16 %v1834, %v1826
    %v2147 = vpack.c.b16 %v1835, %v1827
    %v2148 = vpack.c.b16 %v1844, %v1836
    %v2149 = vpack.c.b16 %v1845, %v1837
    %v2150 = vpack.c.b16 %v1846, %v1838
    %v2151 = vpack.c.b16 %v1847, %v1839
    %v2152 = vpack.c.b16 %v1848, %v1840
    %v2153 = vpack.c.b16 %v1849, %v1841
    %v2154 = vpack.c.b16 %v1850, %v1842
    %v2155 = vpack.c.b16 %v1851, %v1843
    %v2156 = vpack.c.b16 %v1860, %v1852
    %v2157 = vpack.c.b16 %v1861, %v1853
    %v2158 = vpack.c.b16 %v1862, %v1854
    %v2159 = vpack.c.b16 %v1863, %v1855
    %v2160 = vpack.c.b16 %v1864, %v1856
    %v2161 = vpack.c.b16 %v1865, %v1857
    %v2162 = vpack.c.b16 %v1866, %v1858
    %v2163 = vpack.c.b16 %v1867, %v1859
    %v2164 = vpack.c.b16 %v1876, %v1868
    %v2165 = vpack.c.b16 %v1877, %v1869
    %v2166 = vpack.c.b16 %v1878, %v1870
    %v2167 = vpack.c.b16 %v1879, %v1871
    %v2168 = vpack.c.b16 %v1880, %v1872
    %v2169 = vpack.c.b16 %v1881, %v1873
    %v2170 = vpack.c.b16 %v1882, %v1874
    %v2171 = vpack.c.b16 %v1883, %v1875
    %v2172 = vpack.c.b16 %v1892, %v1884
    %v2173 = vpack.c.b16 %v1893, %v1885
    %v2174 = vpack.c.b16 %v1894, %v1886
    %v2175 = vpack.c.b16 %v1895, %v1887
    %v2176 = vpack.c.b16 %v1896, %v1888
    %v2177 = vpack.c.b16 %v1897, %v1889
    %v2178 = vpack.c.b16 %v1898, %v1890
    %v2179 = vpack.c.b16 %v1899, %v1891
    %v2180 = vpack.c.b16 %v1908, %v1900
    %v2181 = vpack.c.b16 %v1909, %v1901
    %v2182 = vpack.c.b16 %v1910, %v1902
    %v2183 = vpack.c.b16 %v1911, %v1903
    %v2184 = vpack.c.b16 %v1912, %v1904
    %v2185 = vpack.c.b16 %v1913, %v1905
    %v2186 = vpack.c.b16 %v1914, %v1906
    %v2187 = vpack.c.b16 %v1915, %v1907
    %v2188 = vpack.c.b16 %v1924, %v1916
    %v2189 = vpack.c.b16 %v1925, %v1917
    %v2190 = vpack.c.b16 %v1926, %v1918
    %v2191 = vpack.c.b16 %v1927, %v1919
    %v2192 = vpack.c.b16 %v1928, %v1920
    %v2193 = vpack.c.b16 %v1929, %v1921
    %v2194 = vpack.c.b16 %v1930, %v1922
    %v2195 = vpack.c.b16 %v1931, %v1923
    %v2196 = vpack.c.b16 %v1940, %v1932
    %v2197 = vpack.c.b16 %v1941, %v1933
    %v2198 = vpack.c.b16 %v1942, %v1934
    %v2199 = vpack.c.b16 %v1943, %v1935
    %v2200 = vpack.c.b16 %v1944, %v1936
    %v2201 = vpack.c.b16 %v1945, %v1937
    %v2202 = vpack.c.b16 %v1946, %v1938
    %v2203 = vpack.c.b16 %v1947, %v1939
    %2460 = vmatprep.subr.bf16.mxu0 %v2005
    %2461 = vmatpush1.bf16.msra.mxu0 %v2004
    %2462 = vmatprep.subr.bf16.mxu0 %v1997
    %2463 = vmatpush1.bf16.msra.mxu0 %v1996
    %2464 = vmatprep.subr.bf16.mxu0 %v1989
    %2465 = vmatpush1.bf16.msra.mxu0 %v1988
    %2466 = vmatprep.subr.bf16.mxu0 %v1981
    %2467 = vmatpush1.bf16.msra.mxu0 %v1980
    %2468 = vmatprep.subr.bf16.mxu0 %v1973
    %2469 = vmatpush1.bf16.msra.mxu0 %v1972
    %2470 = vmatprep.subr.bf16.mxu0 %v1965
    %2471 = vmatpush1.bf16.msra.mxu0 %v1964
    %2472 = vmatprep.subr.bf16.mxu0 %v1957
    %2473 = vmatpush1.bf16.msra.mxu0 %v1956
    %2474 = vmatprep.subr.bf16.mxu0 %v1949
    %2475 = vmatpush1.bf16.msra.mxu0 %v1948
    %2476 = vmatprep.subr.bf16.mxu0 %v2069
    %2477 = vmatpush2.bf16.msra.mxu0 %v2068
    %2478 = vmatprep.subr.bf16.mxu0 %v2061
    %2479 = vmatpush2.bf16.msra.mxu0 %v2060
    %2480 = vmatprep.subr.bf16.mxu0 %v2053
    %2481 = vmatpush2.bf16.msra.mxu0 %v2052
    %2482 = vmatprep.subr.bf16.mxu0 %v2045
    %2483 = vmatpush2.bf16.msra.mxu0 %v2044
    %2484 = vmatprep.subr.bf16.mxu0 %v2037
    %2485 = vmatpush2.bf16.msra.mxu0 %v2036
    %2486 = vmatprep.subr.bf16.mxu0 %v2029
    %2487 = vmatpush2.bf16.msra.mxu0 %v2028
    %2488 = vmatprep.subr.bf16.mxu0 %v2021
    %2489 = vmatpush2.bf16.msra.mxu0 %v2020
    %2490 = vmatprep.subr.bf16.mxu0 %v2013
    %2491 = vmatpush2.bf16.msra.mxu0 %v2012
    %2492 = vmatprep.mubr.bf16.mxu0 %v1135
    %2493 = vmatmul.mubr.bf16.gmra.mxu0 %v1134
    %v2494 = vpop.f32.mrf.mxu0
    %v2495 = vadd.f32 %v1143, %v2494
    %v2496 = vpop.f32.mrf.mxu0
    %v2497 = vadd.f32 %v1147, %v2496
    %v2498 = vpop.f32.mrf.mxu0
    %v2499 = vpop.f32.mrf.mxu0
    %2500 = vdwg.mxu0
    %2501 = vmatprep.subr.bf16.mxu0 %v2133
    %2502 = vmatpush1.bf16.msra.mxu0 %v2132
    %2503 = vmatprep.subr.bf16.mxu0 %v2125
    %2504 = vmatpush1.bf16.msra.mxu0 %v2124
    %2505 = vmatprep.subr.bf16.mxu0 %v2117
    %2506 = vmatpush1.bf16.msra.mxu0 %v2116
    %2507 = vmatprep.subr.bf16.mxu0 %v2109
    %2508 = vmatpush1.bf16.msra.mxu0 %v2108
    %2509 = vmatprep.subr.bf16.mxu0 %v2101
    %2510 = vmatpush1.bf16.msra.mxu0 %v2100
    %2511 = vmatprep.subr.bf16.mxu0 %v2093
    %2512 = vmatpush1.bf16.msra.mxu0 %v2092
    %2513 = vmatprep.subr.bf16.mxu0 %v2085
    %2514 = vmatpush1.bf16.msra.mxu0 %v2084
    %2515 = vmatprep.subr.bf16.mxu0 %v2077
    %2516 = vmatpush1.bf16.msra.mxu0 %v2076
    %2517 = vmatprep.subr.bf16.mxu0 %v2197
    %2518 = vmatpush2.bf16.msra.mxu0 %v2196
    %2519 = vmatprep.subr.bf16.mxu0 %v2189
    %2520 = vmatpush2.bf16.msra.mxu0 %v2188
    %2521 = vmatprep.subr.bf16.mxu0 %v2181
    %2522 = vmatpush2.bf16.msra.mxu0 %v2180
    %2523 = vmatprep.subr.bf16.mxu0 %v2173
    %2524 = vmatpush2.bf16.msra.mxu0 %v2172
    %2525 = vmatprep.subr.bf16.mxu0 %v2165
    %2526 = vmatpush2.bf16.msra.mxu0 %v2164
    %2527 = vmatprep.subr.bf16.mxu0 %v2157
    %2528 = vmatpush2.bf16.msra.mxu0 %v2156
    %2529 = vmatprep.subr.bf16.mxu0 %v2149
    %2530 = vmatpush2.bf16.msra.mxu0 %v2148
    %2531 = vmatprep.subr.bf16.mxu0 %v2141
    %2532 = vmatpush2.bf16.msra.mxu0 %v2140
    %2533 = vmatprep.mubr.bf16.mxu0 %v1137
    %2534 = vmatmul.mubr.bf16.gmra.mxu0 %v1136
    %v2535 = vpop.f32.mrf.mxu0
    %v2536 = vadd.f32 %v2495, %v2535
    %v2537 = vpop.f32.mrf.mxu0
    %v2538 = vadd.f32 %v2497, %v2537
    %v2539 = vpop.f32.mrf.mxu0
    %v2540 = vpop.f32.mrf.mxu0
    %2541 = vdwg.mxu0
    %2542 = vmatprep.subr.bf16.mxu0 %v2007
    %2543 = vmatpush1.bf16.msra.mxu0 %v2006
    %2544 = vmatprep.subr.bf16.mxu0 %v1999
    %2545 = vmatpush1.bf16.msra.mxu0 %v1998
    %2546 = vmatprep.subr.bf16.mxu0 %v1991
    %2547 = vmatpush1.bf16.msra.mxu0 %v1990
    %2548 = vmatprep.subr.bf16.mxu0 %v1983
    %2549 = vmatpush1.bf16.msra.mxu0 %v1982
    %2550 = vmatprep.subr.bf16.mxu0 %v1975
    %2551 = vmatpush1.bf16.msra.mxu0 %v1974
    %2552 = vmatprep.subr.bf16.mxu0 %v1967
    %2553 = vmatpush1.bf16.msra.mxu0 %v1966
    %2554 = vmatprep.subr.bf16.mxu0 %v1959
    %2555 = vmatpush1.bf16.msra.mxu0 %v1958
    %2556 = vmatprep.subr.bf16.mxu0 %v1951
    %2557 = vmatpush1.bf16.msra.mxu0 %v1950
    %2558 = vmatprep.subr.bf16.mxu0 %v2071
    %2559 = vmatpush2.bf16.msra.mxu0 %v2070
    %2560 = vmatprep.subr.bf16.mxu0 %v2063
    %2561 = vmatpush2.bf16.msra.mxu0 %v2062
    %2562 = vmatprep.subr.bf16.mxu0 %v2055
    %2563 = vmatpush2.bf16.msra.mxu0 %v2054
    %2564 = vmatprep.subr.bf16.mxu0 %v2047
    %2565 = vmatpush2.bf16.msra.mxu0 %v2046
    %2566 = vmatprep.subr.bf16.mxu0 %v2039
    %2567 = vmatpush2.bf16.msra.mxu0 %v2038
    %2568 = vmatprep.subr.bf16.mxu0 %v2031
    %2569 = vmatpush2.bf16.msra.mxu0 %v2030
    %2570 = vmatprep.subr.bf16.mxu0 %v2023
    %2571 = vmatpush2.bf16.msra.mxu0 %v2022
    %2572 = vmatprep.subr.bf16.mxu0 %v2015
    %2573 = vmatpush2.bf16.msra.mxu0 %v2014
    %2574 = vmatprep.mubr.bf16.mxu0 %v1135
    %2575 = vmatmul.mubr.bf16.gmra.mxu0 %v1134
    %v2576 = vpop.f32.mrf.mxu0
    %v2577 = vadd.f32 %v1151, %v2576
    %v2578 = vpop.f32.mrf.mxu0
    %v2579 = vadd.f32 %v1155, %v2578
    %v2580 = vpop.f32.mrf.mxu0
    %v2581 = vpop.f32.mrf.mxu0
    %2582 = vdwg.mxu0
    %2583 = vmatprep.subr.bf16.mxu0 %v2135
    %2584 = vmatpush1.bf16.msra.mxu0 %v2134
    %2585 = vmatprep.subr.bf16.mxu0 %v2127
    %2586 = vmatpush1.bf16.msra.mxu0 %v2126
    %2587 = vmatprep.subr.bf16.mxu0 %v2119
    %2588 = vmatpush1.bf16.msra.mxu0 %v2118
    %2589 = vmatprep.subr.bf16.mxu0 %v2111
    %2590 = vmatpush1.bf16.msra.mxu0 %v2110
    %2591 = vmatprep.subr.bf16.mxu0 %v2103
    %2592 = vmatpush1.bf16.msra.mxu0 %v2102
    %2593 = vmatprep.subr.bf16.mxu0 %v2095
    %2594 = vmatpush1.bf16.msra.mxu0 %v2094
    %2595 = vmatprep.subr.bf16.mxu0 %v2087
    %2596 = vmatpush1.bf16.msra.mxu0 %v2086
    %2597 = vmatprep.subr.bf16.mxu0 %v2079
    %2598 = vmatpush1.bf16.msra.mxu0 %v2078
    %2599 = vmatprep.subr.bf16.mxu0 %v2199
    %2600 = vmatpush2.bf16.msra.mxu0 %v2198
    %2601 = vmatprep.subr.bf16.mxu0 %v2191
    %2602 = vmatpush2.bf16.msra.mxu0 %v2190
    %2603 = vmatprep.subr.bf16.mxu0 %v2183
    %2604 = vmatpush2.bf16.msra.mxu0 %v2182
    %2605 = vmatprep.subr.bf16.mxu0 %v2175
    %2606 = vmatpush2.bf16.msra.mxu0 %v2174
    %2607 = vmatprep.subr.bf16.mxu0 %v2167
    %2608 = vmatpush2.bf16.msra.mxu0 %v2166
    %2609 = vmatprep.subr.bf16.mxu0 %v2159
    %2610 = vmatpush2.bf16.msra.mxu0 %v2158
    %2611 = vmatprep.subr.bf16.mxu0 %v2151
    %2612 = vmatpush2.bf16.msra.mxu0 %v2150
    %2613 = vmatprep.subr.bf16.mxu0 %v2143
    %2614 = vmatpush2.bf16.msra.mxu0 %v2142
    %2615 = vmatprep.mubr.bf16.mxu0 %v1137
    %2616 = vmatmul.mubr.bf16.gmra.mxu0 %v1136
    %v2617 = vpop.f32.mrf.mxu0
    %v2618 = vadd.f32 %v2577, %v2617
    %v2619 = vpop.f32.mrf.mxu0
    %v2620 = vadd.f32 %v2579, %v2619
    %v2621 = vpop.f32.mrf.mxu0
    %v2622 = vpop.f32.mrf.mxu0
    %2623 = vdwg.mxu0
    %2624 = vmatprep.subr.bf16.mxu0 %v2009
    %2625 = vmatpush1.bf16.msra.mxu0 %v2008
    %2626 = vmatprep.subr.bf16.mxu0 %v2001
    %2627 = vmatpush1.bf16.msra.mxu0 %v2000
    %2628 = vmatprep.subr.bf16.mxu0 %v1993
    %2629 = vmatpush1.bf16.msra.mxu0 %v1992
    %2630 = vmatprep.subr.bf16.mxu0 %v1985
    %2631 = vmatpush1.bf16.msra.mxu0 %v1984
    %2632 = vmatprep.subr.bf16.mxu0 %v1977
    %2633 = vmatpush1.bf16.msra.mxu0 %v1976
    %2634 = vmatprep.subr.bf16.mxu0 %v1969
    %2635 = vmatpush1.bf16.msra.mxu0 %v1968
    %2636 = vmatprep.subr.bf16.mxu0 %v1961
    %2637 = vmatpush1.bf16.msra.mxu0 %v1960
    %2638 = vmatprep.subr.bf16.mxu0 %v1953
    %2639 = vmatpush1.bf16.msra.mxu0 %v1952
    %2640 = vmatprep.subr.bf16.mxu0 %v2073
    %2641 = vmatpush2.bf16.msra.mxu0 %v2072
    %2642 = vmatprep.subr.bf16.mxu0 %v2065
    %2643 = vmatpush2.bf16.msra.mxu0 %v2064
    %2644 = vmatprep.subr.bf16.mxu0 %v2057
    %2645 = vmatpush2.bf16.msra.mxu0 %v2056
    %2646 = vmatprep.subr.bf16.mxu0 %v2049
    %2647 = vmatpush2.bf16.msra.mxu0 %v2048
    %2648 = vmatprep.subr.bf16.mxu0 %v2041
    %2649 = vmatpush2.bf16.msra.mxu0 %v2040
    %2650 = vmatprep.subr.bf16.mxu0 %v2033
    %2651 = vmatpush2.bf16.msra.mxu0 %v2032
    %2652 = vmatprep.subr.bf16.mxu0 %v2025
    %2653 = vmatpush2.bf16.msra.mxu0 %v2024
    %2654 = vmatprep.subr.bf16.mxu0 %v2017
    %2655 = vmatpush2.bf16.msra.mxu0 %v2016
    %2656 = vmatprep.mubr.bf16.mxu0 %v1135
    %2657 = vmatmul.mubr.bf16.gmra.mxu0 %v1134
    %v2658 = vpop.f32.mrf.mxu0
    %v2659 = vadd.f32 %v1159, %v2658
    %v2660 = vpop.f32.mrf.mxu0
    %v2661 = vadd.f32 %v1163, %v2660
    %v2662 = vpop.f32.mrf.mxu0
    %v2663 = vpop.f32.mrf.mxu0
    %2664 = vdwg.mxu0
    %2665 = vmatprep.subr.bf16.mxu0 %v2137
    %2666 = vmatpush1.bf16.msra.mxu0 %v2136
    %2667 = vmatprep.subr.bf16.mxu0 %v2129
    %2668 = vmatpush1.bf16.msra.mxu0 %v2128
    %2669 = vmatprep.subr.bf16.mxu0 %v2121
    %2670 = vmatpush1.bf16.msra.mxu0 %v2120
    %2671 = vmatprep.subr.bf16.mxu0 %v2113
    %2672 = vmatpush1.bf16.msra.mxu0 %v2112
    %2673 = vmatprep.subr.bf16.mxu0 %v2105
    %2674 = vmatpush1.bf16.msra.mxu0 %v2104
    %2675 = vmatprep.subr.bf16.mxu0 %v2097
    %2676 = vmatpush1.bf16.msra.mxu0 %v2096
    %2677 = vmatprep.subr.bf16.mxu0 %v2089
    %2678 = vmatpush1.bf16.msra.mxu0 %v2088
    %2679 = vmatprep.subr.bf16.mxu0 %v2081
    %2680 = vmatpush1.bf16.msra.mxu0 %v2080
    %2681 = vmatprep.subr.bf16.mxu0 %v2201
    %2682 = vmatpush2.bf16.msra.mxu0 %v2200
    %2683 = vmatprep.subr.bf16.mxu0 %v2193
    %2684 = vmatpush2.bf16.msra.mxu0 %v2192
    %2685 = vmatprep.subr.bf16.mxu0 %v2185
    %2686 = vmatpush2.bf16.msra.mxu0 %v2184
    %2687 = vmatprep.subr.bf16.mxu0 %v2177
    %2688 = vmatpush2.bf16.msra.mxu0 %v2176
    %2689 = vmatprep.subr.bf16.mxu0 %v2169
    %2690 = vmatpush2.bf16.msra.mxu0 %v2168
    %2691 = vmatprep.subr.bf16.mxu0 %v2161
    %2692 = vmatpush2.bf16.msra.mxu0 %v2160
    %2693 = vmatprep.subr.bf16.mxu0 %v2153
    %2694 = vmatpush2.bf16.msra.mxu0 %v2152
    %2695 = vmatprep.subr.bf16.mxu0 %v2145
    %2696 = vmatpush2.bf16.msra.mxu0 %v2144
    %2697 = vmatprep.mubr.bf16.mxu0 %v1137
    %2698 = vmatmul.mubr.bf16.gmra.mxu0 %v1136
    %v2699 = vpop.f32.mrf.mxu0
    %v2700 = vadd.f32 %v2659, %v2699
    %v2701 = vpop.f32.mrf.mxu0
    %v2702 = vadd.f32 %v2661, %v2701
    %v2703 = vpop.f32.mrf.mxu0
    %v2704 = vpop.f32.mrf.mxu0
    %2705 = vdwg.mxu0
    %2706 = vmatprep.subr.bf16.mxu0 %v2011
    %2707 = vmatpush1.bf16.msra.mxu0 %v2010
    %2708 = vmatprep.subr.bf16.mxu0 %v2003
    %2709 = vmatpush1.bf16.msra.mxu0 %v2002
    %2710 = vmatprep.subr.bf16.mxu0 %v1995
    %2711 = vmatpush1.bf16.msra.mxu0 %v1994
    %2712 = vmatprep.subr.bf16.mxu0 %v1987
    %2713 = vmatpush1.bf16.msra.mxu0 %v1986
    %2714 = vmatprep.subr.bf16.mxu0 %v1979
    %2715 = vmatpush1.bf16.msra.mxu0 %v1978
    %2716 = vmatprep.subr.bf16.mxu0 %v1971
    %2717 = vmatpush1.bf16.msra.mxu0 %v1970
    %2718 = vmatprep.subr.bf16.mxu0 %v1963
    %2719 = vmatpush1.bf16.msra.mxu0 %v1962
    %2720 = vmatprep.subr.bf16.mxu0 %v1955
    %2721 = vmatpush1.bf16.msra.mxu0 %v1954
    %2722 = vmatprep.subr.bf16.mxu0 %v2075
    %2723 = vmatpush2.bf16.msra.mxu0 %v2074
    %2724 = vmatprep.subr.bf16.mxu0 %v2067
    %2725 = vmatpush2.bf16.msra.mxu0 %v2066
    %2726 = vmatprep.subr.bf16.mxu0 %v2059
    %2727 = vmatpush2.bf16.msra.mxu0 %v2058
    %2728 = vmatprep.subr.bf16.mxu0 %v2051
    %2729 = vmatpush2.bf16.msra.mxu0 %v2050
    %2730 = vmatprep.subr.bf16.mxu0 %v2043
    %2731 = vmatpush2.bf16.msra.mxu0 %v2042
    %2732 = vmatprep.subr.bf16.mxu0 %v2035
    %2733 = vmatpush2.bf16.msra.mxu0 %v2034
    %2734 = vmatprep.subr.bf16.mxu0 %v2027
    %2735 = vmatpush2.bf16.msra.mxu0 %v2026
    %2736 = vmatprep.subr.bf16.mxu0 %v2019
    %2737 = vmatpush2.bf16.msra.mxu0 %v2018
    %2738 = vmatprep.mubr.bf16.mxu0 %v1135
    %2739 = vmatmul.mubr.bf16.gmra.mxu0 %v1134
    %v2740 = vpop.f32.mrf.mxu0
    %v2741 = vadd.f32 %v1167, %v2740
    %v2742 = vpop.f32.mrf.mxu0
    %v2743 = vadd.f32 %v1171, %v2742
    %v2744 = vpop.f32.mrf.mxu0
    %v2745 = vpop.f32.mrf.mxu0
    %2746 = vdwg.mxu0
    %2747 = vmatprep.subr.bf16.mxu0 %v2139
    %2748 = vmatpush1.bf16.msra.mxu0 %v2138
    %2749 = vmatprep.subr.bf16.mxu0 %v2131
    %2750 = vmatpush1.bf16.msra.mxu0 %v2130
    %2751 = vmatprep.subr.bf16.mxu0 %v2123
    %2752 = vmatpush1.bf16.msra.mxu0 %v2122
    %2753 = vmatprep.subr.bf16.mxu0 %v2115
    %2754 = vmatpush1.bf16.msra.mxu0 %v2114
    %2755 = vmatprep.subr.bf16.mxu0 %v2107
    %2756 = vmatpush1.bf16.msra.mxu0 %v2106
    %2757 = vmatprep.subr.bf16.mxu0 %v2099
    %2758 = vmatpush1.bf16.msra.mxu0 %v2098
    %2759 = vmatprep.subr.bf16.mxu0 %v2091
    %2760 = vmatpush1.bf16.msra.mxu0 %v2090
    %2761 = vmatprep.subr.bf16.mxu0 %v2083
    %2762 = vmatpush1.bf16.msra.mxu0 %v2082
    %2763 = vmatprep.subr.bf16.mxu0 %v2203
    %2764 = vmatpush2.bf16.msra.mxu0 %v2202
    %2765 = vmatprep.subr.bf16.mxu0 %v2195
    %2766 = vmatpush2.bf16.msra.mxu0 %v2194
    %2767 = vmatprep.subr.bf16.mxu0 %v2187
    %2768 = vmatpush2.bf16.msra.mxu0 %v2186
    %2769 = vmatprep.subr.bf16.mxu0 %v2179
    %2770 = vmatpush2.bf16.msra.mxu0 %v2178
    %2771 = vmatprep.subr.bf16.mxu0 %v2171
    %2772 = vmatpush2.bf16.msra.mxu0 %v2170
    %2773 = vmatprep.subr.bf16.mxu0 %v2163
    %2774 = vmatpush2.bf16.msra.mxu0 %v2162
    %2775 = vmatprep.subr.bf16.mxu0 %v2155
    %2776 = vmatpush2.bf16.msra.mxu0 %v2154
    %2777 = vmatprep.subr.bf16.mxu0 %v2147
    %2778 = vmatpush2.bf16.msra.mxu0 %v2146
    %2779 = vmatprep.mubr.bf16.mxu0 %v1137
    %2780 = vmatmul.mubr.bf16.gmra.mxu0 %v1136
    %v2781 = vpop.f32.mrf.mxu0
    %v2782 = vadd.f32 %v2741, %v2781
    %v2783 = vpop.f32.mrf.mxu0
    %v2784 = vadd.f32 %v2743, %v2783
    %v2785 = vpop.f32.mrf.mxu0
    %v2786 = vpop.f32.mrf.mxu0
    %2787 = vdwg.mxu0
    %v2788 = vmax.f32 %v2536, 0.0
    %v2789 = vmax.f32 %v2538, 0.0
    %v2790 = vmax.f32 %v2618, 0.0
    %v2791 = vmax.f32 %v2620, 0.0
    %v2792 = vmax.f32 %v2700, 0.0
    %v2793 = vmax.f32 %v2702, 0.0
    %v2794 = vmax.f32 %v2782, 0.0
    %v2795 = vmax.f32 %v2784, 0.0
    %s2796 = smul.u32 4, 128
    %s2797 = smul.u32 %s2796, 7
    %s2798 = sshll.u32 %s2797, 4
    %2799 = dma.done %s156, %s2798
    %v2800 = vld [vmem:[#allocation3] sm:$0xff]
    %v2801 = vld [vmem:[#allocation3 + $0x8] sm:$0xff]
    %v2802 = vld [vmem:[#allocation3 + $0x10] sm:$0xff]
    %v2803 = vld [vmem:[#allocation3 + $0x18] sm:$0xf]
    %v2804 = vld [vmem:[#allocation3 + $0x1c] sm:$0xff]
    %v2805 = vld [vmem:[#allocation3 + $0x24] sm:$0xff]
    %v2806 = vld [vmem:[#allocation3 + $0x2c] sm:$0xff]
    %v2807 = vld [vmem:[#allocation3 + $0x34] sm:$0xf]
    %v2808 = vld [vmem:[#allocation3 + $0x38] sm:$0xff]
    %v2809 = vld [vmem:[#allocation3 + $0x40] sm:$0xff]
    %v2810 = vld [vmem:[#allocation3 + $0x48] sm:$0xff]
    %v2811 = vld [vmem:[#allocation3 + $0x50] sm:$0xf]
    %v2812 = vld [vmem:[#allocation3 + $0x54] sm:$0xff]
    %v2813 = vld [vmem:[#allocation3 + $0x5c] sm:$0xff]
    %v2814 = vld [vmem:[#allocation3 + $0x64] sm:$0xff]
    %v2815 = vld [vmem:[#allocation3 + $0x6c] sm:$0xf]
    %v2816 = vld [vmem:[#allocation3 + $0x70] sm:$0xff]
    %v2817 = vld [vmem:[#allocation3 + $0x78] sm:$0xff]
    %v2818 = vld [vmem:[#allocation3 + $0x80] sm:$0xff]
    %v2819 = vld [vmem:[#allocation3 + $0x88] sm:$0xf]
    %v2820 = vld [vmem:[#allocation3 + $0x8c] sm:$0xff]
    %v2821 = vld [vmem:[#allocation3 + $0x94] sm:$0xff]
    %v2822 = vld [vmem:[#allocation3 + $0x9c] sm:$0xff]
    %v2823 = vld [vmem:[#allocation3 + $0xa4] sm:$0xf]
    %v2824 = vld [vmem:[#allocation3 + $0xa8] sm:$0xff]
    %v2825 = vld [vmem:[#allocation3 + $0xb0] sm:$0xff]
    %v2826 = vld [vmem:[#allocation3 + $0xb8] sm:$0xff]
    %v2827 = vld [vmem:[#allocation3 + $0xc0] sm:$0xf]
    %v2828 = vld [vmem:[#allocation3 + $0xc4] sm:$0xff]
    %v2829 = vld [vmem:[#allocation3 + $0xcc] sm:$0xff]
    %v2830 = vld [vmem:[#allocation3 + $0xd4] sm:$0xff]
    %v2831 = vld [vmem:[#allocation3 + $0xdc] sm:$0xf]
    %v2832 = vld [vmem:[#allocation3 + $0xe0] sm:$0xff]
    %v2833 = vld [vmem:[#allocation3 + $0xe8] sm:$0xff]
    %v2834 = vld [vmem:[#allocation3 + $0xf0] sm:$0xff]
    %v2835 = vld [vmem:[#allocation3 + $0xf8] sm:$0xf]
    %v2836 = vld [vmem:[#allocation3 + $0xfc] sm:$0xff]
    %v2837 = vld [vmem:[#allocation3 + $0x104] sm:$0xff]
    %v2838 = vld [vmem:[#allocation3 + $0x10c] sm:$0xff]
    %v2839 = vld [vmem:[#allocation3 + $0x114] sm:$0xf]
    %v2840 = vld [vmem:[#allocation3 + $0x118] sm:$0xff]
    %v2841 = vld [vmem:[#allocation3 + $0x120] sm:$0xff]
    %v2842 = vld [vmem:[#allocation3 + $0x128] sm:$0xff]
    %v2843 = vld [vmem:[#allocation3 + $0x130] sm:$0xf]
    %v2844 = vld [vmem:[#allocation3 + $0x134] sm:$0xff]
    %v2845 = vld [vmem:[#allocation3 + $0x13c] sm:$0xff]
    %v2846 = vld [vmem:[#allocation3 + $0x144] sm:$0xff]
    %v2847 = vld [vmem:[#allocation3 + $0x14c] sm:$0xf]
    %v2848 = vld [vmem:[#allocation3 + $0x150] sm:$0xff]
    %v2849 = vld [vmem:[#allocation3 + $0x158] sm:$0xff]
    %v2850 = vld [vmem:[#allocation3 + $0x160] sm:$0xff]
    %v2851 = vld [vmem:[#allocation3 + $0x168] sm:$0xf]
    %v2852 = vld [vmem:[#allocation3 + $0x16c] sm:$0xff]
    %v2853 = vld [vmem:[#allocation3 + $0x174] sm:$0xff]
    %v2854 = vld [vmem:[#allocation3 + $0x17c] sm:$0xff]
    %v2855 = vld [vmem:[#allocation3 + $0x184] sm:$0xf]
    %v2856 = vld [vmem:[#allocation3 + $0x188] sm:$0xff]
    %v2857 = vld [vmem:[#allocation3 + $0x190] sm:$0xff]
    %v2858 = vld [vmem:[#allocation3 + $0x198] sm:$0xff]
    %v2859 = vld [vmem:[#allocation3 + $0x1a0] sm:$0xf]
    %v2860 = vld [vmem:[#allocation3 + $0x1a4] sm:$0xff]
    %v2861 = vld [vmem:[#allocation3 + $0x1ac] sm:$0xff]
    %v2862 = vld [vmem:[#allocation3 + $0x1b4] sm:$0xff]
    %v2863 = vld [vmem:[#allocation3 + $0x1bc] sm:$0xf]
    %v2864 = vld [vmem:[#allocation3 + $0x1c0] sm:$0xff]
    %v2865 = vld [vmem:[#allocation3 + $0x1c8] sm:$0xff]
    %v2866 = vld [vmem:[#allocation3 + $0x1d0] sm:$0xff]
    %v2867 = vld [vmem:[#allocation3 + $0x1d8] sm:$0xf]
    %v2868 = vld [vmem:[#allocation3 + $0x1dc] sm:$0xff]
    %v2869 = vld [vmem:[#allocation3 + $0x1e4] sm:$0xff]
    %v2870 = vld [vmem:[#allocation3 + $0x1ec] sm:$0xff]
    %v2871 = vld [vmem:[#allocation3 + $0x1f4] sm:$0xf]
    %v2872 = vld [vmem:[#allocation3 + $0x1f8] sm:$0xff]
    %v2873 = vld [vmem:[#allocation3 + $0x200] sm:$0xff]
    %v2874 = vld [vmem:[#allocation3 + $0x208] sm:$0xff]
    %v2875 = vld [vmem:[#allocation3 + $0x210] sm:$0xf]
    %v2876 = vld [vmem:[#allocation3 + $0x214] sm:$0xff]
    %v2877 = vld [vmem:[#allocation3 + $0x21c] sm:$0xff]
    %v2878 = vld [vmem:[#allocation3 + $0x224] sm:$0xff]
    %v2879 = vld [vmem:[#allocation3 + $0x22c] sm:$0xf]
    %v2880 = vld [vmem:[#allocation3 + $0x230] sm:$0xff]
    %v2881 = vld [vmem:[#allocation3 + $0x238] sm:$0xff]
    %v2882 = vld [vmem:[#allocation3 + $0x240] sm:$0xff]
    %v2883 = vld [vmem:[#allocation3 + $0x248] sm:$0xf]
    %v2884 = vld [vmem:[#allocation3 + $0x24c] sm:$0xff]
    %v2885 = vld [vmem:[#allocation3 + $0x254] sm:$0xff]
    %v2886 = vld [vmem:[#allocation3 + $0x25c] sm:$0xff]
    %v2887 = vld [vmem:[#allocation3 + $0x264] sm:$0xf]
    %v2888 = vld [vmem:[#allocation3 + $0x268] sm:$0xff]
    %v2889 = vld [vmem:[#allocation3 + $0x270] sm:$0xff]
    %v2890 = vld [vmem:[#allocation3 + $0x278] sm:$0xff]
    %v2891 = vld [vmem:[#allocation3 + $0x280] sm:$0xf]
    %v2892 = vld [vmem:[#allocation3 + $0x284] sm:$0xff]
    %v2893 = vld [vmem:[#allocation3 + $0x28c] sm:$0xff]
    %v2894 = vld [vmem:[#allocation3 + $0x294] sm:$0xff]
    %v2895 = vld [vmem:[#allocation3 + $0x29c] sm:$0xf]
    %v2896 = vld [vmem:[#allocation3 + $0x2a0] sm:$0xff]
    %v2897 = vld [vmem:[#allocation3 + $0x2a8] sm:$0xff]
    %v2898 = vld [vmem:[#allocation3 + $0x2b0] sm:$0xff]
    %v2899 = vld [vmem:[#allocation3 + $0x2b8] sm:$0xf]
    %v2900 = vld [vmem:[#allocation3 + $0x2bc] sm:$0xff]
    %v2901 = vld [vmem:[#allocation3 + $0x2c4] sm:$0xff]
    %v2902 = vld [vmem:[#allocation3 + $0x2cc] sm:$0xff]
    %v2903 = vld [vmem:[#allocation3 + $0x2d4] sm:$0xf]
    %v2904 = vld [vmem:[#allocation3 + $0x2d8] sm:$0xff]
    %v2905 = vld [vmem:[#allocation3 + $0x2e0] sm:$0xff]
    %v2906 = vld [vmem:[#allocation3 + $0x2e8] sm:$0xff]
    %v2907 = vld [vmem:[#allocation3 + $0x2f0] sm:$0xf]
    %v2908 = vld [vmem:[#allocation3 + $0x2f4] sm:$0xff]
    %v2909 = vld [vmem:[#allocation3 + $0x2fc] sm:$0xff]
    %v2910 = vld [vmem:[#allocation3 + $0x304] sm:$0xff]
    %v2911 = vld [vmem:[#allocation3 + $0x30c] sm:$0xf]
    %v2912 = vld [vmem:[#allocation3 + $0x310] sm:$0xff]
    %v2913 = vld [vmem:[#allocation3 + $0x318] sm:$0xff]
    %v2914 = vld [vmem:[#allocation3 + $0x320] sm:$0xff]
    %v2915 = vld [vmem:[#allocation3 + $0x328] sm:$0xf]
    %v2916 = vld [vmem:[#allocation3 + $0x32c] sm:$0xff]
    %v2917 = vld [vmem:[#allocation3 + $0x334] sm:$0xff]
    %v2918 = vld [vmem:[#allocation3 + $0x33c] sm:$0xff]
    %v2919 = vld [vmem:[#allocation3 + $0x344] sm:$0xf]
    %v2920 = vld [vmem:[#allocation3 + $0x348] sm:$0xff]
    %v2921 = vld [vmem:[#allocation3 + $0x350] sm:$0xff]
    %v2922 = vld [vmem:[#allocation3 + $0x358] sm:$0xff]
    %v2923 = vld [vmem:[#allocation3 + $0x360] sm:$0xf]
    %v2924 = vld [vmem:[#allocation3 + $0x364] sm:$0xff]
    %v2925 = vld [vmem:[#allocation3 + $0x36c] sm:$0xff]
    %v2926 = vld [vmem:[#allocation3 + $0x374] sm:$0xff]
    %v2927 = vld [vmem:[#allocation3 + $0x37c] sm:$0xf]
    %v2928 = vld [vmem:[#allocation3 + $0x380] sm:$0xff]
    %v2929 = vld [vmem:[#allocation3 + $0x388] sm:$0xff]
    %v2930 = vld [vmem:[#allocation3 + $0x390] sm:$0xff]
    %v2931 = vld [vmem:[#allocation3 + $0x398] sm:$0xf]
    %v2932 = vld [vmem:[#allocation3 + $0x39c] sm:$0xff]
    %v2933 = vld [vmem:[#allocation3 + $0x3a4] sm:$0xff]
    %v2934 = vld [vmem:[#allocation3 + $0x3ac] sm:$0xff]
    %v2935 = vld [vmem:[#allocation3 + $0x3b4] sm:$0xf]
    %v2936 = vld [vmem:[#allocation3 + $0x3b8] sm:$0xff]
    %v2937 = vld [vmem:[#allocation3 + $0x3c0] sm:$0xff]
    %v2938 = vld [vmem:[#allocation3 + $0x3c8] sm:$0xff]
    %v2939 = vld [vmem:[#allocation3 + $0x3d0] sm:$0xf]
    %v2940 = vld [vmem:[#allocation3 + $0x3d4] sm:$0xff]
    %v2941 = vld [vmem:[#allocation3 + $0x3dc] sm:$0xff]
    %v2942 = vld [vmem:[#allocation3 + $0x3e4] sm:$0xff]
    %v2943 = vld [vmem:[#allocation3 + $0x3ec] sm:$0xf]
    %v2944 = vld [vmem:[#allocation3 + $0x3f0] sm:$0xff]
    %v2945 = vld [vmem:[#allocation3 + $0x3f8] sm:$0xff]
    %v2946 = vld [vmem:[#allocation3 + $0x400] sm:$0xff]
    %v2947 = vld [vmem:[#allocation3 + $0x408] sm:$0xf]
    %v2948 = vld [vmem:[#allocation3 + $0x40c] sm:$0xff]
    %v2949 = vld [vmem:[#allocation3 + $0x414] sm:$0xff]
    %v2950 = vld [vmem:[#allocation3 + $0x41c] sm:$0xff]
    %v2951 = vld [vmem:[#allocation3 + $0x424] sm:$0xf]
    %v2952 = vld [vmem:[#allocation3 + $0x428] sm:$0xff]
    %v2953 = vld [vmem:[#allocation3 + $0x430] sm:$0xff]
    %v2954 = vld [vmem:[#allocation3 + $0x438] sm:$0xff]
    %v2955 = vld [vmem:[#allocation3 + $0x440] sm:$0xf]
    %v2956 = vld [vmem:[#allocation3 + $0x444] sm:$0xff]
    %v2957 = vld [vmem:[#allocation3 + $0x44c] sm:$0xff]
    %v2958 = vld [vmem:[#allocation3 + $0x454] sm:$0xff]
    %v2959 = vld [vmem:[#allocation3 + $0x45c] sm:$0xf]
    %v2960 = vld [vmem:[#allocation3 + $0x460] sm:$0xff]
    %v2961 = vld [vmem:[#allocation3 + $0x468] sm:$0xff]
    %v2962 = vld [vmem:[#allocation3 + $0x470] sm:$0xff]
    %v2963 = vld [vmem:[#allocation3 + $0x478] sm:$0xf]
    %v2964 = vld [vmem:[#allocation3 + $0x47c] sm:$0xff]
    %v2965 = vld [vmem:[#allocation3 + $0x484] sm:$0xff]
    %v2966 = vld [vmem:[#allocation3 + $0x48c] sm:$0xff]
    %v2967 = vld [vmem:[#allocation3 + $0x494] sm:$0xf]
    %v2968 = vld [vmem:[#allocation3 + $0x498] sm:$0xff]
    %v2969 = vld [vmem:[#allocation3 + $0x4a0] sm:$0xff]
    %v2970 = vld [vmem:[#allocation3 + $0x4a8] sm:$0xff]
    %v2971 = vld [vmem:[#allocation3 + $0x4b0] sm:$0xf]
    %v2972 = vld [vmem:[#allocation3 + $0x4b4] sm:$0xff]
    %v2973 = vld [vmem:[#allocation3 + $0x4bc] sm:$0xff]
    %v2974 = vld [vmem:[#allocation3 + $0x4c4] sm:$0xff]
    %v2975 = vld [vmem:[#allocation3 + $0x4cc] sm:$0xf]
    %v2976 = vld [vmem:[#allocation3 + $0x4d0] sm:$0xff]
    %v2977 = vld [vmem:[#allocation3 + $0x4d8] sm:$0xff]
    %v2978 = vld [vmem:[#allocation3 + $0x4e0] sm:$0xff]
    %v2979 = vld [vmem:[#allocation3 + $0x4e8] sm:$0xf]
    %v2980 = vld [vmem:[#allocation3 + $0x4ec] sm:$0xff]
    %v2981 = vld [vmem:[#allocation3 + $0x4f4] sm:$0xff]
    %v2982 = vld [vmem:[#allocation3 + $0x4fc] sm:$0xff]
    %v2983 = vld [vmem:[#allocation3 + $0x504] sm:$0xf]
    %v2984 = vld [vmem:[#allocation3 + $0x508] sm:$0xff]
    %v2985 = vld [vmem:[#allocation3 + $0x510] sm:$0xff]
    %v2986 = vld [vmem:[#allocation3 + $0x518] sm:$0xff]
    %v2987 = vld [vmem:[#allocation3 + $0x520] sm:$0xf]
    %v2988 = vld [vmem:[#allocation3 + $0x524] sm:$0xff]
    %v2989 = vld [vmem:[#allocation3 + $0x52c] sm:$0xff]
    %v2990 = vld [vmem:[#allocation3 + $0x534] sm:$0xff]
    %v2991 = vld [vmem:[#allocation3 + $0x53c] sm:$0xf]
    %v2992 = vld [vmem:[#allocation3 + $0x540] sm:$0xff]
    %v2993 = vld [vmem:[#allocation3 + $0x548] sm:$0xff]
    %v2994 = vld [vmem:[#allocation3 + $0x550] sm:$0xff]
    %v2995 = vld [vmem:[#allocation3 + $0x558] sm:$0xf]
    %v2996 = vld [vmem:[#allocation3 + $0x55c] sm:$0xff]
    %v2997 = vld [vmem:[#allocation3 + $0x564] sm:$0xff]
    %v2998 = vld [vmem:[#allocation3 + $0x56c] sm:$0xff]
    %v2999 = vld [vmem:[#allocation3 + $0x574] sm:$0xf]
    %v3000 = vld [vmem:[#allocation3 + $0x578] sm:$0xff]
    %v3001 = vld [vmem:[#allocation3 + $0x580] sm:$0xff]
    %v3002 = vld [vmem:[#allocation3 + $0x588] sm:$0xff]
    %v3003 = vld [vmem:[#allocation3 + $0x590] sm:$0xf]
    %v3004 = vld [vmem:[#allocation3 + $0x594] sm:$0xff]
    %v3005 = vld [vmem:[#allocation3 + $0x59c] sm:$0xff]
    %v3006 = vld [vmem:[#allocation3 + $0x5a4] sm:$0xff]
    %v3007 = vld [vmem:[#allocation3 + $0x5ac] sm:$0xf]
    %v3008 = vld [vmem:[#allocation3 + $0x5b0] sm:$0xff]
    %v3009 = vld [vmem:[#allocation3 + $0x5b8] sm:$0xff]
    %v3010 = vld [vmem:[#allocation3 + $0x5c0] sm:$0xff]
    %v3011 = vld [vmem:[#allocation3 + $0x5c8] sm:$0xf]
    %v3012 = vld [vmem:[#allocation3 + $0x5cc] sm:$0xff]
    %v3013 = vld [vmem:[#allocation3 + $0x5d4] sm:$0xff]
    %v3014 = vld [vmem:[#allocation3 + $0x5dc] sm:$0xff]
    %v3015 = vld [vmem:[#allocation3 + $0x5e4] sm:$0xf]
    %v3016 = vld [vmem:[#allocation3 + $0x5e8] sm:$0xff]
    %v3017 = vld [vmem:[#allocation3 + $0x5f0] sm:$0xff]
    %v3018 = vld [vmem:[#allocation3 + $0x5f8] sm:$0xff]
    %v3019 = vld [vmem:[#allocation3 + $0x600] sm:$0xf]
    %v3020 = vld [vmem:[#allocation3 + $0x604] sm:$0xff]
    %v3021 = vld [vmem:[#allocation3 + $0x60c] sm:$0xff]
    %v3022 = vld [vmem:[#allocation3 + $0x614] sm:$0xff]
    %v3023 = vld [vmem:[#allocation3 + $0x61c] sm:$0xf]
    %v3024 = vld [vmem:[#allocation3 + $0x620] sm:$0xff]
    %v3025 = vld [vmem:[#allocation3 + $0x628] sm:$0xff]
    %v3026 = vld [vmem:[#allocation3 + $0x630] sm:$0xff]
    %v3027 = vld [vmem:[#allocation3 + $0x638] sm:$0xf]
    %v3028 = vld [vmem:[#allocation3 + $0x63c] sm:$0xff]
    %v3029 = vld [vmem:[#allocation3 + $0x644] sm:$0xff]
    %v3030 = vld [vmem:[#allocation3 + $0x64c] sm:$0xff]
    %v3031 = vld [vmem:[#allocation3 + $0x654] sm:$0xf]
    %v3032 = vld [vmem:[#allocation3 + $0x658] sm:$0xff]
    %v3033 = vld [vmem:[#allocation3 + $0x660] sm:$0xff]
    %v3034 = vld [vmem:[#allocation3 + $0x668] sm:$0xff]
    %v3035 = vld [vmem:[#allocation3 + $0x670] sm:$0xf]
    %v3036 = vld [vmem:[#allocation3 + $0x674] sm:$0xff]
    %v3037 = vld [vmem:[#allocation3 + $0x67c] sm:$0xff]
    %v3038 = vld [vmem:[#allocation3 + $0x684] sm:$0xff]
    %v3039 = vld [vmem:[#allocation3 + $0x68c] sm:$0xf]
    %v3040 = vld [vmem:[#allocation3 + $0x690] sm:$0xff]
    %v3041 = vld [vmem:[#allocation3 + $0x698] sm:$0xff]
    %v3042 = vld [vmem:[#allocation3 + $0x6a0] sm:$0xff]
    %v3043 = vld [vmem:[#allocation3 + $0x6a8] sm:$0xf]
    %v3044 = vld [vmem:[#allocation3 + $0x6ac] sm:$0xff]
    %v3045 = vld [vmem:[#allocation3 + $0x6b4] sm:$0xff]
    %v3046 = vld [vmem:[#allocation3 + $0x6bc] sm:$0xff]
    %v3047 = vld [vmem:[#allocation3 + $0x6c4] sm:$0xf]
    %v3048 = vld [vmem:[#allocation3 + $0x6c8] sm:$0xff]
    %v3049 = vld [vmem:[#allocation3 + $0x6d0] sm:$0xff]
    %v3050 = vld [vmem:[#allocation3 + $0x6d8] sm:$0xff]
    %v3051 = vld [vmem:[#allocation3 + $0x6e0] sm:$0xf]
    %v3052 = vld [vmem:[#allocation3 + $0x6e4] sm:$0xff]
    %v3053 = vld [vmem:[#allocation3 + $0x6ec] sm:$0xff]
    %v3054 = vld [vmem:[#allocation3 + $0x6f4] sm:$0xff]
    %v3055 = vld [vmem:[#allocation3 + $0x6fc] sm:$0xf]
    %v3056 = vld [vmem:[#allocation3 + $0x700] sm:$0xff]
    %v3057 = vld [vmem:[#allocation3 + $0x708] sm:$0xff]
    %v3058 = vld [vmem:[#allocation3 + $0x710] sm:$0xff]
    %v3059 = vld [vmem:[#allocation3 + $0x718] sm:$0xf]
    %v3060 = vld [vmem:[#allocation3 + $0x71c] sm:$0xff]
    %v3061 = vld [vmem:[#allocation3 + $0x724] sm:$0xff]
    %v3062 = vld [vmem:[#allocation3 + $0x72c] sm:$0xff]
    %v3063 = vld [vmem:[#allocation3 + $0x734] sm:$0xf]
    %v3064 = vld [vmem:[#allocation3 + $0x738] sm:$0xff]
    %v3065 = vld [vmem:[#allocation3 + $0x740] sm:$0xff]
    %v3066 = vld [vmem:[#allocation3 + $0x748] sm:$0xff]
    %v3067 = vld [vmem:[#allocation3 + $0x750] sm:$0xf]
    %v3068 = vld [vmem:[#allocation3 + $0x754] sm:$0xff]
    %v3069 = vld [vmem:[#allocation3 + $0x75c] sm:$0xff]
    %v3070 = vld [vmem:[#allocation3 + $0x764] sm:$0xff]
    %v3071 = vld [vmem:[#allocation3 + $0x76c] sm:$0xf]
    %v3072 = vld [vmem:[#allocation3 + $0x770] sm:$0xff]
    %v3073 = vld [vmem:[#allocation3 + $0x778] sm:$0xff]
    %v3074 = vld [vmem:[#allocation3 + $0x780] sm:$0xff]
    %v3075 = vld [vmem:[#allocation3 + $0x788] sm:$0xf]
    %v3076 = vld [vmem:[#allocation3 + $0x78c] sm:$0xff]
    %v3077 = vld [vmem:[#allocation3 + $0x794] sm:$0xff]
    %v3078 = vld [vmem:[#allocation3 + $0x79c] sm:$0xff]
    %v3079 = vld [vmem:[#allocation3 + $0x7a4] sm:$0xf]
    %v3080 = vld [vmem:[#allocation3 + $0x7a8] sm:$0xff]
    %v3081 = vld [vmem:[#allocation3 + $0x7b0] sm:$0xff]
    %v3082 = vld [vmem:[#allocation3 + $0x7b8] sm:$0xff]
    %v3083 = vld [vmem:[#allocation3 + $0x7c0] sm:$0xf]
    %v3084 = vld [vmem:[#allocation3 + $0x7c4] sm:$0xff]
    %v3085 = vld [vmem:[#allocation3 + $0x7cc] sm:$0xff]
    %v3086 = vld [vmem:[#allocation3 + $0x7d4] sm:$0xff]
    %v3087 = vld [vmem:[#allocation3 + $0x7dc] sm:$0xf]
    %v3088 = vld [vmem:[#allocation3 + $0x7e0] sm:$0xff]
    %v3089 = vld [vmem:[#allocation3 + $0x7e8] sm:$0xff]
    %v3090 = vld [vmem:[#allocation3 + $0x7f0] sm:$0xff]
    %v3091 = vld [vmem:[#allocation3 + $0x7f8] sm:$0xf]
    %v3092 = vld [vmem:[#allocation3 + $0x7fc] sm:$0xff]
    %v3093 = vld [vmem:[#allocation3 + $0x804] sm:$0xff]
    %v3094 = vld [vmem:[#allocation3 + $0x80c] sm:$0xff]
    %v3095 = vld [vmem:[#allocation3 + $0x814] sm:$0xf]
    %v3096 = vld [vmem:[#allocation3 + $0x818] sm:$0xff]
    %v3097 = vld [vmem:[#allocation3 + $0x820] sm:$0xff]
    %v3098 = vld [vmem:[#allocation3 + $0x828] sm:$0xff]
    %v3099 = vld [vmem:[#allocation3 + $0x830] sm:$0xf]
    %v3100 = vld [vmem:[#allocation3 + $0x834] sm:$0xff]
    %v3101 = vld [vmem:[#allocation3 + $0x83c] sm:$0xff]
    %v3102 = vld [vmem:[#allocation3 + $0x844] sm:$0xff]
    %v3103 = vld [vmem:[#allocation3 + $0x84c] sm:$0xf]
    %v3104 = vld [vmem:[#allocation3 + $0x850] sm:$0xff]
    %v3105 = vld [vmem:[#allocation3 + $0x858] sm:$0xff]
    %v3106 = vld [vmem:[#allocation3 + $0x860] sm:$0xff]
    %v3107 = vld [vmem:[#allocation3 + $0x868] sm:$0xf]
    %v3108 = vld [vmem:[#allocation3 + $0x86c] sm:$0xff]
    %v3109 = vld [vmem:[#allocation3 + $0x874] sm:$0xff]
    %v3110 = vld [vmem:[#allocation3 + $0x87c] sm:$0xff]
    %v3111 = vld [vmem:[#allocation3 + $0x884] sm:$0xf]
    %v3112 = vld [vmem:[#allocation3 + $0x888] sm:$0xff]
    %v3113 = vld [vmem:[#allocation3 + $0x890] sm:$0xff]
    %v3114 = vld [vmem:[#allocation3 + $0x898] sm:$0xff]
    %v3115 = vld [vmem:[#allocation3 + $0x8a0] sm:$0xf]
    %v3116 = vld [vmem:[#allocation3 + $0x8a4] sm:$0xff]
    %v3117 = vld [vmem:[#allocation3 + $0x8ac] sm:$0xff]
    %v3118 = vld [vmem:[#allocation3 + $0x8b4] sm:$0xff]
    %v3119 = vld [vmem:[#allocation3 + $0x8bc] sm:$0xf]
    %v3120 = vld [vmem:[#allocation3 + $0x8c0] sm:$0xff]
    %v3121 = vld [vmem:[#allocation3 + $0x8c8] sm:$0xff]
    %v3122 = vld [vmem:[#allocation3 + $0x8d0] sm:$0xff]
    %v3123 = vld [vmem:[#allocation3 + $0x8d8] sm:$0xf]
    %v3124 = vld [vmem:[#allocation3 + $0x8dc] sm:$0xff]
    %v3125 = vld [vmem:[#allocation3 + $0x8e4] sm:$0xff]
    %v3126 = vld [vmem:[#allocation3 + $0x8ec] sm:$0xff]
    %v3127 = vld [vmem:[#allocation3 + $0x8f4] sm:$0xf]
    %v3128 = vld [vmem:[#allocation3 + $0x8f8] sm:$0xff]
    %v3129 = vld [vmem:[#allocation3 + $0x900] sm:$0xff]
    %v3130 = vld [vmem:[#allocation3 + $0x908] sm:$0xff]
    %v3131 = vld [vmem:[#allocation3 + $0x910] sm:$0xf]
    %v3132 = vld [vmem:[#allocation3 + $0x914] sm:$0xff]
    %v3133 = vld [vmem:[#allocation3 + $0x91c] sm:$0xff]
    %v3134 = vld [vmem:[#allocation3 + $0x924] sm:$0xff]
    %v3135 = vld [vmem:[#allocation3 + $0x92c] sm:$0xf]
    %v3136 = vld [vmem:[#allocation3 + $0x930] sm:$0xff]
    %v3137 = vld [vmem:[#allocation3 + $0x938] sm:$0xff]
    %v3138 = vld [vmem:[#allocation3 + $0x940] sm:$0xff]
    %v3139 = vld [vmem:[#allocation3 + $0x948] sm:$0xf]
    %v3140 = vld [vmem:[#allocation3 + $0x94c] sm:$0xff]
    %v3141 = vld [vmem:[#allocation3 + $0x954] sm:$0xff]
    %v3142 = vld [vmem:[#allocation3 + $0x95c] sm:$0xff]
    %v3143 = vld [vmem:[#allocation3 + $0x964] sm:$0xf]
    %v3144 = vld [vmem:[#allocation3 + $0x968] sm:$0xff]
    %v3145 = vld [vmem:[#allocation3 + $0x970] sm:$0xff]
    %v3146 = vld [vmem:[#allocation3 + $0x978] sm:$0xff]
    %v3147 = vld [vmem:[#allocation3 + $0x980] sm:$0xf]
    %v3148 = vld [vmem:[#allocation3 + $0x984] sm:$0xff]
    %v3149 = vld [vmem:[#allocation3 + $0x98c] sm:$0xff]
    %v3150 = vld [vmem:[#allocation3 + $0x994] sm:$0xff]
    %v3151 = vld [vmem:[#allocation3 + $0x99c] sm:$0xf]
    %v3152 = vld [vmem:[#allocation3 + $0x9a0] sm:$0xff]
    %v3153 = vld [vmem:[#allocation3 + $0x9a8] sm:$0xff]
    %v3154 = vld [vmem:[#allocation3 + $0x9b0] sm:$0xff]
    %v3155 = vld [vmem:[#allocation3 + $0x9b8] sm:$0xf]
    %v3156 = vld [vmem:[#allocation3 + $0x9bc] sm:$0xff]
    %v3157 = vld [vmem:[#allocation3 + $0x9c4] sm:$0xff]
    %v3158 = vld [vmem:[#allocation3 + $0x9cc] sm:$0xff]
    %v3159 = vld [vmem:[#allocation3 + $0x9d4] sm:$0xf]
    %v3160 = vld [vmem:[#allocation3 + $0x9d8] sm:$0xff]
    %v3161 = vld [vmem:[#allocation3 + $0x9e0] sm:$0xff]
    %v3162 = vld [vmem:[#allocation3 + $0x9e8] sm:$0xff]
    %v3163 = vld [vmem:[#allocation3 + $0x9f0] sm:$0xf]
    %v3164 = vld [vmem:[#allocation3 + $0x9f4] sm:$0xff]
    %v3165 = vld [vmem:[#allocation3 + $0x9fc] sm:$0xff]
    %v3166 = vld [vmem:[#allocation3 + $0xa04] sm:$0xff]
    %v3167 = vld [vmem:[#allocation3 + $0xa0c] sm:$0xf]
    %v3168 = vld [vmem:[#allocation3 + $0xa10] sm:$0xff]
    %v3169 = vld [vmem:[#allocation3 + $0xa18] sm:$0xff]
    %v3170 = vld [vmem:[#allocation3 + $0xa20] sm:$0xff]
    %v3171 = vld [vmem:[#allocation3 + $0xa28] sm:$0xf]
    %v3172 = vld [vmem:[#allocation3 + $0xa2c] sm:$0xff]
    %v3173 = vld [vmem:[#allocation3 + $0xa34] sm:$0xff]
    %v3174 = vld [vmem:[#allocation3 + $0xa3c] sm:$0xff]
    %v3175 = vld [vmem:[#allocation3 + $0xa44] sm:$0xf]
    %v3176 = vld [vmem:[#allocation3 + $0xa48] sm:$0xff]
    %v3177 = vld [vmem:[#allocation3 + $0xa50] sm:$0xff]
    %v3178 = vld [vmem:[#allocation3 + $0xa58] sm:$0xff]
    %v3179 = vld [vmem:[#allocation3 + $0xa60] sm:$0xf]
    %v3180 = vld [vmem:[#allocation3 + $0xa64] sm:$0xff]
    %v3181 = vld [vmem:[#allocation3 + $0xa6c] sm:$0xff]
    %v3182 = vld [vmem:[#allocation3 + $0xa74] sm:$0xff]
    %v3183 = vld [vmem:[#allocation3 + $0xa7c] sm:$0xf]
    %v3184 = vld [vmem:[#allocation3 + $0xa80] sm:$0xff]
    %v3185 = vld [vmem:[#allocation3 + $0xa88] sm:$0xff]
    %v3186 = vld [vmem:[#allocation3 + $0xa90] sm:$0xff]
    %v3187 = vld [vmem:[#allocation3 + $0xa98] sm:$0xf]
    %v3188 = vld [vmem:[#allocation3 + $0xa9c] sm:$0xff]
    %v3189 = vld [vmem:[#allocation3 + $0xaa4] sm:$0xff]
    %v3190 = vld [vmem:[#allocation3 + $0xaac] sm:$0xff]
    %v3191 = vld [vmem:[#allocation3 + $0xab4] sm:$0xf]
    %v3192 = vld [vmem:[#allocation3 + $0xab8] sm:$0xff]
    %v3193 = vld [vmem:[#allocation3 + $0xac0] sm:$0xff]
    %v3194 = vld [vmem:[#allocation3 + $0xac8] sm:$0xff]
    %v3195 = vld [vmem:[#allocation3 + $0xad0] sm:$0xf]
    %v3196 = vld [vmem:[#allocation3 + $0xad4] sm:$0xff]
    %v3197 = vld [vmem:[#allocation3 + $0xadc] sm:$0xff]
    %v3198 = vld [vmem:[#allocation3 + $0xae4] sm:$0xff]
    %v3199 = vld [vmem:[#allocation3 + $0xaec] sm:$0xf]
    %v3200 = vld [vmem:[#allocation3 + $0xaf0] sm:$0xff]
    %v3201 = vld [vmem:[#allocation3 + $0xaf8] sm:$0xff]
    %v3202 = vld [vmem:[#allocation3 + $0xb00] sm:$0xff]
    %v3203 = vld [vmem:[#allocation3 + $0xb08] sm:$0xf]
    %v3204 = vld [vmem:[#allocation3 + $0xb0c] sm:$0xff]
    %v3205 = vld [vmem:[#allocation3 + $0xb14] sm:$0xff]
    %v3206 = vld [vmem:[#allocation3 + $0xb1c] sm:$0xff]
    %v3207 = vld [vmem:[#allocation3 + $0xb24] sm:$0xf]
    %v3208 = vld [vmem:[#allocation3 + $0xb28] sm:$0xff]
    %v3209 = vld [vmem:[#allocation3 + $0xb30] sm:$0xff]
    %v3210 = vld [vmem:[#allocation3 + $0xb38] sm:$0xff]
    %v3211 = vld [vmem:[#allocation3 + $0xb40] sm:$0xf]
    %v3212 = vld [vmem:[#allocation3 + $0xb44] sm:$0xff]
    %v3213 = vld [vmem:[#allocation3 + $0xb4c] sm:$0xff]
    %v3214 = vld [vmem:[#allocation3 + $0xb54] sm:$0xff]
    %v3215 = vld [vmem:[#allocation3 + $0xb5c] sm:$0xf]
    %v3216 = vld [vmem:[#allocation3 + $0xb60] sm:$0xff]
    %v3217 = vld [vmem:[#allocation3 + $0xb68] sm:$0xff]
    %v3218 = vld [vmem:[#allocation3 + $0xb70] sm:$0xff]
    %v3219 = vld [vmem:[#allocation3 + $0xb78] sm:$0xf]
    %v3220 = vld [vmem:[#allocation3 + $0xb7c] sm:$0xff]
    %v3221 = vld [vmem:[#allocation3 + $0xb84] sm:$0xff]
    %v3222 = vld [vmem:[#allocation3 + $0xb8c] sm:$0xff]
    %v3223 = vld [vmem:[#allocation3 + $0xb94] sm:$0xf]
    %v3224 = vld [vmem:[#allocation3 + $0xb98] sm:$0xff]
    %v3225 = vld [vmem:[#allocation3 + $0xba0] sm:$0xff]
    %v3226 = vld [vmem:[#allocation3 + $0xba8] sm:$0xff]
    %v3227 = vld [vmem:[#allocation3 + $0xbb0] sm:$0xf]
    %v3228 = vld [vmem:[#allocation3 + $0xbb4] sm:$0xff]
    %v3229 = vld [vmem:[#allocation3 + $0xbbc] sm:$0xff]
    %v3230 = vld [vmem:[#allocation3 + $0xbc4] sm:$0xff]
    %v3231 = vld [vmem:[#allocation3 + $0xbcc] sm:$0xf]
    %v3232 = vld [vmem:[#allocation3 + $0xbd0] sm:$0xff]
    %v3233 = vld [vmem:[#allocation3 + $0xbd8] sm:$0xff]
    %v3234 = vld [vmem:[#allocation3 + $0xbe0] sm:$0xff]
    %v3235 = vld [vmem:[#allocation3 + $0xbe8] sm:$0xf]
    %v3236 = vld [vmem:[#allocation3 + $0xbec] sm:$0xff]
    %v3237 = vld [vmem:[#allocation3 + $0xbf4] sm:$0xff]
    %v3238 = vld [vmem:[#allocation3 + $0xbfc] sm:$0xff]
    %v3239 = vld [vmem:[#allocation3 + $0xc04] sm:$0xf]
    %v3240 = vld [vmem:[#allocation3 + $0xc08] sm:$0xff]
    %v3241 = vld [vmem:[#allocation3 + $0xc10] sm:$0xff]
    %v3242 = vld [vmem:[#allocation3 + $0xc18] sm:$0xff]
    %v3243 = vld [vmem:[#allocation3 + $0xc20] sm:$0xf]
    %v3244 = vld [vmem:[#allocation3 + $0xc24] sm:$0xff]
    %v3245 = vld [vmem:[#allocation3 + $0xc2c] sm:$0xff]
    %v3246 = vld [vmem:[#allocation3 + $0xc34] sm:$0xff]
    %v3247 = vld [vmem:[#allocation3 + $0xc3c] sm:$0xf]
    %v3248 = vld [vmem:[#allocation3 + $0xc40] sm:$0xff]
    %v3249 = vld [vmem:[#allocation3 + $0xc48] sm:$0xff]
    %v3250 = vld [vmem:[#allocation3 + $0xc50] sm:$0xff]
    %v3251 = vld [vmem:[#allocation3 + $0xc58] sm:$0xf]
    %v3252 = vld [vmem:[#allocation3 + $0xc5c] sm:$0xff]
    %v3253 = vld [vmem:[#allocation3 + $0xc64] sm:$0xff]
    %v3254 = vld [vmem:[#allocation3 + $0xc6c] sm:$0xff]
    %v3255 = vld [vmem:[#allocation3 + $0xc74] sm:$0xf]
    %v3256 = vld [vmem:[#allocation3 + $0xc78] sm:$0xff]
    %v3257 = vld [vmem:[#allocation3 + $0xc80] sm:$0xff]
    %v3258 = vld [vmem:[#allocation3 + $0xc88] sm:$0xff]
    %v3259 = vld [vmem:[#allocation3 + $0xc90] sm:$0xf]
    %v3260 = vld [vmem:[#allocation3 + $0xc94] sm:$0xff]
    %v3261 = vld [vmem:[#allocation3 + $0xc9c] sm:$0xff]
    %v3262 = vld [vmem:[#allocation3 + $0xca4] sm:$0xff]
    %v3263 = vld [vmem:[#allocation3 + $0xcac] sm:$0xf]
    %v3264 = vld [vmem:[#allocation3 + $0xcb0] sm:$0xff]
    %v3265 = vld [vmem:[#allocation3 + $0xcb8] sm:$0xff]
    %v3266 = vld [vmem:[#allocation3 + $0xcc0] sm:$0xff]
    %v3267 = vld [vmem:[#allocation3 + $0xcc8] sm:$0xf]
    %v3268 = vld [vmem:[#allocation3 + $0xccc] sm:$0xff]
    %v3269 = vld [vmem:[#allocation3 + $0xcd4] sm:$0xff]
    %v3270 = vld [vmem:[#allocation3 + $0xcdc] sm:$0xff]
    %v3271 = vld [vmem:[#allocation3 + $0xce4] sm:$0xf]
    %v3272 = vld [vmem:[#allocation3 + $0xce8] sm:$0xff]
    %v3273 = vld [vmem:[#allocation3 + $0xcf0] sm:$0xff]
    %v3274 = vld [vmem:[#allocation3 + $0xcf8] sm:$0xff]
    %v3275 = vld [vmem:[#allocation3 + $0xd00] sm:$0xf]
    %v3276 = vld [vmem:[#allocation3 + $0xd04] sm:$0xff]
    %v3277 = vld [vmem:[#allocation3 + $0xd0c] sm:$0xff]
    %v3278 = vld [vmem:[#allocation3 + $0xd14] sm:$0xff]
    %v3279 = vld [vmem:[#allocation3 + $0xd1c] sm:$0xf]
    %v3280 = vld [vmem:[#allocation3 + $0xd20] sm:$0xff]
    %v3281 = vld [vmem:[#allocation3 + $0xd28] sm:$0xff]
    %v3282 = vld [vmem:[#allocation3 + $0xd30] sm:$0xff]
    %v3283 = vld [vmem:[#allocation3 + $0xd38] sm:$0xf]
    %v3284 = vld [vmem:[#allocation3 + $0xd3c] sm:$0xff]
    %v3285 = vld [vmem:[#allocation3 + $0xd44] sm:$0xff]
    %v3286 = vld [vmem:[#allocation3 + $0xd4c] sm:$0xff]
    %v3287 = vld [vmem:[#allocation3 + $0xd54] sm:$0xf]
    %v3288 = vld [vmem:[#allocation3 + $0xd58] sm:$0xff]
    %v3289 = vld [vmem:[#allocation3 + $0xd60] sm:$0xff]
    %v3290 = vld [vmem:[#allocation3 + $0xd68] sm:$0xff]
    %v3291 = vld [vmem:[#allocation3 + $0xd70] sm:$0xf]
    %v3292 = vld [vmem:[#allocation3 + $0xd74] sm:$0xff]
    %v3293 = vld [vmem:[#allocation3 + $0xd7c] sm:$0xff]
    %v3294 = vld [vmem:[#allocation3 + $0xd84] sm:$0xff]
    %v3295 = vld [vmem:[#allocation3 + $0xd8c] sm:$0xf]
    %v3296 = vld [vmem:[#allocation3 + $0xd90] sm:$0xff]
    %v3297 = vld [vmem:[#allocation3 + $0xd98] sm:$0xff]
    %v3298 = vld [vmem:[#allocation3 + $0xda0] sm:$0xff]
    %v3299 = vld [vmem:[#allocation3 + $0xda8] sm:$0xf]
    %v3300 = vld [vmem:[#allocation3 + $0xdac] sm:$0xff]
    %v3301 = vld [vmem:[#allocation3 + $0xdb4] sm:$0xff]
    %v3302 = vld [vmem:[#allocation3 + $0xdbc] sm:$0xff]
    %v3303 = vld [vmem:[#allocation3 + $0xdc4] sm:$0xf]
    %v3304 = vld [vmem:[#allocation3 + $0xdc8] sm:$0xff]
    %v3305 = vld [vmem:[#allocation3 + $0xdd0] sm:$0xff]
    %v3306 = vld [vmem:[#allocation3 + $0xdd8] sm:$0xff]
    %v3307 = vld [vmem:[#allocation3 + $0xde0] sm:$0xf]
    %v3308 = vld [vmem:[#allocation3 + $0xde4] sm:$0xff]
    %v3309 = vld [vmem:[#allocation3 + $0xdec] sm:$0xff]
    %v3310 = vld [vmem:[#allocation3 + $0xdf4] sm:$0xff]
    %v3311 = vld [vmem:[#allocation3 + $0xdfc] sm:$0xf]
    %v3312 = vpack.c.bf16 %v2788, %v2788
    %v3313 = vpack.c.bf16 %v2789, %v2789
    %v3314 = vpack.c.bf16 %v2790, %v2790
    %v3315 = vpack.c.bf16 %v2791, %v2791
    %v3316 = vpack.c.bf16 %v2792, %v2792
    %v3317 = vpack.c.bf16 %v2793, %v2793
    %v3318 = vpack.c.bf16 %v2794, %v2794
    %v3319 = vpack.c.bf16 %v2795, %v2795
    %v3320 = vld [vmem:[#allocation18] sm:$0xff]
    %v3322 = vlaneseq
    %v3323 = vshrl.u32 %v3322, 7
    %v3324 = vsub.s32 0, %v3323
    %v3325 = vrot.slane %v3320, %v3324
    %v3326 = vlaneseq
    %v3327 = vshrl.u32 %v3326, 7
    %v3328 = vsub.s32 1, %v3327
    %v3329 = vrot.slane %v3320, %v3328
    %v3330 = vlaneseq
    %v3331 = vshrl.u32 %v3330, 7
    %v3332 = vsub.s32 2, %v3331
    %v3333 = vrot.slane %v3320, %v3332
    %v3334 = vlaneseq
    %v3335 = vshrl.u32 %v3334, 7
    %v3336 = vsub.s32 3, %v3335
    %v3337 = vrot.slane %v3320, %v3336
    %v3338 = vlaneseq
    %v3339 = vshrl.u32 %v3338, 7
    %v3340 = vsub.s32 4, %v3339
    %v3341 = vrot.slane %v3320, %v3340
    %v3342 = vlaneseq
    %v3343 = vshrl.u32 %v3342, 7
    %v3344 = vsub.s32 5, %v3343
    %v3345 = vrot.slane %v3320, %v3344
    %v3346 = vlaneseq
    %v3347 = vshrl.u32 %v3346, 7
    %v3348 = vsub.s32 6, %v3347
    %v3349 = vrot.slane %v3320, %v3348
    %v3869 = vunpack.c.l.b16 %v2800
    %v3870 = vunpack.c.h.b16 %v2800
    %v3871 = vunpack.c.l.b16 %v2801
    %v3872 = vunpack.c.h.b16 %v2801
    %v3873 = vunpack.c.l.b16 %v2802
    %v3874 = vunpack.c.h.b16 %v2802
    %v3875 = vunpack.c.l.b16 %v2803
    %v3876 = vunpack.c.l.b16 %v2804
    %v3877 = vunpack.c.h.b16 %v2804
    %v3878 = vunpack.c.l.b16 %v2805
    %v3879 = vunpack.c.h.b16 %v2805
    %v3880 = vunpack.c.l.b16 %v2806
    %v3881 = vunpack.c.h.b16 %v2806
    %v3882 = vunpack.c.l.b16 %v2807
    %v3883 = vunpack.c.l.b16 %v2808
    %v3884 = vunpack.c.h.b16 %v2808
    %v3885 = vunpack.c.l.b16 %v2809
    %v3886 = vunpack.c.h.b16 %v2809
    %v3887 = vunpack.c.l.b16 %v2810
    %v3888 = vunpack.c.h.b16 %v2810
    %v3889 = vunpack.c.l.b16 %v2811
    %v3890 = vunpack.c.l.b16 %v2812
    %v3891 = vunpack.c.h.b16 %v2812
    %v3892 = vunpack.c.l.b16 %v2813
    %v3893 = vunpack.c.h.b16 %v2813
    %v3894 = vunpack.c.l.b16 %v2814
    %v3895 = vunpack.c.h.b16 %v2814
    %v3896 = vunpack.c.l.b16 %v2815
    %v3897 = vunpack.c.l.b16 %v2816
    %v3898 = vunpack.c.h.b16 %v2816
    %v3899 = vunpack.c.l.b16 %v2817
    %v3900 = vunpack.c.h.b16 %v2817
    %v3901 = vunpack.c.l.b16 %v2818
    %v3902 = vunpack.c.h.b16 %v2818
    %v3903 = vunpack.c.l.b16 %v2819
    %v3904 = vunpack.c.l.b16 %v2820
    %v3905 = vunpack.c.h.b16 %v2820
    %v3906 = vunpack.c.l.b16 %v2821
    %v3907 = vunpack.c.h.b16 %v2821
    %v3908 = vunpack.c.l.b16 %v2822
    %v3909 = vunpack.c.h.b16 %v2822
    %v3910 = vunpack.c.l.b16 %v2823
    %v3911 = vunpack.c.l.b16 %v2824
    %v3912 = vunpack.c.h.b16 %v2824
    %v3913 = vunpack.c.l.b16 %v2825
    %v3914 = vunpack.c.h.b16 %v2825
    %v3915 = vunpack.c.l.b16 %v2826
    %v3916 = vunpack.c.h.b16 %v2826
    %v3917 = vunpack.c.l.b16 %v2827
    %v3918 = vunpack.c.l.b16 %v2828
    %v3919 = vunpack.c.h.b16 %v2828
    %v3920 = vunpack.c.l.b16 %v2829
    %v3921 = vunpack.c.h.b16 %v2829
    %v3922 = vunpack.c.l.b16 %v2830
    %v3923 = vunpack.c.h.b16 %v2830
    %v3924 = vunpack.c.l.b16 %v2831
    %v3925 = vunpack.c.l.b16 %v2832
    %v3926 = vunpack.c.h.b16 %v2832
    %v3927 = vunpack.c.l.b16 %v2833
    %v3928 = vunpack.c.h.b16 %v2833
    %v3929 = vunpack.c.l.b16 %v2834
    %v3930 = vunpack.c.h.b16 %v2834
    %v3931 = vunpack.c.l.b16 %v2835
    %v3932 = vunpack.c.l.b16 %v2836
    %v3933 = vunpack.c.h.b16 %v2836
    %v3934 = vunpack.c.l.b16 %v2837
    %v3935 = vunpack.c.h.b16 %v2837
    %v3936 = vunpack.c.l.b16 %v2838
    %v3937 = vunpack.c.h.b16 %v2838
    %v3938 = vunpack.c.l.b16 %v2839
    %v3939 = vunpack.c.l.b16 %v2840
    %v3940 = vunpack.c.h.b16 %v2840
    %v3941 = vunpack.c.l.b16 %v2841
    %v3942 = vunpack.c.h.b16 %v2841
    %v3943 = vunpack.c.l.b16 %v2842
    %v3944 = vunpack.c.h.b16 %v2842
    %v3945 = vunpack.c.l.b16 %v2843
    %v3946 = vunpack.c.l.b16 %v2844
    %v3947 = vunpack.c.h.b16 %v2844
    %v3948 = vunpack.c.l.b16 %v2845
    %v3949 = vunpack.c.h.b16 %v2845
    %v3950 = vunpack.c.l.b16 %v2846
    %v3951 = vunpack.c.h.b16 %v2846
    %v3952 = vunpack.c.l.b16 %v2847
    %v3953 = vunpack.c.l.b16 %v2848
    %v3954 = vunpack.c.h.b16 %v2848
    %v3955 = vunpack.c.l.b16 %v2849
    %v3956 = vunpack.c.h.b16 %v2849
    %v3957 = vunpack.c.l.b16 %v2850
    %v3958 = vunpack.c.h.b16 %v2850
    %v3959 = vunpack.c.l.b16 %v2851
    %v3960 = vunpack.c.l.b16 %v2852
    %v3961 = vunpack.c.h.b16 %v2852
    %v3962 = vunpack.c.l.b16 %v2853
    %v3963 = vunpack.c.h.b16 %v2853
    %v3964 = vunpack.c.l.b16 %v2854
    %v3965 = vunpack.c.h.b16 %v2854
    %v3966 = vunpack.c.l.b16 %v2855
    %v3967 = vunpack.c.l.b16 %v2856
    %v3968 = vunpack.c.h.b16 %v2856
    %v3969 = vunpack.c.l.b16 %v2857
    %v3970 = vunpack.c.h.b16 %v2857
    %v3971 = vunpack.c.l.b16 %v2858
    %v3972 = vunpack.c.h.b16 %v2858
    %v3973 = vunpack.c.l.b16 %v2859
    %v3974 = vunpack.c.l.b16 %v2860
    %v3975 = vunpack.c.h.b16 %v2860
    %v3976 = vunpack.c.l.b16 %v2861
    %v3977 = vunpack.c.h.b16 %v2861
    %v3978 = vunpack.c.l.b16 %v2862
    %v3979 = vunpack.c.h.b16 %v2862
    %v3980 = vunpack.c.l.b16 %v2863
    %v3981 = vunpack.c.l.b16 %v2864
    %v3982 = vunpack.c.h.b16 %v2864
    %v3983 = vunpack.c.l.b16 %v2865
    %v3984 = vunpack.c.h.b16 %v2865
    %v3985 = vunpack.c.l.b16 %v2866
    %v3986 = vunpack.c.h.b16 %v2866
    %v3987 = vunpack.c.l.b16 %v2867
    %v3988 = vunpack.c.l.b16 %v2868
    %v3989 = vunpack.c.h.b16 %v2868
    %v3990 = vunpack.c.l.b16 %v2869
    %v3991 = vunpack.c.h.b16 %v2869
    %v3992 = vunpack.c.l.b16 %v2870
    %v3993 = vunpack.c.h.b16 %v2870
    %v3994 = vunpack.c.l.b16 %v2871
    %v3995 = vunpack.c.l.b16 %v2872
    %v3996 = vunpack.c.h.b16 %v2872
    %v3997 = vunpack.c.l.b16 %v2873
    %v3998 = vunpack.c.h.b16 %v2873
    %v3999 = vunpack.c.l.b16 %v2874
    %v4000 = vunpack.c.h.b16 %v2874
    %v4001 = vunpack.c.l.b16 %v2875
    %v4002 = vunpack.c.l.b16 %v2876
    %v4003 = vunpack.c.h.b16 %v2876
    %v4004 = vunpack.c.l.b16 %v2877
    %v4005 = vunpack.c.h.b16 %v2877
    %v4006 = vunpack.c.l.b16 %v2878
    %v4007 = vunpack.c.h.b16 %v2878
    %v4008 = vunpack.c.l.b16 %v2879
    %v4009 = vunpack.c.l.b16 %v2880
    %v4010 = vunpack.c.h.b16 %v2880
    %v4011 = vunpack.c.l.b16 %v2881
    %v4012 = vunpack.c.h.b16 %v2881
    %v4013 = vunpack.c.l.b16 %v2882
    %v4014 = vunpack.c.h.b16 %v2882
    %v4015 = vunpack.c.l.b16 %v2883
    %v4016 = vunpack.c.l.b16 %v2884
    %v4017 = vunpack.c.h.b16 %v2884
    %v4018 = vunpack.c.l.b16 %v2885
    %v4019 = vunpack.c.h.b16 %v2885
    %v4020 = vunpack.c.l.b16 %v2886
    %v4021 = vunpack.c.h.b16 %v2886
    %v4022 = vunpack.c.l.b16 %v2887
    %v4023 = vunpack.c.l.b16 %v2888
    %v4024 = vunpack.c.h.b16 %v2888
    %v4025 = vunpack.c.l.b16 %v2889
    %v4026 = vunpack.c.h.b16 %v2889
    %v4027 = vunpack.c.l.b16 %v2890
    %v4028 = vunpack.c.h.b16 %v2890
    %v4029 = vunpack.c.l.b16 %v2891
    %v4030 = vunpack.c.l.b16 %v2892
    %v4031 = vunpack.c.h.b16 %v2892
    %v4032 = vunpack.c.l.b16 %v2893
    %v4033 = vunpack.c.h.b16 %v2893
    %v4034 = vunpack.c.l.b16 %v2894
    %v4035 = vunpack.c.h.b16 %v2894
    %v4036 = vunpack.c.l.b16 %v2895
    %v4037 = vunpack.c.l.b16 %v2896
    %v4038 = vunpack.c.h.b16 %v2896
    %v4039 = vunpack.c.l.b16 %v2897
    %v4040 = vunpack.c.h.b16 %v2897
    %v4041 = vunpack.c.l.b16 %v2898
    %v4042 = vunpack.c.h.b16 %v2898
    %v4043 = vunpack.c.l.b16 %v2899
    %v4044 = vunpack.c.l.b16 %v2900
    %v4045 = vunpack.c.h.b16 %v2900
    %v4046 = vunpack.c.l.b16 %v2901
    %v4047 = vunpack.c.h.b16 %v2901
    %v4048 = vunpack.c.l.b16 %v2902
    %v4049 = vunpack.c.h.b16 %v2902
    %v4050 = vunpack.c.l.b16 %v2903
    %v4051 = vunpack.c.l.b16 %v2904
    %v4052 = vunpack.c.h.b16 %v2904
    %v4053 = vunpack.c.l.b16 %v2905
    %v4054 = vunpack.c.h.b16 %v2905
    %v4055 = vunpack.c.l.b16 %v2906
    %v4056 = vunpack.c.h.b16 %v2906
    %v4057 = vunpack.c.l.b16 %v2907
    %v4058 = vunpack.c.l.b16 %v2908
    %v4059 = vunpack.c.h.b16 %v2908
    %v4060 = vunpack.c.l.b16 %v2909
    %v4061 = vunpack.c.h.b16 %v2909
    %v4062 = vunpack.c.l.b16 %v2910
    %v4063 = vunpack.c.h.b16 %v2910
    %v4064 = vunpack.c.l.b16 %v2911
    %v4065 = vunpack.c.l.b16 %v2912
    %v4066 = vunpack.c.h.b16 %v2912
    %v4067 = vunpack.c.l.b16 %v2913
    %v4068 = vunpack.c.h.b16 %v2913
    %v4069 = vunpack.c.l.b16 %v2914
    %v4070 = vunpack.c.h.b16 %v2914
    %v4071 = vunpack.c.l.b16 %v2915
    %v4072 = vunpack.c.l.b16 %v2916
    %v4073 = vunpack.c.h.b16 %v2916
    %v4074 = vunpack.c.l.b16 %v2917
    %v4075 = vunpack.c.h.b16 %v2917
    %v4076 = vunpack.c.l.b16 %v2918
    %v4077 = vunpack.c.h.b16 %v2918
    %v4078 = vunpack.c.l.b16 %v2919
    %v4079 = vunpack.c.l.b16 %v2920
    %v4080 = vunpack.c.h.b16 %v2920
    %v4081 = vunpack.c.l.b16 %v2921
    %v4082 = vunpack.c.h.b16 %v2921
    %v4083 = vunpack.c.l.b16 %v2922
    %v4084 = vunpack.c.h.b16 %v2922
    %v4085 = vunpack.c.l.b16 %v2923
    %v4086 = vunpack.c.l.b16 %v2924
    %v4087 = vunpack.c.h.b16 %v2924
    %v4088 = vunpack.c.l.b16 %v2925
    %v4089 = vunpack.c.h.b16 %v2925
    %v4090 = vunpack.c.l.b16 %v2926
    %v4091 = vunpack.c.h.b16 %v2926
    %v4092 = vunpack.c.l.b16 %v2927
    %v4093 = vunpack.c.l.b16 %v2928
    %v4094 = vunpack.c.h.b16 %v2928
    %v4095 = vunpack.c.l.b16 %v2929
    %v4096 = vunpack.c.h.b16 %v2929
    %v4097 = vunpack.c.l.b16 %v2930
    %v4098 = vunpack.c.h.b16 %v2930
    %v4099 = vunpack.c.l.b16 %v2931
    %v4100 = vunpack.c.l.b16 %v2932
    %v4101 = vunpack.c.h.b16 %v2932
    %v4102 = vunpack.c.l.b16 %v2933
    %v4103 = vunpack.c.h.b16 %v2933
    %v4104 = vunpack.c.l.b16 %v2934
    %v4105 = vunpack.c.h.b16 %v2934
    %v4106 = vunpack.c.l.b16 %v2935
    %v4107 = vunpack.c.l.b16 %v2936
    %v4108 = vunpack.c.h.b16 %v2936
    %v4109 = vunpack.c.l.b16 %v2937
    %v4110 = vunpack.c.h.b16 %v2937
    %v4111 = vunpack.c.l.b16 %v2938
    %v4112 = vunpack.c.h.b16 %v2938
    %v4113 = vunpack.c.l.b16 %v2939
    %v4114 = vunpack.c.l.b16 %v2940
    %v4115 = vunpack.c.h.b16 %v2940
    %v4116 = vunpack.c.l.b16 %v2941
    %v4117 = vunpack.c.h.b16 %v2941
    %v4118 = vunpack.c.l.b16 %v2942
    %v4119 = vunpack.c.h.b16 %v2942
    %v4120 = vunpack.c.l.b16 %v2943
    %v4121 = vunpack.c.l.b16 %v2944
    %v4122 = vunpack.c.h.b16 %v2944
    %v4123 = vunpack.c.l.b16 %v2945
    %v4124 = vunpack.c.h.b16 %v2945
    %v4125 = vunpack.c.l.b16 %v2946
    %v4126 = vunpack.c.h.b16 %v2946
    %v4127 = vunpack.c.l.b16 %v2947
    %v4128 = vunpack.c.l.b16 %v2948
    %v4129 = vunpack.c.h.b16 %v2948
    %v4130 = vunpack.c.l.b16 %v2949
    %v4131 = vunpack.c.h.b16 %v2949
    %v4132 = vunpack.c.l.b16 %v2950
    %v4133 = vunpack.c.h.b16 %v2950
    %v4134 = vunpack.c.l.b16 %v2951
    %v4135 = vunpack.c.l.b16 %v2952
    %v4136 = vunpack.c.h.b16 %v2952
    %v4137 = vunpack.c.l.b16 %v2953
    %v4138 = vunpack.c.h.b16 %v2953
    %v4139 = vunpack.c.l.b16 %v2954
    %v4140 = vunpack.c.h.b16 %v2954
    %v4141 = vunpack.c.l.b16 %v2955
    %v4142 = vunpack.c.l.b16 %v2956
    %v4143 = vunpack.c.h.b16 %v2956
    %v4144 = vunpack.c.l.b16 %v2957
    %v4145 = vunpack.c.h.b16 %v2957
    %v4146 = vunpack.c.l.b16 %v2958
    %v4147 = vunpack.c.h.b16 %v2958
    %v4148 = vunpack.c.l.b16 %v2959
    %v4149 = vunpack.c.l.b16 %v2960
    %v4150 = vunpack.c.h.b16 %v2960
    %v4151 = vunpack.c.l.b16 %v2961
    %v4152 = vunpack.c.h.b16 %v2961
    %v4153 = vunpack.c.l.b16 %v2962
    %v4154 = vunpack.c.h.b16 %v2962
    %v4155 = vunpack.c.l.b16 %v2963
    %v4156 = vunpack.c.l.b16 %v2964
    %v4157 = vunpack.c.h.b16 %v2964
    %v4158 = vunpack.c.l.b16 %v2965
    %v4159 = vunpack.c.h.b16 %v2965
    %v4160 = vunpack.c.l.b16 %v2966
    %v4161 = vunpack.c.h.b16 %v2966
    %v4162 = vunpack.c.l.b16 %v2967
    %v4163 = vunpack.c.l.b16 %v2968
    %v4164 = vunpack.c.h.b16 %v2968
    %v4165 = vunpack.c.l.b16 %v2969
    %v4166 = vunpack.c.h.b16 %v2969
    %v4167 = vunpack.c.l.b16 %v2970
    %v4168 = vunpack.c.h.b16 %v2970
    %v4169 = vunpack.c.l.b16 %v2971
    %v4170 = vunpack.c.l.b16 %v2972
    %v4171 = vunpack.c.h.b16 %v2972
    %v4172 = vunpack.c.l.b16 %v2973
    %v4173 = vunpack.c.h.b16 %v2973
    %v4174 = vunpack.c.l.b16 %v2974
    %v4175 = vunpack.c.h.b16 %v2974
    %v4176 = vunpack.c.l.b16 %v2975
    %v4177 = vunpack.c.l.b16 %v2976
    %v4178 = vunpack.c.h.b16 %v2976
    %v4179 = vunpack.c.l.b16 %v2977
    %v4180 = vunpack.c.h.b16 %v2977
    %v4181 = vunpack.c.l.b16 %v2978
    %v4182 = vunpack.c.h.b16 %v2978
    %v4183 = vunpack.c.l.b16 %v2979
    %v4184 = vunpack.c.l.b16 %v2980
    %v4185 = vunpack.c.h.b16 %v2980
    %v4186 = vunpack.c.l.b16 %v2981
    %v4187 = vunpack.c.h.b16 %v2981
    %v4188 = vunpack.c.l.b16 %v2982
    %v4189 = vunpack.c.h.b16 %v2982
    %v4190 = vunpack.c.l.b16 %v2983
    %v4191 = vunpack.c.l.b16 %v2984
    %v4192 = vunpack.c.h.b16 %v2984
    %v4193 = vunpack.c.l.b16 %v2985
    %v4194 = vunpack.c.h.b16 %v2985
    %v4195 = vunpack.c.l.b16 %v2986
    %v4196 = vunpack.c.h.b16 %v2986
    %v4197 = vunpack.c.l.b16 %v2987
    %v4198 = vunpack.c.l.b16 %v2988
    %v4199 = vunpack.c.h.b16 %v2988
    %v4200 = vunpack.c.l.b16 %v2989
    %v4201 = vunpack.c.h.b16 %v2989
    %v4202 = vunpack.c.l.b16 %v2990
    %v4203 = vunpack.c.h.b16 %v2990
    %v4204 = vunpack.c.l.b16 %v2991
    %v4205 = vunpack.c.l.b16 %v2992
    %v4206 = vunpack.c.h.b16 %v2992
    %v4207 = vunpack.c.l.b16 %v2993
    %v4208 = vunpack.c.h.b16 %v2993
    %v4209 = vunpack.c.l.b16 %v2994
    %v4210 = vunpack.c.h.b16 %v2994
    %v4211 = vunpack.c.l.b16 %v2995
    %v4212 = vunpack.c.l.b16 %v2996
    %v4213 = vunpack.c.h.b16 %v2996
    %v4214 = vunpack.c.l.b16 %v2997
    %v4215 = vunpack.c.h.b16 %v2997
    %v4216 = vunpack.c.l.b16 %v2998
    %v4217 = vunpack.c.h.b16 %v2998
    %v4218 = vunpack.c.l.b16 %v2999
    %v4219 = vunpack.c.l.b16 %v3000
    %v4220 = vunpack.c.h.b16 %v3000
    %v4221 = vunpack.c.l.b16 %v3001
    %v4222 = vunpack.c.h.b16 %v3001
    %v4223 = vunpack.c.l.b16 %v3002
    %v4224 = vunpack.c.h.b16 %v3002
    %v4225 = vunpack.c.l.b16 %v3003
    %v4226 = vunpack.c.l.b16 %v3004
    %v4227 = vunpack.c.h.b16 %v3004
    %v4228 = vunpack.c.l.b16 %v3005
    %v4229 = vunpack.c.h.b16 %v3005
    %v4230 = vunpack.c.l.b16 %v3006
    %v4231 = vunpack.c.h.b16 %v3006
    %v4232 = vunpack.c.l.b16 %v3007
    %v4233 = vunpack.c.l.b16 %v3008
    %v4234 = vunpack.c.h.b16 %v3008
    %v4235 = vunpack.c.l.b16 %v3009
    %v4236 = vunpack.c.h.b16 %v3009
    %v4237 = vunpack.c.l.b16 %v3010
    %v4238 = vunpack.c.h.b16 %v3010
    %v4239 = vunpack.c.l.b16 %v3011
    %v4240 = vunpack.c.l.b16 %v3012
    %v4241 = vunpack.c.h.b16 %v3012
    %v4242 = vunpack.c.l.b16 %v3013
    %v4243 = vunpack.c.h.b16 %v3013
    %v4244 = vunpack.c.l.b16 %v3014
    %v4245 = vunpack.c.h.b16 %v3014
    %v4246 = vunpack.c.l.b16 %v3015
    %v4247 = vunpack.c.l.b16 %v3016
    %v4248 = vunpack.c.h.b16 %v3016
    %v4249 = vunpack.c.l.b16 %v3017
    %v4250 = vunpack.c.h.b16 %v3017
    %v4251 = vunpack.c.l.b16 %v3018
    %v4252 = vunpack.c.h.b16 %v3018
    %v4253 = vunpack.c.l.b16 %v3019
    %v4254 = vunpack.c.l.b16 %v3020
    %v4255 = vunpack.c.h.b16 %v3020
    %v4256 = vunpack.c.l.b16 %v3021
    %v4257 = vunpack.c.h.b16 %v3021
    %v4258 = vunpack.c.l.b16 %v3022
    %v4259 = vunpack.c.h.b16 %v3022
    %v4260 = vunpack.c.l.b16 %v3023
    %v4261 = vunpack.c.l.b16 %v3024
    %v4262 = vunpack.c.h.b16 %v3024
    %v4263 = vunpack.c.l.b16 %v3025
    %v4264 = vunpack.c.h.b16 %v3025
    %v4265 = vunpack.c.l.b16 %v3026
    %v4266 = vunpack.c.h.b16 %v3026
    %v4267 = vunpack.c.l.b16 %v3027
    %v4268 = vunpack.c.l.b16 %v3028
    %v4269 = vunpack.c.h.b16 %v3028
    %v4270 = vunpack.c.l.b16 %v3029
    %v4271 = vunpack.c.h.b16 %v3029
    %v4272 = vunpack.c.l.b16 %v3030
    %v4273 = vunpack.c.h.b16 %v3030
    %v4274 = vunpack.c.l.b16 %v3031
    %v4275 = vunpack.c.l.b16 %v3032
    %v4276 = vunpack.c.h.b16 %v3032
    %v4277 = vunpack.c.l.b16 %v3033
    %v4278 = vunpack.c.h.b16 %v3033
    %v4279 = vunpack.c.l.b16 %v3034
    %v4280 = vunpack.c.h.b16 %v3034
    %v4281 = vunpack.c.l.b16 %v3035
    %v4282 = vunpack.c.l.b16 %v3036
    %v4283 = vunpack.c.h.b16 %v3036
    %v4284 = vunpack.c.l.b16 %v3037
    %v4285 = vunpack.c.h.b16 %v3037
    %v4286 = vunpack.c.l.b16 %v3038
    %v4287 = vunpack.c.h.b16 %v3038
    %v4288 = vunpack.c.l.b16 %v3039
    %v4289 = vunpack.c.l.b16 %v3040
    %v4290 = vunpack.c.h.b16 %v3040
    %v4291 = vunpack.c.l.b16 %v3041
    %v4292 = vunpack.c.h.b16 %v3041
    %v4293 = vunpack.c.l.b16 %v3042
    %v4294 = vunpack.c.h.b16 %v3042
    %v4295 = vunpack.c.l.b16 %v3043
    %v4296 = vunpack.c.l.b16 %v3044
    %v4297 = vunpack.c.h.b16 %v3044
    %v4298 = vunpack.c.l.b16 %v3045
    %v4299 = vunpack.c.h.b16 %v3045
    %v4300 = vunpack.c.l.b16 %v3046
    %v4301 = vunpack.c.h.b16 %v3046
    %v4302 = vunpack.c.l.b16 %v3047
    %v4303 = vunpack.c.l.b16 %v3048
    %v4304 = vunpack.c.h.b16 %v3048
    %v4305 = vunpack.c.l.b16 %v3049
    %v4306 = vunpack.c.h.b16 %v3049
    %v4307 = vunpack.c.l.b16 %v3050
    %v4308 = vunpack.c.h.b16 %v3050
    %v4309 = vunpack.c.l.b16 %v3051
    %v4310 = vunpack.c.l.b16 %v3052
    %v4311 = vunpack.c.h.b16 %v3052
    %v4312 = vunpack.c.l.b16 %v3053
    %v4313 = vunpack.c.h.b16 %v3053
    %v4314 = vunpack.c.l.b16 %v3054
    %v4315 = vunpack.c.h.b16 %v3054
    %v4316 = vunpack.c.l.b16 %v3055
    %v4317 = vunpack.c.l.b16 %v3056
    %v4318 = vunpack.c.h.b16 %v3056
    %v4319 = vunpack.c.l.b16 %v3057
    %v4320 = vunpack.c.h.b16 %v3057
    %v4321 = vunpack.c.l.b16 %v3058
    %v4322 = vunpack.c.h.b16 %v3058
    %v4323 = vunpack.c.l.b16 %v3059
    %v4324 = vunpack.c.l.b16 %v3060
    %v4325 = vunpack.c.h.b16 %v3060
    %v4326 = vunpack.c.l.b16 %v3061
    %v4327 = vunpack.c.h.b16 %v3061
    %v4328 = vunpack.c.l.b16 %v3062
    %v4329 = vunpack.c.h.b16 %v3062
    %v4330 = vunpack.c.l.b16 %v3063
    %v4331 = vunpack.c.l.b16 %v3064
    %v4332 = vunpack.c.h.b16 %v3064
    %v4333 = vunpack.c.l.b16 %v3065
    %v4334 = vunpack.c.h.b16 %v3065
    %v4335 = vunpack.c.l.b16 %v3066
    %v4336 = vunpack.c.h.b16 %v3066
    %v4337 = vunpack.c.l.b16 %v3067
    %v4338 = vunpack.c.l.b16 %v3068
    %v4339 = vunpack.c.h.b16 %v3068
    %v4340 = vunpack.c.l.b16 %v3069
    %v4341 = vunpack.c.h.b16 %v3069
    %v4342 = vunpack.c.l.b16 %v3070
    %v4343 = vunpack.c.h.b16 %v3070
    %v4344 = vunpack.c.l.b16 %v3071
    %v4345 = vunpack.c.l.b16 %v3072
    %v4346 = vunpack.c.h.b16 %v3072
    %v4347 = vunpack.c.l.b16 %v3073
    %v4348 = vunpack.c.h.b16 %v3073
    %v4349 = vunpack.c.l.b16 %v3074
    %v4350 = vunpack.c.h.b16 %v3074
    %v4351 = vunpack.c.l.b16 %v3075
    %v4352 = vunpack.c.l.b16 %v3076
    %v4353 = vunpack.c.h.b16 %v3076
    %v4354 = vunpack.c.l.b16 %v3077
    %v4355 = vunpack.c.h.b16 %v3077
    %v4356 = vunpack.c.l.b16 %v3078
    %v4357 = vunpack.c.h.b16 %v3078
    %v4358 = vunpack.c.l.b16 %v3079
    %v4359 = vunpack.c.l.b16 %v3080
    %v4360 = vunpack.c.h.b16 %v3080
    %v4361 = vunpack.c.l.b16 %v3081
    %v4362 = vunpack.c.h.b16 %v3081
    %v4363 = vunpack.c.l.b16 %v3082
    %v4364 = vunpack.c.h.b16 %v3082
    %v4365 = vunpack.c.l.b16 %v3083
    %v4366 = vunpack.c.l.b16 %v3084
    %v4367 = vunpack.c.h.b16 %v3084
    %v4368 = vunpack.c.l.b16 %v3085
    %v4369 = vunpack.c.h.b16 %v3085
    %v4370 = vunpack.c.l.b16 %v3086
    %v4371 = vunpack.c.h.b16 %v3086
    %v4372 = vunpack.c.l.b16 %v3087
    %v4373 = vunpack.c.l.b16 %v3088
    %v4374 = vunpack.c.h.b16 %v3088
    %v4375 = vunpack.c.l.b16 %v3089
    %v4376 = vunpack.c.h.b16 %v3089
    %v4377 = vunpack.c.l.b16 %v3090
    %v4378 = vunpack.c.h.b16 %v3090
    %v4379 = vunpack.c.l.b16 %v3091
    %v4380 = vunpack.c.l.b16 %v3092
    %v4381 = vunpack.c.h.b16 %v3092
    %v4382 = vunpack.c.l.b16 %v3093
    %v4383 = vunpack.c.h.b16 %v3093
    %v4384 = vunpack.c.l.b16 %v3094
    %v4385 = vunpack.c.h.b16 %v3094
    %v4386 = vunpack.c.l.b16 %v3095
    %v4387 = vunpack.c.l.b16 %v3096
    %v4388 = vunpack.c.h.b16 %v3096
    %v4389 = vunpack.c.l.b16 %v3097
    %v4390 = vunpack.c.h.b16 %v3097
    %v4391 = vunpack.c.l.b16 %v3098
    %v4392 = vunpack.c.h.b16 %v3098
    %v4393 = vunpack.c.l.b16 %v3099
    %v4394 = vunpack.c.l.b16 %v3100
    %v4395 = vunpack.c.h.b16 %v3100
    %v4396 = vunpack.c.l.b16 %v3101
    %v4397 = vunpack.c.h.b16 %v3101
    %v4398 = vunpack.c.l.b16 %v3102
    %v4399 = vunpack.c.h.b16 %v3102
    %v4400 = vunpack.c.l.b16 %v3103
    %v4401 = vunpack.c.l.b16 %v3104
    %v4402 = vunpack.c.h.b16 %v3104
    %v4403 = vunpack.c.l.b16 %v3105
    %v4404 = vunpack.c.h.b16 %v3105
    %v4405 = vunpack.c.l.b16 %v3106
    %v4406 = vunpack.c.h.b16 %v3106
    %v4407 = vunpack.c.l.b16 %v3107
    %v4408 = vunpack.c.l.b16 %v3108
    %v4409 = vunpack.c.h.b16 %v3108
    %v4410 = vunpack.c.l.b16 %v3109
    %v4411 = vunpack.c.h.b16 %v3109
    %v4412 = vunpack.c.l.b16 %v3110
    %v4413 = vunpack.c.h.b16 %v3110
    %v4414 = vunpack.c.l.b16 %v3111
    %v4415 = vunpack.c.l.b16 %v3112
    %v4416 = vunpack.c.h.b16 %v3112
    %v4417 = vunpack.c.l.b16 %v3113
    %v4418 = vunpack.c.h.b16 %v3113
    %v4419 = vunpack.c.l.b16 %v3114
    %v4420 = vunpack.c.h.b16 %v3114
    %v4421 = vunpack.c.l.b16 %v3115
    %v4422 = vunpack.c.l.b16 %v3116
    %v4423 = vunpack.c.h.b16 %v3116
    %v4424 = vunpack.c.l.b16 %v3117
    %v4425 = vunpack.c.h.b16 %v3117
    %v4426 = vunpack.c.l.b16 %v3118
    %v4427 = vunpack.c.h.b16 %v3118
    %v4428 = vunpack.c.l.b16 %v3119
    %v4429 = vunpack.c.l.b16 %v3120
    %v4430 = vunpack.c.h.b16 %v3120
    %v4431 = vunpack.c.l.b16 %v3121
    %v4432 = vunpack.c.h.b16 %v3121
    %v4433 = vunpack.c.l.b16 %v3122
    %v4434 = vunpack.c.h.b16 %v3122
    %v4435 = vunpack.c.l.b16 %v3123
    %v4436 = vunpack.c.l.b16 %v3124
    %v4437 = vunpack.c.h.b16 %v3124
    %v4438 = vunpack.c.l.b16 %v3125
    %v4439 = vunpack.c.h.b16 %v3125
    %v4440 = vunpack.c.l.b16 %v3126
    %v4441 = vunpack.c.h.b16 %v3126
    %v4442 = vunpack.c.l.b16 %v3127
    %v4443 = vunpack.c.l.b16 %v3128
    %v4444 = vunpack.c.h.b16 %v3128
    %v4445 = vunpack.c.l.b16 %v3129
    %v4446 = vunpack.c.h.b16 %v3129
    %v4447 = vunpack.c.l.b16 %v3130
    %v4448 = vunpack.c.h.b16 %v3130
    %v4449 = vunpack.c.l.b16 %v3131
    %v4450 = vunpack.c.l.b16 %v3132
    %v4451 = vunpack.c.h.b16 %v3132
    %v4452 = vunpack.c.l.b16 %v3133
    %v4453 = vunpack.c.h.b16 %v3133
    %v4454 = vunpack.c.l.b16 %v3134
    %v4455 = vunpack.c.h.b16 %v3134
    %v4456 = vunpack.c.l.b16 %v3135
    %v4457 = vunpack.c.l.b16 %v3136
    %v4458 = vunpack.c.h.b16 %v3136
    %v4459 = vunpack.c.l.b16 %v3137
    %v4460 = vunpack.c.h.b16 %v3137
    %v4461 = vunpack.c.l.b16 %v3138
    %v4462 = vunpack.c.h.b16 %v3138
    %v4463 = vunpack.c.l.b16 %v3139
    %v4464 = vunpack.c.l.b16 %v3140
    %v4465 = vunpack.c.h.b16 %v3140
    %v4466 = vunpack.c.l.b16 %v3141
    %v4467 = vunpack.c.h.b16 %v3141
    %v4468 = vunpack.c.l.b16 %v3142
    %v4469 = vunpack.c.h.b16 %v3142
    %v4470 = vunpack.c.l.b16 %v3143
    %v4471 = vunpack.c.l.b16 %v3144
    %v4472 = vunpack.c.h.b16 %v3144
    %v4473 = vunpack.c.l.b16 %v3145
    %v4474 = vunpack.c.h.b16 %v3145
    %v4475 = vunpack.c.l.b16 %v3146
    %v4476 = vunpack.c.h.b16 %v3146
    %v4477 = vunpack.c.l.b16 %v3147
    %v4478 = vunpack.c.l.b16 %v3148
    %v4479 = vunpack.c.h.b16 %v3148
    %v4480 = vunpack.c.l.b16 %v3149
    %v4481 = vunpack.c.h.b16 %v3149
    %v4482 = vunpack.c.l.b16 %v3150
    %v4483 = vunpack.c.h.b16 %v3150
    %v4484 = vunpack.c.l.b16 %v3151
    %v4485 = vunpack.c.l.b16 %v3152
    %v4486 = vunpack.c.h.b16 %v3152
    %v4487 = vunpack.c.l.b16 %v3153
    %v4488 = vunpack.c.h.b16 %v3153
    %v4489 = vunpack.c.l.b16 %v3154
    %v4490 = vunpack.c.h.b16 %v3154
    %v4491 = vunpack.c.l.b16 %v3155
    %v4492 = vunpack.c.l.b16 %v3156
    %v4493 = vunpack.c.h.b16 %v3156
    %v4494 = vunpack.c.l.b16 %v3157
    %v4495 = vunpack.c.h.b16 %v3157
    %v4496 = vunpack.c.l.b16 %v3158
    %v4497 = vunpack.c.h.b16 %v3158
    %v4498 = vunpack.c.l.b16 %v3159
    %v4499 = vunpack.c.l.b16 %v3160
    %v4500 = vunpack.c.h.b16 %v3160
    %v4501 = vunpack.c.l.b16 %v3161
    %v4502 = vunpack.c.h.b16 %v3161
    %v4503 = vunpack.c.l.b16 %v3162
    %v4504 = vunpack.c.h.b16 %v3162
    %v4505 = vunpack.c.l.b16 %v3163
    %v4506 = vunpack.c.l.b16 %v3164
    %v4507 = vunpack.c.h.b16 %v3164
    %v4508 = vunpack.c.l.b16 %v3165
    %v4509 = vunpack.c.h.b16 %v3165
    %v4510 = vunpack.c.l.b16 %v3166
    %v4511 = vunpack.c.h.b16 %v3166
    %v4512 = vunpack.c.l.b16 %v3167
    %v4513 = vunpack.c.l.b16 %v3168
    %v4514 = vunpack.c.h.b16 %v3168
    %v4515 = vunpack.c.l.b16 %v3169
    %v4516 = vunpack.c.h.b16 %v3169
    %v4517 = vunpack.c.l.b16 %v3170
    %v4518 = vunpack.c.h.b16 %v3170
    %v4519 = vunpack.c.l.b16 %v3171
    %v4520 = vunpack.c.l.b16 %v3172
    %v4521 = vunpack.c.h.b16 %v3172
    %v4522 = vunpack.c.l.b16 %v3173
    %v4523 = vunpack.c.h.b16 %v3173
    %v4524 = vunpack.c.l.b16 %v3174
    %v4525 = vunpack.c.h.b16 %v3174
    %v4526 = vunpack.c.l.b16 %v3175
    %v4527 = vunpack.c.l.b16 %v3176
    %v4528 = vunpack.c.h.b16 %v3176
    %v4529 = vunpack.c.l.b16 %v3177
    %v4530 = vunpack.c.h.b16 %v3177
    %v4531 = vunpack.c.l.b16 %v3178
    %v4532 = vunpack.c.h.b16 %v3178
    %v4533 = vunpack.c.l.b16 %v3179
    %v4534 = vunpack.c.l.b16 %v3180
    %v4535 = vunpack.c.h.b16 %v3180
    %v4536 = vunpack.c.l.b16 %v3181
    %v4537 = vunpack.c.h.b16 %v3181
    %v4538 = vunpack.c.l.b16 %v3182
    %v4539 = vunpack.c.h.b16 %v3182
    %v4540 = vunpack.c.l.b16 %v3183
    %v4541 = vunpack.c.l.b16 %v3184
    %v4542 = vunpack.c.h.b16 %v3184
    %v4543 = vunpack.c.l.b16 %v3185
    %v4544 = vunpack.c.h.b16 %v3185
    %v4545 = vunpack.c.l.b16 %v3186
    %v4546 = vunpack.c.h.b16 %v3186
    %v4547 = vunpack.c.l.b16 %v3187
    %v4548 = vunpack.c.l.b16 %v3188
    %v4549 = vunpack.c.h.b16 %v3188
    %v4550 = vunpack.c.l.b16 %v3189
    %v4551 = vunpack.c.h.b16 %v3189
    %v4552 = vunpack.c.l.b16 %v3190
    %v4553 = vunpack.c.h.b16 %v3190
    %v4554 = vunpack.c.l.b16 %v3191
    %v4555 = vunpack.c.l.b16 %v3192
    %v4556 = vunpack.c.h.b16 %v3192
    %v4557 = vunpack.c.l.b16 %v3193
    %v4558 = vunpack.c.h.b16 %v3193
    %v4559 = vunpack.c.l.b16 %v3194
    %v4560 = vunpack.c.h.b16 %v3194
    %v4561 = vunpack.c.l.b16 %v3195
    %v4562 = vunpack.c.l.b16 %v3196
    %v4563 = vunpack.c.h.b16 %v3196
    %v4564 = vunpack.c.l.b16 %v3197
    %v4565 = vunpack.c.h.b16 %v3197
    %v4566 = vunpack.c.l.b16 %v3198
    %v4567 = vunpack.c.h.b16 %v3198
    %v4568 = vunpack.c.l.b16 %v3199
    %v4569 = vunpack.c.l.b16 %v3200
    %v4570 = vunpack.c.h.b16 %v3200
    %v4571 = vunpack.c.l.b16 %v3201
    %v4572 = vunpack.c.h.b16 %v3201
    %v4573 = vunpack.c.l.b16 %v3202
    %v4574 = vunpack.c.h.b16 %v3202
    %v4575 = vunpack.c.l.b16 %v3203
    %v4576 = vunpack.c.l.b16 %v3204
    %v4577 = vunpack.c.h.b16 %v3204
    %v4578 = vunpack.c.l.b16 %v3205
    %v4579 = vunpack.c.h.b16 %v3205
    %v4580 = vunpack.c.l.b16 %v3206
    %v4581 = vunpack.c.h.b16 %v3206
    %v4582 = vunpack.c.l.b16 %v3207
    %v4583 = vunpack.c.l.b16 %v3208
    %v4584 = vunpack.c.h.b16 %v3208
    %v4585 = vunpack.c.l.b16 %v3209
    %v4586 = vunpack.c.h.b16 %v3209
    %v4587 = vunpack.c.l.b16 %v3210
    %v4588 = vunpack.c.h.b16 %v3210
    %v4589 = vunpack.c.l.b16 %v3211
    %v4590 = vunpack.c.l.b16 %v3212
    %v4591 = vunpack.c.h.b16 %v3212
    %v4592 = vunpack.c.l.b16 %v3213
    %v4593 = vunpack.c.h.b16 %v3213
    %v4594 = vunpack.c.l.b16 %v3214
    %v4595 = vunpack.c.h.b16 %v3214
    %v4596 = vunpack.c.l.b16 %v3215
    %v4597 = vunpack.c.l.b16 %v3216
    %v4598 = vunpack.c.h.b16 %v3216
    %v4599 = vunpack.c.l.b16 %v3217
    %v4600 = vunpack.c.h.b16 %v3217
    %v4601 = vunpack.c.l.b16 %v3218
    %v4602 = vunpack.c.h.b16 %v3218
    %v4603 = vunpack.c.l.b16 %v3219
    %v4604 = vunpack.c.l.b16 %v3220
    %v4605 = vunpack.c.h.b16 %v3220
    %v4606 = vunpack.c.l.b16 %v3221
    %v4607 = vunpack.c.h.b16 %v3221
    %v4608 = vunpack.c.l.b16 %v3222
    %v4609 = vunpack.c.h.b16 %v3222
    %v4610 = vunpack.c.l.b16 %v3223
    %v4611 = vunpack.c.l.b16 %v3224
    %v4612 = vunpack.c.h.b16 %v3224
    %v4613 = vunpack.c.l.b16 %v3225
    %v4614 = vunpack.c.h.b16 %v3225
    %v4615 = vunpack.c.l.b16 %v3226
    %v4616 = vunpack.c.h.b16 %v3226
    %v4617 = vunpack.c.l.b16 %v3227
    %v4618 = vunpack.c.l.b16 %v3228
    %v4619 = vunpack.c.h.b16 %v3228
    %v4620 = vunpack.c.l.b16 %v3229
    %v4621 = vunpack.c.h.b16 %v3229
    %v4622 = vunpack.c.l.b16 %v3230
    %v4623 = vunpack.c.h.b16 %v3230
    %v4624 = vunpack.c.l.b16 %v3231
    %v4625 = vunpack.c.l.b16 %v3232
    %v4626 = vunpack.c.h.b16 %v3232
    %v4627 = vunpack.c.l.b16 %v3233
    %v4628 = vunpack.c.h.b16 %v3233
    %v4629 = vunpack.c.l.b16 %v3234
    %v4630 = vunpack.c.h.b16 %v3234
    %v4631 = vunpack.c.l.b16 %v3235
    %v4632 = vunpack.c.l.b16 %v3236
    %v4633 = vunpack.c.h.b16 %v3236
    %v4634 = vunpack.c.l.b16 %v3237
    %v4635 = vunpack.c.h.b16 %v3237
    %v4636 = vunpack.c.l.b16 %v3238
    %v4637 = vunpack.c.h.b16 %v3238
    %v4638 = vunpack.c.l.b16 %v3239
    %v4639 = vunpack.c.l.b16 %v3240
    %v4640 = vunpack.c.h.b16 %v3240
    %v4641 = vunpack.c.l.b16 %v3241
    %v4642 = vunpack.c.h.b16 %v3241
    %v4643 = vunpack.c.l.b16 %v3242
    %v4644 = vunpack.c.h.b16 %v3242
    %v4645 = vunpack.c.l.b16 %v3243
    %v4646 = vunpack.c.l.b16 %v3244
    %v4647 = vunpack.c.h.b16 %v3244
    %v4648 = vunpack.c.l.b16 %v3245
    %v4649 = vunpack.c.h.b16 %v3245
    %v4650 = vunpack.c.l.b16 %v3246
    %v4651 = vunpack.c.h.b16 %v3246
    %v4652 = vunpack.c.l.b16 %v3247
    %v4653 = vunpack.c.l.b16 %v3248
    %v4654 = vunpack.c.h.b16 %v3248
    %v4655 = vunpack.c.l.b16 %v3249
    %v4656 = vunpack.c.h.b16 %v3249
    %v4657 = vunpack.c.l.b16 %v3250
    %v4658 = vunpack.c.h.b16 %v3250
    %v4659 = vunpack.c.l.b16 %v3251
    %v4660 = vunpack.c.l.b16 %v3252
    %v4661 = vunpack.c.h.b16 %v3252
    %v4662 = vunpack.c.l.b16 %v3253
    %v4663 = vunpack.c.h.b16 %v3253
    %v4664 = vunpack.c.l.b16 %v3254
    %v4665 = vunpack.c.h.b16 %v3254
    %v4666 = vunpack.c.l.b16 %v3255
    %v4667 = vunpack.c.l.b16 %v3256
    %v4668 = vunpack.c.h.b16 %v3256
    %v4669 = vunpack.c.l.b16 %v3257
    %v4670 = vunpack.c.h.b16 %v3257
    %v4671 = vunpack.c.l.b16 %v3258
    %v4672 = vunpack.c.h.b16 %v3258
    %v4673 = vunpack.c.l.b16 %v3259
    %v4674 = vunpack.c.l.b16 %v3260
    %v4675 = vunpack.c.h.b16 %v3260
    %v4676 = vunpack.c.l.b16 %v3261
    %v4677 = vunpack.c.h.b16 %v3261
    %v4678 = vunpack.c.l.b16 %v3262
    %v4679 = vunpack.c.h.b16 %v3262
    %v4680 = vunpack.c.l.b16 %v3263
    %v4681 = vunpack.c.l.b16 %v3264
    %v4682 = vunpack.c.h.b16 %v3264
    %v4683 = vunpack.c.l.b16 %v3265
    %v4684 = vunpack.c.h.b16 %v3265
    %v4685 = vunpack.c.l.b16 %v3266
    %v4686 = vunpack.c.h.b16 %v3266
    %v4687 = vunpack.c.l.b16 %v3267
    %v4688 = vunpack.c.l.b16 %v3268
    %v4689 = vunpack.c.h.b16 %v3268
    %v4690 = vunpack.c.l.b16 %v3269
    %v4691 = vunpack.c.h.b16 %v3269
    %v4692 = vunpack.c.l.b16 %v3270
    %v4693 = vunpack.c.h.b16 %v3270
    %v4694 = vunpack.c.l.b16 %v3271
    %v4695 = vunpack.c.l.b16 %v3272
    %v4696 = vunpack.c.h.b16 %v3272
    %v4697 = vunpack.c.l.b16 %v3273
    %v4698 = vunpack.c.h.b16 %v3273
    %v4699 = vunpack.c.l.b16 %v3274
    %v4700 = vunpack.c.h.b16 %v3274
    %v4701 = vunpack.c.l.b16 %v3275
    %v4702 = vunpack.c.l.b16 %v3276
    %v4703 = vunpack.c.h.b16 %v3276
    %v4704 = vunpack.c.l.b16 %v3277
    %v4705 = vunpack.c.h.b16 %v3277
    %v4706 = vunpack.c.l.b16 %v3278
    %v4707 = vunpack.c.h.b16 %v3278
    %v4708 = vunpack.c.l.b16 %v3279
    %v4709 = vunpack.c.l.b16 %v3280
    %v4710 = vunpack.c.h.b16 %v3280
    %v4711 = vunpack.c.l.b16 %v3281
    %v4712 = vunpack.c.h.b16 %v3281
    %v4713 = vunpack.c.l.b16 %v3282
    %v4714 = vunpack.c.h.b16 %v3282
    %v4715 = vunpack.c.l.b16 %v3283
    %v4716 = vunpack.c.l.b16 %v3284
    %v4717 = vunpack.c.h.b16 %v3284
    %v4718 = vunpack.c.l.b16 %v3285
    %v4719 = vunpack.c.h.b16 %v3285
    %v4720 = vunpack.c.l.b16 %v3286
    %v4721 = vunpack.c.h.b16 %v3286
    %v4722 = vunpack.c.l.b16 %v3287
    %v4723 = vunpack.c.l.b16 %v3288
    %v4724 = vunpack.c.h.b16 %v3288
    %v4725 = vunpack.c.l.b16 %v3289
    %v4726 = vunpack.c.h.b16 %v3289
    %v4727 = vunpack.c.l.b16 %v3290
    %v4728 = vunpack.c.h.b16 %v3290
    %v4729 = vunpack.c.l.b16 %v3291
    %v4730 = vunpack.c.l.b16 %v3292
    %v4731 = vunpack.c.h.b16 %v3292
    %v4732 = vunpack.c.l.b16 %v3293
    %v4733 = vunpack.c.h.b16 %v3293
    %v4734 = vunpack.c.l.b16 %v3294
    %v4735 = vunpack.c.h.b16 %v3294
    %v4736 = vunpack.c.l.b16 %v3295
    %v4737 = vunpack.c.l.b16 %v3296
    %v4738 = vunpack.c.h.b16 %v3296
    %v4739 = vunpack.c.l.b16 %v3297
    %v4740 = vunpack.c.h.b16 %v3297
    %v4741 = vunpack.c.l.b16 %v3298
    %v4742 = vunpack.c.h.b16 %v3298
    %v4743 = vunpack.c.l.b16 %v3299
    %v4744 = vunpack.c.l.b16 %v3300
    %v4745 = vunpack.c.h.b16 %v3300
    %v4746 = vunpack.c.l.b16 %v3301
    %v4747 = vunpack.c.h.b16 %v3301
    %v4748 = vunpack.c.l.b16 %v3302
    %v4749 = vunpack.c.h.b16 %v3302
    %v4750 = vunpack.c.l.b16 %v3303
    %v4751 = vunpack.c.l.b16 %v3304
    %v4752 = vunpack.c.h.b16 %v3304
    %v4753 = vunpack.c.l.b16 %v3305
    %v4754 = vunpack.c.h.b16 %v3305
    %v4755 = vunpack.c.l.b16 %v3306
    %v4756 = vunpack.c.h.b16 %v3306
    %v4757 = vunpack.c.l.b16 %v3307
    %v4758 = vunpack.c.l.b16 %v3308
    %v4759 = vunpack.c.h.b16 %v3308
    %v4760 = vunpack.c.l.b16 %v3309
    %v4761 = vunpack.c.h.b16 %v3309
    %v4762 = vunpack.c.l.b16 %v3310
    %v4763 = vunpack.c.h.b16 %v3310
    %v4764 = vunpack.c.l.b16 %v3311
    %v4765 = vpack.c.b16 %v3876, %v3869
    %v4766 = vpack.c.b16 %v3877, %v3870
    %v4767 = vpack.c.b16 %v3878, %v3871
    %v4768 = vpack.c.b16 %v3879, %v3872
    %v4769 = vpack.c.b16 %v3880, %v3873
    %v4770 = vpack.c.b16 %v3881, %v3874
    %v4771 = vpack.c.b16 %v3882, %v3875
    %v4772 = vpack.c.b16 %v3890, %v3883
    %v4773 = vpack.c.b16 %v3891, %v3884
    %v4774 = vpack.c.b16 %v3892, %v3885
    %v4775 = vpack.c.b16 %v3893, %v3886
    %v4776 = vpack.c.b16 %v3894, %v3887
    %v4777 = vpack.c.b16 %v3895, %v3888
    %v4778 = vpack.c.b16 %v3896, %v3889
    %v4779 = vpack.c.b16 %v3904, %v3897
    %v4780 = vpack.c.b16 %v3905, %v3898
    %v4781 = vpack.c.b16 %v3906, %v3899
    %v4782 = vpack.c.b16 %v3907, %v3900
    %v4783 = vpack.c.b16 %v3908, %v3901
    %v4784 = vpack.c.b16 %v3909, %v3902
    %v4785 = vpack.c.b16 %v3910, %v3903
    %v4786 = vpack.c.b16 %v3918, %v3911
    %v4787 = vpack.c.b16 %v3919, %v3912
    %v4788 = vpack.c.b16 %v3920, %v3913
    %v4789 = vpack.c.b16 %v3921, %v3914
    %v4790 = vpack.c.b16 %v3922, %v3915
    %v4791 = vpack.c.b16 %v3923, %v3916
    %v4792 = vpack.c.b16 %v3924, %v3917
    %v4793 = vpack.c.b16 %v3932, %v3925
    %v4794 = vpack.c.b16 %v3933, %v3926
    %v4795 = vpack.c.b16 %v3934, %v3927
    %v4796 = vpack.c.b16 %v3935, %v3928
    %v4797 = vpack.c.b16 %v3936, %v3929
    %v4798 = vpack.c.b16 %v3937, %v3930
    %v4799 = vpack.c.b16 %v3938, %v3931
    %v4800 = vpack.c.b16 %v3946, %v3939
    %v4801 = vpack.c.b16 %v3947, %v3940
    %v4802 = vpack.c.b16 %v3948, %v3941
    %v4803 = vpack.c.b16 %v3949, %v3942
    %v4804 = vpack.c.b16 %v3950, %v3943
    %v4805 = vpack.c.b16 %v3951, %v3944
    %v4806 = vpack.c.b16 %v3952, %v3945
    %v4807 = vpack.c.b16 %v3960, %v3953
    %v4808 = vpack.c.b16 %v3961, %v3954
    %v4809 = vpack.c.b16 %v3962, %v3955
    %v4810 = vpack.c.b16 %v3963, %v3956
    %v4811 = vpack.c.b16 %v3964, %v3957
    %v4812 = vpack.c.b16 %v3965, %v3958
    %v4813 = vpack.c.b16 %v3966, %v3959
    %v4814 = vpack.c.b16 %v3974, %v3967
    %v4815 = vpack.c.b16 %v3975, %v3968
    %v4816 = vpack.c.b16 %v3976, %v3969
    %v4817 = vpack.c.b16 %v3977, %v3970
    %v4818 = vpack.c.b16 %v3978, %v3971
    %v4819 = vpack.c.b16 %v3979, %v3972
    %v4820 = vpack.c.b16 %v3980, %v3973
    %v4821 = vpack.c.b16 %v3988, %v3981
    %v4822 = vpack.c.b16 %v3989, %v3982
    %v4823 = vpack.c.b16 %v3990, %v3983
    %v4824 = vpack.c.b16 %v3991, %v3984
    %v4825 = vpack.c.b16 %v3992, %v3985
    %v4826 = vpack.c.b16 %v3993, %v3986
    %v4827 = vpack.c.b16 %v3994, %v3987
    %v4828 = vpack.c.b16 %v4002, %v3995
    %v4829 = vpack.c.b16 %v4003, %v3996
    %v4830 = vpack.c.b16 %v4004, %v3997
    %v4831 = vpack.c.b16 %v4005, %v3998
    %v4832 = vpack.c.b16 %v4006, %v3999
    %v4833 = vpack.c.b16 %v4007, %v4000
    %v4834 = vpack.c.b16 %v4008, %v4001
    %v4835 = vpack.c.b16 %v4016, %v4009
    %v4836 = vpack.c.b16 %v4017, %v4010
    %v4837 = vpack.c.b16 %v4018, %v4011
    %v4838 = vpack.c.b16 %v4019, %v4012
    %v4839 = vpack.c.b16 %v4020, %v4013
    %v4840 = vpack.c.b16 %v4021, %v4014
    %v4841 = vpack.c.b16 %v4022, %v4015
    %v4842 = vpack.c.b16 %v4030, %v4023
    %v4843 = vpack.c.b16 %v4031, %v4024
    %v4844 = vpack.c.b16 %v4032, %v4025
    %v4845 = vpack.c.b16 %v4033, %v4026
    %v4846 = vpack.c.b16 %v4034, %v4027
    %v4847 = vpack.c.b16 %v4035, %v4028
    %v4848 = vpack.c.b16 %v4036, %v4029
    %v4849 = vpack.c.b16 %v4044, %v4037
    %v4850 = vpack.c.b16 %v4045, %v4038
    %v4851 = vpack.c.b16 %v4046, %v4039
    %v4852 = vpack.c.b16 %v4047, %v4040
    %v4853 = vpack.c.b16 %v4048, %v4041
    %v4854 = vpack.c.b16 %v4049, %v4042
    %v4855 = vpack.c.b16 %v4050, %v4043
    %v4856 = vpack.c.b16 %v4058, %v4051
    %v4857 = vpack.c.b16 %v4059, %v4052
    %v4858 = vpack.c.b16 %v4060, %v4053
    %v4859 = vpack.c.b16 %v4061, %v4054
    %v4860 = vpack.c.b16 %v4062, %v4055
    %v4861 = vpack.c.b16 %v4063, %v4056
    %v4862 = vpack.c.b16 %v4064, %v4057
    %v4863 = vpack.c.b16 %v4072, %v4065
    %v4864 = vpack.c.b16 %v4073, %v4066
    %v4865 = vpack.c.b16 %v4074, %v4067
    %v4866 = vpack.c.b16 %v4075, %v4068
    %v4867 = vpack.c.b16 %v4076, %v4069
    %v4868 = vpack.c.b16 %v4077, %v4070
    %v4869 = vpack.c.b16 %v4078, %v4071
    %v4870 = vpack.c.b16 %v4086, %v4079
    %v4871 = vpack.c.b16 %v4087, %v4080
    %v4872 = vpack.c.b16 %v4088, %v4081
    %v4873 = vpack.c.b16 %v4089, %v4082
    %v4874 = vpack.c.b16 %v4090, %v4083
    %v4875 = vpack.c.b16 %v4091, %v4084
    %v4876 = vpack.c.b16 %v4092, %v4085
    %v4877 = vpack.c.b16 %v4100, %v4093
    %v4878 = vpack.c.b16 %v4101, %v4094
    %v4879 = vpack.c.b16 %v4102, %v4095
    %v4880 = vpack.c.b16 %v4103, %v4096
    %v4881 = vpack.c.b16 %v4104, %v4097
    %v4882 = vpack.c.b16 %v4105, %v4098
    %v4883 = vpack.c.b16 %v4106, %v4099
    %v4884 = vpack.c.b16 %v4114, %v4107
    %v4885 = vpack.c.b16 %v4115, %v4108
    %v4886 = vpack.c.b16 %v4116, %v4109
    %v4887 = vpack.c.b16 %v4117, %v4110
    %v4888 = vpack.c.b16 %v4118, %v4111
    %v4889 = vpack.c.b16 %v4119, %v4112
    %v4890 = vpack.c.b16 %v4120, %v4113
    %v4891 = vpack.c.b16 %v4128, %v4121
    %v4892 = vpack.c.b16 %v4129, %v4122
    %v4893 = vpack.c.b16 %v4130, %v4123
    %v4894 = vpack.c.b16 %v4131, %v4124
    %v4895 = vpack.c.b16 %v4132, %v4125
    %v4896 = vpack.c.b16 %v4133, %v4126
    %v4897 = vpack.c.b16 %v4134, %v4127
    %v4898 = vpack.c.b16 %v4142, %v4135
    %v4899 = vpack.c.b16 %v4143, %v4136
    %v4900 = vpack.c.b16 %v4144, %v4137
    %v4901 = vpack.c.b16 %v4145, %v4138
    %v4902 = vpack.c.b16 %v4146, %v4139
    %v4903 = vpack.c.b16 %v4147, %v4140
    %v4904 = vpack.c.b16 %v4148, %v4141
    %v4905 = vpack.c.b16 %v4156, %v4149
    %v4906 = vpack.c.b16 %v4157, %v4150
    %v4907 = vpack.c.b16 %v4158, %v4151
    %v4908 = vpack.c.b16 %v4159, %v4152
    %v4909 = vpack.c.b16 %v4160, %v4153
    %v4910 = vpack.c.b16 %v4161, %v4154
    %v4911 = vpack.c.b16 %v4162, %v4155
    %v4912 = vpack.c.b16 %v4170, %v4163
    %v4913 = vpack.c.b16 %v4171, %v4164
    %v4914 = vpack.c.b16 %v4172, %v4165
    %v4915 = vpack.c.b16 %v4173, %v4166
    %v4916 = vpack.c.b16 %v4174, %v4167
    %v4917 = vpack.c.b16 %v4175, %v4168
    %v4918 = vpack.c.b16 %v4176, %v4169
    %v4919 = vpack.c.b16 %v4184, %v4177
    %v4920 = vpack.c.b16 %v4185, %v4178
    %v4921 = vpack.c.b16 %v4186, %v4179
    %v4922 = vpack.c.b16 %v4187, %v4180
    %v4923 = vpack.c.b16 %v4188, %v4181
    %v4924 = vpack.c.b16 %v4189, %v4182
    %v4925 = vpack.c.b16 %v4190, %v4183
    %v4926 = vpack.c.b16 %v4198, %v4191
    %v4927 = vpack.c.b16 %v4199, %v4192
    %v4928 = vpack.c.b16 %v4200, %v4193
    %v4929 = vpack.c.b16 %v4201, %v4194
    %v4930 = vpack.c.b16 %v4202, %v4195
    %v4931 = vpack.c.b16 %v4203, %v4196
    %v4932 = vpack.c.b16 %v4204, %v4197
    %v4933 = vpack.c.b16 %v4212, %v4205
    %v4934 = vpack.c.b16 %v4213, %v4206
    %v4935 = vpack.c.b16 %v4214, %v4207
    %v4936 = vpack.c.b16 %v4215, %v4208
    %v4937 = vpack.c.b16 %v4216, %v4209
    %v4938 = vpack.c.b16 %v4217, %v4210
    %v4939 = vpack.c.b16 %v4218, %v4211
    %v4940 = vpack.c.b16 %v4226, %v4219
    %v4941 = vpack.c.b16 %v4227, %v4220
    %v4942 = vpack.c.b16 %v4228, %v4221
    %v4943 = vpack.c.b16 %v4229, %v4222
    %v4944 = vpack.c.b16 %v4230, %v4223
    %v4945 = vpack.c.b16 %v4231, %v4224
    %v4946 = vpack.c.b16 %v4232, %v4225
    %v4947 = vpack.c.b16 %v4240, %v4233
    %v4948 = vpack.c.b16 %v4241, %v4234
    %v4949 = vpack.c.b16 %v4242, %v4235
    %v4950 = vpack.c.b16 %v4243, %v4236
    %v4951 = vpack.c.b16 %v4244, %v4237
    %v4952 = vpack.c.b16 %v4245, %v4238
    %v4953 = vpack.c.b16 %v4246, %v4239
    %v4954 = vpack.c.b16 %v4254, %v4247
    %v4955 = vpack.c.b16 %v4255, %v4248
    %v4956 = vpack.c.b16 %v4256, %v4249
    %v4957 = vpack.c.b16 %v4257, %v4250
    %v4958 = vpack.c.b16 %v4258, %v4251
    %v4959 = vpack.c.b16 %v4259, %v4252
    %v4960 = vpack.c.b16 %v4260, %v4253
    %v4961 = vpack.c.b16 %v4268, %v4261
    %v4962 = vpack.c.b16 %v4269, %v4262
    %v4963 = vpack.c.b16 %v4270, %v4263
    %v4964 = vpack.c.b16 %v4271, %v4264
    %v4965 = vpack.c.b16 %v4272, %v4265
    %v4966 = vpack.c.b16 %v4273, %v4266
    %v4967 = vpack.c.b16 %v4274, %v4267
    %v4968 = vpack.c.b16 %v4282, %v4275
    %v4969 = vpack.c.b16 %v4283, %v4276
    %v4970 = vpack.c.b16 %v4284, %v4277
    %v4971 = vpack.c.b16 %v4285, %v4278
    %v4972 = vpack.c.b16 %v4286, %v4279
    %v4973 = vpack.c.b16 %v4287, %v4280
    %v4974 = vpack.c.b16 %v4288, %v4281
    %v4975 = vpack.c.b16 %v4296, %v4289
    %v4976 = vpack.c.b16 %v4297, %v4290
    %v4977 = vpack.c.b16 %v4298, %v4291
    %v4978 = vpack.c.b16 %v4299, %v4292
    %v4979 = vpack.c.b16 %v4300, %v4293
    %v4980 = vpack.c.b16 %v4301, %v4294
    %v4981 = vpack.c.b16 %v4302, %v4295
    %v4982 = vpack.c.b16 %v4310, %v4303
    %v4983 = vpack.c.b16 %v4311, %v4304
    %v4984 = vpack.c.b16 %v4312, %v4305
    %v4985 = vpack.c.b16 %v4313, %v4306
    %v4986 = vpack.c.b16 %v4314, %v4307
    %v4987 = vpack.c.b16 %v4315, %v4308
    %v4988 = vpack.c.b16 %v4316, %v4309
    %v4989 = vpack.c.b16 %v4324, %v4317
    %v4990 = vpack.c.b16 %v4325, %v4318
    %v4991 = vpack.c.b16 %v4326, %v4319
    %v4992 = vpack.c.b16 %v4327, %v4320
    %v4993 = vpack.c.b16 %v4328, %v4321
    %v4994 = vpack.c.b16 %v4329, %v4322
    %v4995 = vpack.c.b16 %v4330, %v4323
    %v4996 = vpack.c.b16 %v4338, %v4331
    %v4997 = vpack.c.b16 %v4339, %v4332
    %v4998 = vpack.c.b16 %v4340, %v4333
    %v4999 = vpack.c.b16 %v4341, %v4334
    %v5000 = vpack.c.b16 %v4342, %v4335
    %v5001 = vpack.c.b16 %v4343, %v4336
    %v5002 = vpack.c.b16 %v4344, %v4337
    %v5003 = vpack.c.b16 %v4352, %v4345
    %v5004 = vpack.c.b16 %v4353, %v4346
    %v5005 = vpack.c.b16 %v4354, %v4347
    %v5006 = vpack.c.b16 %v4355, %v4348
    %v5007 = vpack.c.b16 %v4356, %v4349
    %v5008 = vpack.c.b16 %v4357, %v4350
    %v5009 = vpack.c.b16 %v4358, %v4351
    %v5010 = vpack.c.b16 %v4366, %v4359
    %v5011 = vpack.c.b16 %v4367, %v4360
    %v5012 = vpack.c.b16 %v4368, %v4361
    %v5013 = vpack.c.b16 %v4369, %v4362
    %v5014 = vpack.c.b16 %v4370, %v4363
    %v5015 = vpack.c.b16 %v4371, %v4364
    %v5016 = vpack.c.b16 %v4372, %v4365
    %v5017 = vpack.c.b16 %v4380, %v4373
    %v5018 = vpack.c.b16 %v4381, %v4374
    %v5019 = vpack.c.b16 %v4382, %v4375
    %v5020 = vpack.c.b16 %v4383, %v4376
    %v5021 = vpack.c.b16 %v4384, %v4377
    %v5022 = vpack.c.b16 %v4385, %v4378
    %v5023 = vpack.c.b16 %v4386, %v4379
    %v5024 = vpack.c.b16 %v4394, %v4387
    %v5025 = vpack.c.b16 %v4395, %v4388
    %v5026 = vpack.c.b16 %v4396, %v4389
    %v5027 = vpack.c.b16 %v4397, %v4390
    %v5028 = vpack.c.b16 %v4398, %v4391
    %v5029 = vpack.c.b16 %v4399, %v4392
    %v5030 = vpack.c.b16 %v4400, %v4393
    %v5031 = vpack.c.b16 %v4408, %v4401
    %v5032 = vpack.c.b16 %v4409, %v4402
    %v5033 = vpack.c.b16 %v4410, %v4403
    %v5034 = vpack.c.b16 %v4411, %v4404
    %v5035 = vpack.c.b16 %v4412, %v4405
    %v5036 = vpack.c.b16 %v4413, %v4406
    %v5037 = vpack.c.b16 %v4414, %v4407
    %v5038 = vpack.c.b16 %v4422, %v4415
    %v5039 = vpack.c.b16 %v4423, %v4416
    %v5040 = vpack.c.b16 %v4424, %v4417
    %v5041 = vpack.c.b16 %v4425, %v4418
    %v5042 = vpack.c.b16 %v4426, %v4419
    %v5043 = vpack.c.b16 %v4427, %v4420
    %v5044 = vpack.c.b16 %v4428, %v4421
    %v5045 = vpack.c.b16 %v4436, %v4429
    %v5046 = vpack.c.b16 %v4437, %v4430
    %v5047 = vpack.c.b16 %v4438, %v4431
    %v5048 = vpack.c.b16 %v4439, %v4432
    %v5049 = vpack.c.b16 %v4440, %v4433
    %v5050 = vpack.c.b16 %v4441, %v4434
    %v5051 = vpack.c.b16 %v4442, %v4435
    %v5052 = vpack.c.b16 %v4450, %v4443
    %v5053 = vpack.c.b16 %v4451, %v4444
    %v5054 = vpack.c.b16 %v4452, %v4445
    %v5055 = vpack.c.b16 %v4453, %v4446
    %v5056 = vpack.c.b16 %v4454, %v4447
    %v5057 = vpack.c.b16 %v4455, %v4448
    %v5058 = vpack.c.b16 %v4456, %v4449
    %v5059 = vpack.c.b16 %v4464, %v4457
    %v5060 = vpack.c.b16 %v4465, %v4458
    %v5061 = vpack.c.b16 %v4466, %v4459
    %v5062 = vpack.c.b16 %v4467, %v4460
    %v5063 = vpack.c.b16 %v4468, %v4461
    %v5064 = vpack.c.b16 %v4469, %v4462
    %v5065 = vpack.c.b16 %v4470, %v4463
    %v5066 = vpack.c.b16 %v4478, %v4471
    %v5067 = vpack.c.b16 %v4479, %v4472
    %v5068 = vpack.c.b16 %v4480, %v4473
    %v5069 = vpack.c.b16 %v4481, %v4474
    %v5070 = vpack.c.b16 %v4482, %v4475
    %v5071 = vpack.c.b16 %v4483, %v4476
    %v5072 = vpack.c.b16 %v4484, %v4477
    %v5073 = vpack.c.b16 %v4492, %v4485
    %v5074 = vpack.c.b16 %v4493, %v4486
    %v5075 = vpack.c.b16 %v4494, %v4487
    %v5076 = vpack.c.b16 %v4495, %v4488
    %v5077 = vpack.c.b16 %v4496, %v4489
    %v5078 = vpack.c.b16 %v4497, %v4490
    %v5079 = vpack.c.b16 %v4498, %v4491
    %v5080 = vpack.c.b16 %v4506, %v4499
    %v5081 = vpack.c.b16 %v4507, %v4500
    %v5082 = vpack.c.b16 %v4508, %v4501
    %v5083 = vpack.c.b16 %v4509, %v4502
    %v5084 = vpack.c.b16 %v4510, %v4503
    %v5085 = vpack.c.b16 %v4511, %v4504
    %v5086 = vpack.c.b16 %v4512, %v4505
    %v5087 = vpack.c.b16 %v4520, %v4513
    %v5088 = vpack.c.b16 %v4521, %v4514
    %v5089 = vpack.c.b16 %v4522, %v4515
    %v5090 = vpack.c.b16 %v4523, %v4516
    %v5091 = vpack.c.b16 %v4524, %v4517
    %v5092 = vpack.c.b16 %v4525, %v4518
    %v5093 = vpack.c.b16 %v4526, %v4519
    %v5094 = vpack.c.b16 %v4534, %v4527
    %v5095 = vpack.c.b16 %v4535, %v4528
    %v5096 = vpack.c.b16 %v4536, %v4529
    %v5097 = vpack.c.b16 %v4537, %v4530
    %v5098 = vpack.c.b16 %v4538, %v4531
    %v5099 = vpack.c.b16 %v4539, %v4532
    %v5100 = vpack.c.b16 %v4540, %v4533
    %v5101 = vpack.c.b16 %v4548, %v4541
    %v5102 = vpack.c.b16 %v4549, %v4542
    %v5103 = vpack.c.b16 %v4550, %v4543
    %v5104 = vpack.c.b16 %v4551, %v4544
    %v5105 = vpack.c.b16 %v4552, %v4545
    %v5106 = vpack.c.b16 %v4553, %v4546
    %v5107 = vpack.c.b16 %v4554, %v4547
    %v5108 = vpack.c.b16 %v4562, %v4555
    %v5109 = vpack.c.b16 %v4563, %v4556
    %v5110 = vpack.c.b16 %v4564, %v4557
    %v5111 = vpack.c.b16 %v4565, %v4558
    %v5112 = vpack.c.b16 %v4566, %v4559
    %v5113 = vpack.c.b16 %v4567, %v4560
    %v5114 = vpack.c.b16 %v4568, %v4561
    %v5115 = vpack.c.b16 %v4576, %v4569
    %v5116 = vpack.c.b16 %v4577, %v4570
    %v5117 = vpack.c.b16 %v4578, %v4571
    %v5118 = vpack.c.b16 %v4579, %v4572
    %v5119 = vpack.c.b16 %v4580, %v4573
    %v5120 = vpack.c.b16 %v4581, %v4574
    %v5121 = vpack.c.b16 %v4582, %v4575
    %v5122 = vpack.c.b16 %v4590, %v4583
    %v5123 = vpack.c.b16 %v4591, %v4584
    %v5124 = vpack.c.b16 %v4592, %v4585
    %v5125 = vpack.c.b16 %v4593, %v4586
    %v5126 = vpack.c.b16 %v4594, %v4587
    %v5127 = vpack.c.b16 %v4595, %v4588
    %v5128 = vpack.c.b16 %v4596, %v4589
    %v5129 = vpack.c.b16 %v4604, %v4597
    %v5130 = vpack.c.b16 %v4605, %v4598
    %v5131 = vpack.c.b16 %v4606, %v4599
    %v5132 = vpack.c.b16 %v4607, %v4600
    %v5133 = vpack.c.b16 %v4608, %v4601
    %v5134 = vpack.c.b16 %v4609, %v4602
    %v5135 = vpack.c.b16 %v4610, %v4603
    %v5136 = vpack.c.b16 %v4618, %v4611
    %v5137 = vpack.c.b16 %v4619, %v4612
    %v5138 = vpack.c.b16 %v4620, %v4613
    %v5139 = vpack.c.b16 %v4621, %v4614
    %v5140 = vpack.c.b16 %v4622, %v4615
    %v5141 = vpack.c.b16 %v4623, %v4616
    %v5142 = vpack.c.b16 %v4624, %v4617
    %v5143 = vpack.c.b16 %v4632, %v4625
    %v5144 = vpack.c.b16 %v4633, %v4626
    %v5145 = vpack.c.b16 %v4634, %v4627
    %v5146 = vpack.c.b16 %v4635, %v4628
    %v5147 = vpack.c.b16 %v4636, %v4629
    %v5148 = vpack.c.b16 %v4637, %v4630
    %v5149 = vpack.c.b16 %v4638, %v4631
    %v5150 = vpack.c.b16 %v4646, %v4639
    %v5151 = vpack.c.b16 %v4647, %v4640
    %v5152 = vpack.c.b16 %v4648, %v4641
    %v5153 = vpack.c.b16 %v4649, %v4642
    %v5154 = vpack.c.b16 %v4650, %v4643
    %v5155 = vpack.c.b16 %v4651, %v4644
    %v5156 = vpack.c.b16 %v4652, %v4645
    %v5157 = vpack.c.b16 %v4660, %v4653
    %v5158 = vpack.c.b16 %v4661, %v4654
    %v5159 = vpack.c.b16 %v4662, %v4655
    %v5160 = vpack.c.b16 %v4663, %v4656
    %v5161 = vpack.c.b16 %v4664, %v4657
    %v5162 = vpack.c.b16 %v4665, %v4658
    %v5163 = vpack.c.b16 %v4666, %v4659
    %v5164 = vpack.c.b16 %v4674, %v4667
    %v5165 = vpack.c.b16 %v4675, %v4668
    %v5166 = vpack.c.b16 %v4676, %v4669
    %v5167 = vpack.c.b16 %v4677, %v4670
    %v5168 = vpack.c.b16 %v4678, %v4671
    %v5169 = vpack.c.b16 %v4679, %v4672
    %v5170 = vpack.c.b16 %v4680, %v4673
    %v5171 = vpack.c.b16 %v4688, %v4681
    %v5172 = vpack.c.b16 %v4689, %v4682
    %v5173 = vpack.c.b16 %v4690, %v4683
    %v5174 = vpack.c.b16 %v4691, %v4684
    %v5175 = vpack.c.b16 %v4692, %v4685
    %v5176 = vpack.c.b16 %v4693, %v4686
    %v5177 = vpack.c.b16 %v4694, %v4687
    %v5178 = vpack.c.b16 %v4702, %v4695
    %v5179 = vpack.c.b16 %v4703, %v4696
    %v5180 = vpack.c.b16 %v4704, %v4697
    %v5181 = vpack.c.b16 %v4705, %v4698
    %v5182 = vpack.c.b16 %v4706, %v4699
    %v5183 = vpack.c.b16 %v4707, %v4700
    %v5184 = vpack.c.b16 %v4708, %v4701
    %v5185 = vpack.c.b16 %v4716, %v4709
    %v5186 = vpack.c.b16 %v4717, %v4710
    %v5187 = vpack.c.b16 %v4718, %v4711
    %v5188 = vpack.c.b16 %v4719, %v4712
    %v5189 = vpack.c.b16 %v4720, %v4713
    %v5190 = vpack.c.b16 %v4721, %v4714
    %v5191 = vpack.c.b16 %v4722, %v4715
    %v5192 = vpack.c.b16 %v4730, %v4723
    %v5193 = vpack.c.b16 %v4731, %v4724
    %v5194 = vpack.c.b16 %v4732, %v4725
    %v5195 = vpack.c.b16 %v4733, %v4726
    %v5196 = vpack.c.b16 %v4734, %v4727
    %v5197 = vpack.c.b16 %v4735, %v4728
    %v5198 = vpack.c.b16 %v4736, %v4729
    %v5199 = vpack.c.b16 %v4744, %v4737
    %v5200 = vpack.c.b16 %v4745, %v4738
    %v5201 = vpack.c.b16 %v4746, %v4739
    %v5202 = vpack.c.b16 %v4747, %v4740
    %v5203 = vpack.c.b16 %v4748, %v4741
    %v5204 = vpack.c.b16 %v4749, %v4742
    %v5205 = vpack.c.b16 %v4750, %v4743
    %v5206 = vpack.c.b16 %v4758, %v4751
    %v5207 = vpack.c.b16 %v4759, %v4752
    %v5208 = vpack.c.b16 %v4760, %v4753
    %v5209 = vpack.c.b16 %v4761, %v4754
    %v5210 = vpack.c.b16 %v4762, %v4755
    %v5211 = vpack.c.b16 %v4763, %v4756
    %v5212 = vpack.c.b16 %v4764, %v4757
    %5661 = vmatprep.subr.bf16.mxu0 %v4815
    %5662 = vmatpush1.bf16.msra.mxu0 %v4814
    %5663 = vmatprep.subr.bf16.mxu0 %v4808
    %5664 = vmatpush1.bf16.msra.mxu0 %v4807
    %5665 = vmatprep.subr.bf16.mxu0 %v4801
    %5666 = vmatpush1.bf16.msra.mxu0 %v4800
    %5667 = vmatprep.subr.bf16.mxu0 %v4794
    %5668 = vmatpush1.bf16.msra.mxu0 %v4793
    %5669 = vmatprep.subr.bf16.mxu0 %v4787
    %5670 = vmatpush1.bf16.msra.mxu0 %v4786
    %5671 = vmatprep.subr.bf16.mxu0 %v4780
    %5672 = vmatpush1.bf16.msra.mxu0 %v4779
    %5673 = vmatprep.subr.bf16.mxu0 %v4773
    %5674 = vmatpush1.bf16.msra.mxu0 %v4772
    %5675 = vmatprep.subr.bf16.mxu0 %v4766
    %5676 = vmatpush1.bf16.msra.mxu0 %v4765
    %5677 = vmatprep.subr.bf16.mxu0 %v4871
    %5678 = vmatpush2.bf16.msra.mxu0 %v4870
    %5679 = vmatprep.subr.bf16.mxu0 %v4864
    %5680 = vmatpush2.bf16.msra.mxu0 %v4863
    %5681 = vmatprep.subr.bf16.mxu0 %v4857
    %5682 = vmatpush2.bf16.msra.mxu0 %v4856
    %5683 = vmatprep.subr.bf16.mxu0 %v4850
    %5684 = vmatpush2.bf16.msra.mxu0 %v4849
    %5685 = vmatprep.subr.bf16.mxu0 %v4843
    %5686 = vmatpush2.bf16.msra.mxu0 %v4842
    %5687 = vmatprep.subr.bf16.mxu0 %v4836
    %5688 = vmatpush2.bf16.msra.mxu0 %v4835
    %5689 = vmatprep.subr.bf16.mxu0 %v4829
    %5690 = vmatpush2.bf16.msra.mxu0 %v4828
    %5691 = vmatprep.subr.bf16.mxu0 %v4822
    %5692 = vmatpush2.bf16.msra.mxu0 %v4821
    %5693 = vmatprep.mubr.bf16.mxu0 %v3313
    %5694 = vmatmul.mubr.bf16.gmra.mxu0 %v3312
    %v5695 = vpop.f32.mrf.mxu0
    %v5696 = vadd.f32 %v3325, %v5695
    %v5697 = vpop.f32.mrf.mxu0
    %v5698 = vadd.f32 %v3329, %v5697
    %v5699 = vpop.f32.mrf.mxu0
    %v5700 = vpop.f32.mrf.mxu0
    %5701 = vdwg.mxu0
    %5702 = vmatprep.subr.bf16.mxu0 %v4927
    %5703 = vmatpush1.bf16.msra.mxu0 %v4926
    %5704 = vmatprep.subr.bf16.mxu0 %v4920
    %5705 = vmatpush1.bf16.msra.mxu0 %v4919
    %5706 = vmatprep.subr.bf16.mxu0 %v4913
    %5707 = vmatpush1.bf16.msra.mxu0 %v4912
    %5708 = vmatprep.subr.bf16.mxu0 %v4906
    %5709 = vmatpush1.bf16.msra.mxu0 %v4905
    %5710 = vmatprep.subr.bf16.mxu0 %v4899
    %5711 = vmatpush1.bf16.msra.mxu0 %v4898
    %5712 = vmatprep.subr.bf16.mxu0 %v4892
    %5713 = vmatpush1.bf16.msra.mxu0 %v4891
    %5714 = vmatprep.subr.bf16.mxu0 %v4885
    %5715 = vmatpush1.bf16.msra.mxu0 %v4884
    %5716 = vmatprep.subr.bf16.mxu0 %v4878
    %5717 = vmatpush1.bf16.msra.mxu0 %v4877
    %5718 = vmatprep.subr.bf16.mxu0 %v4983
    %5719 = vmatpush2.bf16.msra.mxu0 %v4982
    %5720 = vmatprep.subr.bf16.mxu0 %v4976
    %5721 = vmatpush2.bf16.msra.mxu0 %v4975
    %5722 = vmatprep.subr.bf16.mxu0 %v4969
    %5723 = vmatpush2.bf16.msra.mxu0 %v4968
    %5724 = vmatprep.subr.bf16.mxu0 %v4962
    %5725 = vmatpush2.bf16.msra.mxu0 %v4961
    %5726 = vmatprep.subr.bf16.mxu0 %v4955
    %5727 = vmatpush2.bf16.msra.mxu0 %v4954
    %5728 = vmatprep.subr.bf16.mxu0 %v4948
    %5729 = vmatpush2.bf16.msra.mxu0 %v4947
    %5730 = vmatprep.subr.bf16.mxu0 %v4941
    %5731 = vmatpush2.bf16.msra.mxu0 %v4940
    %5732 = vmatprep.subr.bf16.mxu0 %v4934
    %5733 = vmatpush2.bf16.msra.mxu0 %v4933
    %5734 = vmatprep.mubr.bf16.mxu0 %v3315
    %5735 = vmatmul.mubr.bf16.gmra.mxu0 %v3314
    %v5736 = vpop.f32.mrf.mxu0
    %v5737 = vadd.f32 %v5696, %v5736
    %v5738 = vpop.f32.mrf.mxu0
    %v5739 = vadd.f32 %v5698, %v5738
    %v5740 = vpop.f32.mrf.mxu0
    %v5741 = vpop.f32.mrf.mxu0
    %5742 = vdwg.mxu0
    %5743 = vmatprep.subr.bf16.mxu0 %v5039
    %5744 = vmatpush1.bf16.msra.mxu0 %v5038
    %5745 = vmatprep.subr.bf16.mxu0 %v5032
    %5746 = vmatpush1.bf16.msra.mxu0 %v5031
    %5747 = vmatprep.subr.bf16.mxu0 %v5025
    %5748 = vmatpush1.bf16.msra.mxu0 %v5024
    %5749 = vmatprep.subr.bf16.mxu0 %v5018
    %5750 = vmatpush1.bf16.msra.mxu0 %v5017
    %5751 = vmatprep.subr.bf16.mxu0 %v5011
    %5752 = vmatpush1.bf16.msra.mxu0 %v5010
    %5753 = vmatprep.subr.bf16.mxu0 %v5004
    %5754 = vmatpush1.bf16.msra.mxu0 %v5003
    %5755 = vmatprep.subr.bf16.mxu0 %v4997
    %5756 = vmatpush1.bf16.msra.mxu0 %v4996
    %5757 = vmatprep.subr.bf16.mxu0 %v4990
    %5758 = vmatpush1.bf16.msra.mxu0 %v4989
    %5759 = vmatprep.subr.bf16.mxu0 %v5095
    %5760 = vmatpush2.bf16.msra.mxu0 %v5094
    %5761 = vmatprep.subr.bf16.mxu0 %v5088
    %5762 = vmatpush2.bf16.msra.mxu0 %v5087
    %5763 = vmatprep.subr.bf16.mxu0 %v5081
    %5764 = vmatpush2.bf16.msra.mxu0 %v5080
    %5765 = vmatprep.subr.bf16.mxu0 %v5074
    %5766 = vmatpush2.bf16.msra.mxu0 %v5073
    %5767 = vmatprep.subr.bf16.mxu0 %v5067
    %5768 = vmatpush2.bf16.msra.mxu0 %v5066
    %5769 = vmatprep.subr.bf16.mxu0 %v5060
    %5770 = vmatpush2.bf16.msra.mxu0 %v5059
    %5771 = vmatprep.subr.bf16.mxu0 %v5053
    %5772 = vmatpush2.bf16.msra.mxu0 %v5052
    %5773 = vmatprep.subr.bf16.mxu0 %v5046
    %5774 = vmatpush2.bf16.msra.mxu0 %v5045
    %5775 = vmatprep.mubr.bf16.mxu0 %v3317
    %5776 = vmatmul.mubr.bf16.gmra.mxu0 %v3316
    %v5777 = vpop.f32.mrf.mxu0
    %v5778 = vadd.f32 %v5737, %v5777
    %v5779 = vpop.f32.mrf.mxu0
    %v5780 = vadd.f32 %v5739, %v5779
    %v5781 = vpop.f32.mrf.mxu0
    %v5782 = vpop.f32.mrf.mxu0
    %5783 = vdwg.mxu0
    %5784 = vmatprep.subr.bf16.mxu0 %v5151
    %5785 = vmatpush1.bf16.msra.mxu0 %v5150
    %5786 = vmatprep.subr.bf16.mxu0 %v5144
    %5787 = vmatpush1.bf16.msra.mxu0 %v5143
    %5788 = vmatprep.subr.bf16.mxu0 %v5137
    %5789 = vmatpush1.bf16.msra.mxu0 %v5136
    %5790 = vmatprep.subr.bf16.mxu0 %v5130
    %5791 = vmatpush1.bf16.msra.mxu0 %v5129
    %5792 = vmatprep.subr.bf16.mxu0 %v5123
    %5793 = vmatpush1.bf16.msra.mxu0 %v5122
    %5794 = vmatprep.subr.bf16.mxu0 %v5116
    %5795 = vmatpush1.bf16.msra.mxu0 %v5115
    %5796 = vmatprep.subr.bf16.mxu0 %v5109
    %5797 = vmatpush1.bf16.msra.mxu0 %v5108
    %5798 = vmatprep.subr.bf16.mxu0 %v5102
    %5799 = vmatpush1.bf16.msra.mxu0 %v5101
    %5800 = vmatprep.subr.bf16.mxu0 %v5207
    %5801 = vmatpush2.bf16.msra.mxu0 %v5206
    %5802 = vmatprep.subr.bf16.mxu0 %v5200
    %5803 = vmatpush2.bf16.msra.mxu0 %v5199
    %5804 = vmatprep.subr.bf16.mxu0 %v5193
    %5805 = vmatpush2.bf16.msra.mxu0 %v5192
    %5806 = vmatprep.subr.bf16.mxu0 %v5186
    %5807 = vmatpush2.bf16.msra.mxu0 %v5185
    %5808 = vmatprep.subr.bf16.mxu0 %v5179
    %5809 = vmatpush2.bf16.msra.mxu0 %v5178
    %5810 = vmatprep.subr.bf16.mxu0 %v5172
    %5811 = vmatpush2.bf16.msra.mxu0 %v5171
    %5812 = vmatprep.subr.bf16.mxu0 %v5165
    %5813 = vmatpush2.bf16.msra.mxu0 %v5164
    %5814 = vmatprep.subr.bf16.mxu0 %v5158
    %5815 = vmatpush2.bf16.msra.mxu0 %v5157
    %5816 = vmatprep.mubr.bf16.mxu0 %v3319
    %5817 = vmatmul.mubr.bf16.gmra.mxu0 %v3318
    %v5818 = vpop.f32.mrf.mxu0
    %v5819 = vadd.f32 %v5778, %v5818
    %v5820 = vpop.f32.mrf.mxu0
    %v5821 = vadd.f32 %v5780, %v5820
    %v5822 = vpop.f32.mrf.mxu0
    %v5823 = vpop.f32.mrf.mxu0
    %5824 = vdwg.mxu0
    %5825 = vmatprep.subr.bf16.mxu0 %v4817
    %5826 = vmatpush1.bf16.msra.mxu0 %v4816
    %5827 = vmatprep.subr.bf16.mxu0 %v4810
    %5828 = vmatpush1.bf16.msra.mxu0 %v4809
    %5829 = vmatprep.subr.bf16.mxu0 %v4803
    %5830 = vmatpush1.bf16.msra.mxu0 %v4802
    %5831 = vmatprep.subr.bf16.mxu0 %v4796
    %5832 = vmatpush1.bf16.msra.mxu0 %v4795
    %5833 = vmatprep.subr.bf16.mxu0 %v4789
    %5834 = vmatpush1.bf16.msra.mxu0 %v4788
    %5835 = vmatprep.subr.bf16.mxu0 %v4782
    %5836 = vmatpush1.bf16.msra.mxu0 %v4781
    %5837 = vmatprep.subr.bf16.mxu0 %v4775
    %5838 = vmatpush1.bf16.msra.mxu0 %v4774
    %5839 = vmatprep.subr.bf16.mxu0 %v4768
    %5840 = vmatpush1.bf16.msra.mxu0 %v4767
    %5841 = vmatprep.subr.bf16.mxu0 %v4873
    %5842 = vmatpush2.bf16.msra.mxu0 %v4872
    %5843 = vmatprep.subr.bf16.mxu0 %v4866
    %5844 = vmatpush2.bf16.msra.mxu0 %v4865
    %5845 = vmatprep.subr.bf16.mxu0 %v4859
    %5846 = vmatpush2.bf16.msra.mxu0 %v4858
    %5847 = vmatprep.subr.bf16.mxu0 %v4852
    %5848 = vmatpush2.bf16.msra.mxu0 %v4851
    %5849 = vmatprep.subr.bf16.mxu0 %v4845
    %5850 = vmatpush2.bf16.msra.mxu0 %v4844
    %5851 = vmatprep.subr.bf16.mxu0 %v4838
    %5852 = vmatpush2.bf16.msra.mxu0 %v4837
    %5853 = vmatprep.subr.bf16.mxu0 %v4831
    %5854 = vmatpush2.bf16.msra.mxu0 %v4830
    %5855 = vmatprep.subr.bf16.mxu0 %v4824
    %5856 = vmatpush2.bf16.msra.mxu0 %v4823
    %5857 = vmatprep.mubr.bf16.mxu0 %v3313
    %5858 = vmatmul.mubr.bf16.gmra.mxu0 %v3312
    %v5859 = vpop.f32.mrf.mxu0
    %v5860 = vadd.f32 %v3333, %v5859
    %v5861 = vpop.f32.mrf.mxu0
    %v5862 = vadd.f32 %v3337, %v5861
    %v5863 = vpop.f32.mrf.mxu0
    %v5864 = vpop.f32.mrf.mxu0
    %5865 = vdwg.mxu0
    %5866 = vmatprep.subr.bf16.mxu0 %v4929
    %5867 = vmatpush1.bf16.msra.mxu0 %v4928
    %5868 = vmatprep.subr.bf16.mxu0 %v4922
    %5869 = vmatpush1.bf16.msra.mxu0 %v4921
    %5870 = vmatprep.subr.bf16.mxu0 %v4915
    %5871 = vmatpush1.bf16.msra.mxu0 %v4914
    %5872 = vmatprep.subr.bf16.mxu0 %v4908
    %5873 = vmatpush1.bf16.msra.mxu0 %v4907
    %5874 = vmatprep.subr.bf16.mxu0 %v4901
    %5875 = vmatpush1.bf16.msra.mxu0 %v4900
    %5876 = vmatprep.subr.bf16.mxu0 %v4894
    %5877 = vmatpush1.bf16.msra.mxu0 %v4893
    %5878 = vmatprep.subr.bf16.mxu0 %v4887
    %5879 = vmatpush1.bf16.msra.mxu0 %v4886
    %5880 = vmatprep.subr.bf16.mxu0 %v4880
    %5881 = vmatpush1.bf16.msra.mxu0 %v4879
    %5882 = vmatprep.subr.bf16.mxu0 %v4985
    %5883 = vmatpush2.bf16.msra.mxu0 %v4984
    %5884 = vmatprep.subr.bf16.mxu0 %v4978
    %5885 = vmatpush2.bf16.msra.mxu0 %v4977
    %5886 = vmatprep.subr.bf16.mxu0 %v4971
    %5887 = vmatpush2.bf16.msra.mxu0 %v4970
    %5888 = vmatprep.subr.bf16.mxu0 %v4964
    %5889 = vmatpush2.bf16.msra.mxu0 %v4963
    %5890 = vmatprep.subr.bf16.mxu0 %v4957
    %5891 = vmatpush2.bf16.msra.mxu0 %v4956
    %5892 = vmatprep.subr.bf16.mxu0 %v4950
    %5893 = vmatpush2.bf16.msra.mxu0 %v4949
    %5894 = vmatprep.subr.bf16.mxu0 %v4943
    %5895 = vmatpush2.bf16.msra.mxu0 %v4942
    %5896 = vmatprep.subr.bf16.mxu0 %v4936
    %5897 = vmatpush2.bf16.msra.mxu0 %v4935
    %5898 = vmatprep.mubr.bf16.mxu0 %v3315
    %5899 = vmatmul.mubr.bf16.gmra.mxu0 %v3314
    %v5900 = vpop.f32.mrf.mxu0
    %v5901 = vadd.f32 %v5860, %v5900
    %v5902 = vpop.f32.mrf.mxu0
    %v5903 = vadd.f32 %v5862, %v5902
    %v5904 = vpop.f32.mrf.mxu0
    %v5905 = vpop.f32.mrf.mxu0
    %5906 = vdwg.mxu0
    %5907 = vmatprep.subr.bf16.mxu0 %v5041
    %5908 = vmatpush1.bf16.msra.mxu0 %v5040
    %5909 = vmatprep.subr.bf16.mxu0 %v5034
    %5910 = vmatpush1.bf16.msra.mxu0 %v5033
    %5911 = vmatprep.subr.bf16.mxu0 %v5027
    %5912 = vmatpush1.bf16.msra.mxu0 %v5026
    %5913 = vmatprep.subr.bf16.mxu0 %v5020
    %5914 = vmatpush1.bf16.msra.mxu0 %v5019
    %5915 = vmatprep.subr.bf16.mxu0 %v5013
    %5916 = vmatpush1.bf16.msra.mxu0 %v5012
    %5917 = vmatprep.subr.bf16.mxu0 %v5006
    %5918 = vmatpush1.bf16.msra.mxu0 %v5005
    %5919 = vmatprep.subr.bf16.mxu0 %v4999
    %5920 = vmatpush1.bf16.msra.mxu0 %v4998
    %5921 = vmatprep.subr.bf16.mxu0 %v4992
    %5922 = vmatpush1.bf16.msra.mxu0 %v4991
    %5923 = vmatprep.subr.bf16.mxu0 %v5097
    %5924 = vmatpush2.bf16.msra.mxu0 %v5096
    %5925 = vmatprep.subr.bf16.mxu0 %v5090
    %5926 = vmatpush2.bf16.msra.mxu0 %v5089
    %5927 = vmatprep.subr.bf16.mxu0 %v5083
    %5928 = vmatpush2.bf16.msra.mxu0 %v5082
    %5929 = vmatprep.subr.bf16.mxu0 %v5076
    %5930 = vmatpush2.bf16.msra.mxu0 %v5075
    %5931 = vmatprep.subr.bf16.mxu0 %v5069
    %5932 = vmatpush2.bf16.msra.mxu0 %v5068
    %5933 = vmatprep.subr.bf16.mxu0 %v5062
    %5934 = vmatpush2.bf16.msra.mxu0 %v5061
    %5935 = vmatprep.subr.bf16.mxu0 %v5055
    %5936 = vmatpush2.bf16.msra.mxu0 %v5054
    %5937 = vmatprep.subr.bf16.mxu0 %v5048
    %5938 = vmatpush2.bf16.msra.mxu0 %v5047
    %5939 = vmatprep.mubr.bf16.mxu0 %v3317
    %5940 = vmatmul.mubr.bf16.gmra.mxu0 %v3316
    %v5941 = vpop.f32.mrf.mxu0
    %v5942 = vadd.f32 %v5901, %v5941
    %v5943 = vpop.f32.mrf.mxu0
    %v5944 = vadd.f32 %v5903, %v5943
    %v5945 = vpop.f32.mrf.mxu0
    %v5946 = vpop.f32.mrf.mxu0
    %5947 = vdwg.mxu0
    %5948 = vmatprep.subr.bf16.mxu0 %v5153
    %5949 = vmatpush1.bf16.msra.mxu0 %v5152
    %5950 = vmatprep.subr.bf16.mxu0 %v5146
    %5951 = vmatpush1.bf16.msra.mxu0 %v5145
    %5952 = vmatprep.subr.bf16.mxu0 %v5139
    %5953 = vmatpush1.bf16.msra.mxu0 %v5138
    %5954 = vmatprep.subr.bf16.mxu0 %v5132
    %5955 = vmatpush1.bf16.msra.mxu0 %v5131
    %5956 = vmatprep.subr.bf16.mxu0 %v5125
    %5957 = vmatpush1.bf16.msra.mxu0 %v5124
    %5958 = vmatprep.subr.bf16.mxu0 %v5118
    %5959 = vmatpush1.bf16.msra.mxu0 %v5117
    %5960 = vmatprep.subr.bf16.mxu0 %v5111
    %5961 = vmatpush1.bf16.msra.mxu0 %v5110
    %5962 = vmatprep.subr.bf16.mxu0 %v5104
    %5963 = vmatpush1.bf16.msra.mxu0 %v5103
    %5964 = vmatprep.subr.bf16.mxu0 %v5209
    %5965 = vmatpush2.bf16.msra.mxu0 %v5208
    %5966 = vmatprep.subr.bf16.mxu0 %v5202
    %5967 = vmatpush2.bf16.msra.mxu0 %v5201
    %5968 = vmatprep.subr.bf16.mxu0 %v5195
    %5969 = vmatpush2.bf16.msra.mxu0 %v5194
    %5970 = vmatprep.subr.bf16.mxu0 %v5188
    %5971 = vmatpush2.bf16.msra.mxu0 %v5187
    %5972 = vmatprep.subr.bf16.mxu0 %v5181
    %5973 = vmatpush2.bf16.msra.mxu0 %v5180
    %5974 = vmatprep.subr.bf16.mxu0 %v5174
    %5975 = vmatpush2.bf16.msra.mxu0 %v5173
    %5976 = vmatprep.subr.bf16.mxu0 %v5167
    %5977 = vmatpush2.bf16.msra.mxu0 %v5166
    %5978 = vmatprep.subr.bf16.mxu0 %v5160
    %5979 = vmatpush2.bf16.msra.mxu0 %v5159
    %5980 = vmatprep.mubr.bf16.mxu0 %v3319
    %5981 = vmatmul.mubr.bf16.gmra.mxu0 %v3318
    %v5982 = vpop.f32.mrf.mxu0
    %v5983 = vadd.f32 %v5942, %v5982
    %v5984 = vpop.f32.mrf.mxu0
    %v5985 = vadd.f32 %v5944, %v5984
    %v5986 = vpop.f32.mrf.mxu0
    %v5987 = vpop.f32.mrf.mxu0
    %5988 = vdwg.mxu0
    %5989 = vmatprep.subr.bf16.mxu0 %v4819
    %5990 = vmatpush1.bf16.msra.mxu0 %v4818
    %5991 = vmatprep.subr.bf16.mxu0 %v4812
    %5992 = vmatpush1.bf16.msra.mxu0 %v4811
    %5993 = vmatprep.subr.bf16.mxu0 %v4805
    %5994 = vmatpush1.bf16.msra.mxu0 %v4804
    %5995 = vmatprep.subr.bf16.mxu0 %v4798
    %5996 = vmatpush1.bf16.msra.mxu0 %v4797
    %5997 = vmatprep.subr.bf16.mxu0 %v4791
    %5998 = vmatpush1.bf16.msra.mxu0 %v4790
    %5999 = vmatprep.subr.bf16.mxu0 %v4784
    %6000 = vmatpush1.bf16.msra.mxu0 %v4783
    %6001 = vmatprep.subr.bf16.mxu0 %v4777
    %6002 = vmatpush1.bf16.msra.mxu0 %v4776
    %6003 = vmatprep.subr.bf16.mxu0 %v4770
    %6004 = vmatpush1.bf16.msra.mxu0 %v4769
    %6005 = vmatprep.subr.bf16.mxu0 %v4875
    %6006 = vmatpush2.bf16.msra.mxu0 %v4874
    %6007 = vmatprep.subr.bf16.mxu0 %v4868
    %6008 = vmatpush2.bf16.msra.mxu0 %v4867
    %6009 = vmatprep.subr.bf16.mxu0 %v4861
    %6010 = vmatpush2.bf16.msra.mxu0 %v4860
    %6011 = vmatprep.subr.bf16.mxu0 %v4854
    %6012 = vmatpush2.bf16.msra.mxu0 %v4853
    %6013 = vmatprep.subr.bf16.mxu0 %v4847
    %6014 = vmatpush2.bf16.msra.mxu0 %v4846
    %6015 = vmatprep.subr.bf16.mxu0 %v4840
    %6016 = vmatpush2.bf16.msra.mxu0 %v4839
    %6017 = vmatprep.subr.bf16.mxu0 %v4833
    %6018 = vmatpush2.bf16.msra.mxu0 %v4832
    %6019 = vmatprep.subr.bf16.mxu0 %v4826
    %6020 = vmatpush2.bf16.msra.mxu0 %v4825
    %6021 = vmatprep.mubr.bf16.mxu0 %v3313
    %6022 = vmatmul.mubr.bf16.gmra.mxu0 %v3312
    %v6023 = vpop.f32.mrf.mxu0
    %v6024 = vadd.f32 %v3341, %v6023
    %v6025 = vpop.f32.mrf.mxu0
    %v6026 = vadd.f32 %v3345, %v6025
    %v6027 = vpop.f32.mrf.mxu0
    %v6028 = vpop.f32.mrf.mxu0
    %6029 = vdwg.mxu0
    %6030 = vmatprep.subr.bf16.mxu0 %v4931
    %6031 = vmatpush1.bf16.msra.mxu0 %v4930
    %6032 = vmatprep.subr.bf16.mxu0 %v4924
    %6033 = vmatpush1.bf16.msra.mxu0 %v4923
    %6034 = vmatprep.subr.bf16.mxu0 %v4917
    %6035 = vmatpush1.bf16.msra.mxu0 %v4916
    %6036 = vmatprep.subr.bf16.mxu0 %v4910
    %6037 = vmatpush1.bf16.msra.mxu0 %v4909
    %6038 = vmatprep.subr.bf16.mxu0 %v4903
    %6039 = vmatpush1.bf16.msra.mxu0 %v4902
    %6040 = vmatprep.subr.bf16.mxu0 %v4896
    %6041 = vmatpush1.bf16.msra.mxu0 %v4895
    %6042 = vmatprep.subr.bf16.mxu0 %v4889
    %6043 = vmatpush1.bf16.msra.mxu0 %v4888
    %6044 = vmatprep.subr.bf16.mxu0 %v4882
    %6045 = vmatpush1.bf16.msra.mxu0 %v4881
    %6046 = vmatprep.subr.bf16.mxu0 %v4987
    %6047 = vmatpush2.bf16.msra.mxu0 %v4986
    %6048 = vmatprep.subr.bf16.mxu0 %v4980
    %6049 = vmatpush2.bf16.msra.mxu0 %v4979
    %6050 = vmatprep.subr.bf16.mxu0 %v4973
    %6051 = vmatpush2.bf16.msra.mxu0 %v4972
    %6052 = vmatprep.subr.bf16.mxu0 %v4966
    %6053 = vmatpush2.bf16.msra.mxu0 %v4965
    %6054 = vmatprep.subr.bf16.mxu0 %v4959
    %6055 = vmatpush2.bf16.msra.mxu0 %v4958
    %6056 = vmatprep.subr.bf16.mxu0 %v4952
    %6057 = vmatpush2.bf16.msra.mxu0 %v4951
    %6058 = vmatprep.subr.bf16.mxu0 %v4945
    %6059 = vmatpush2.bf16.msra.mxu0 %v4944
    %6060 = vmatprep.subr.bf16.mxu0 %v4938
    %6061 = vmatpush2.bf16.msra.mxu0 %v4937
    %6062 = vmatprep.mubr.bf16.mxu0 %v3315
    %6063 = vmatmul.mubr.bf16.gmra.mxu0 %v3314
    %v6064 = vpop.f32.mrf.mxu0
    %v6065 = vadd.f32 %v6024, %v6064
    %v6066 = vpop.f32.mrf.mxu0
    %v6067 = vadd.f32 %v6026, %v6066
    %v6068 = vpop.f32.mrf.mxu0
    %v6069 = vpop.f32.mrf.mxu0
    %6070 = vdwg.mxu0
    %6071 = vmatprep.subr.bf16.mxu0 %v5043
    %6072 = vmatpush1.bf16.msra.mxu0 %v5042
    %6073 = vmatprep.subr.bf16.mxu0 %v5036
    %6074 = vmatpush1.bf16.msra.mxu0 %v5035
    %6075 = vmatprep.subr.bf16.mxu0 %v5029
    %6076 = vmatpush1.bf16.msra.mxu0 %v5028
    %6077 = vmatprep.subr.bf16.mxu0 %v5022
    %6078 = vmatpush1.bf16.msra.mxu0 %v5021
    %6079 = vmatprep.subr.bf16.mxu0 %v5015
    %6080 = vmatpush1.bf16.msra.mxu0 %v5014
    %6081 = vmatprep.subr.bf16.mxu0 %v5008
    %6082 = vmatpush1.bf16.msra.mxu0 %v5007
    %6083 = vmatprep.subr.bf16.mxu0 %v5001
    %6084 = vmatpush1.bf16.msra.mxu0 %v5000
    %6085 = vmatprep.subr.bf16.mxu0 %v4994
    %6086 = vmatpush1.bf16.msra.mxu0 %v4993
    %6087 = vmatprep.subr.bf16.mxu0 %v5099
    %6088 = vmatpush2.bf16.msra.mxu0 %v5098
    %6089 = vmatprep.subr.bf16.mxu0 %v5092
    %6090 = vmatpush2.bf16.msra.mxu0 %v5091
    %6091 = vmatprep.subr.bf16.mxu0 %v5085
    %6092 = vmatpush2.bf16.msra.mxu0 %v5084
    %6093 = vmatprep.subr.bf16.mxu0 %v5078
    %6094 = vmatpush2.bf16.msra.mxu0 %v5077
    %6095 = vmatprep.subr.bf16.mxu0 %v5071
    %6096 = vmatpush2.bf16.msra.mxu0 %v5070
    %6097 = vmatprep.subr.bf16.mxu0 %v5064
    %6098 = vmatpush2.bf16.msra.mxu0 %v5063
    %6099 = vmatprep.subr.bf16.mxu0 %v5057
    %6100 = vmatpush2.bf16.msra.mxu0 %v5056
    %6101 = vmatprep.subr.bf16.mxu0 %v5050
    %6102 = vmatpush2.bf16.msra.mxu0 %v5049
    %6103 = vmatprep.mubr.bf16.mxu0 %v3317
    %6104 = vmatmul.mubr.bf16.gmra.mxu0 %v3316
    %v6105 = vpop.f32.mrf.mxu0
    %v6106 = vadd.f32 %v6065, %v6105
    %v6107 = vpop.f32.mrf.mxu0
    %v6108 = vadd.f32 %v6067, %v6107
    %v6109 = vpop.f32.mrf.mxu0
    %v6110 = vpop.f32.mrf.mxu0
    %6111 = vdwg.mxu0
    %6112 = vmatprep.subr.bf16.mxu0 %v5155
    %6113 = vmatpush1.bf16.msra.mxu0 %v5154
    %6114 = vmatprep.subr.bf16.mxu0 %v5148
    %6115 = vmatpush1.bf16.msra.mxu0 %v5147
    %6116 = vmatprep.subr.bf16.mxu0 %v5141
    %6117 = vmatpush1.bf16.msra.mxu0 %v5140
    %6118 = vmatprep.subr.bf16.mxu0 %v5134
    %6119 = vmatpush1.bf16.msra.mxu0 %v5133
    %6120 = vmatprep.subr.bf16.mxu0 %v5127
    %6121 = vmatpush1.bf16.msra.mxu0 %v5126
    %6122 = vmatprep.subr.bf16.mxu0 %v5120
    %6123 = vmatpush1.bf16.msra.mxu0 %v5119
    %6124 = vmatprep.subr.bf16.mxu0 %v5113
    %6125 = vmatpush1.bf16.msra.mxu0 %v5112
    %6126 = vmatprep.subr.bf16.mxu0 %v5106
    %6127 = vmatpush1.bf16.msra.mxu0 %v5105
    %6128 = vmatprep.subr.bf16.mxu0 %v5211
    %6129 = vmatpush2.bf16.msra.mxu0 %v5210
    %6130 = vmatprep.subr.bf16.mxu0 %v5204
    %6131 = vmatpush2.bf16.msra.mxu0 %v5203
    %6132 = vmatprep.subr.bf16.mxu0 %v5197
    %6133 = vmatpush2.bf16.msra.mxu0 %v5196
    %6134 = vmatprep.subr.bf16.mxu0 %v5190
    %6135 = vmatpush2.bf16.msra.mxu0 %v5189
    %6136 = vmatprep.subr.bf16.mxu0 %v5183
    %6137 = vmatpush2.bf16.msra.mxu0 %v5182
    %6138 = vmatprep.subr.bf16.mxu0 %v5176
    %6139 = vmatpush2.bf16.msra.mxu0 %v5175
    %6140 = vmatprep.subr.bf16.mxu0 %v5169
    %6141 = vmatpush2.bf16.msra.mxu0 %v5168
    %6142 = vmatprep.subr.bf16.mxu0 %v5162
    %6143 = vmatpush2.bf16.msra.mxu0 %v5161
    %6144 = vmatprep.mubr.bf16.mxu0 %v3319
    %6145 = vmatmul.mubr.bf16.gmra.mxu0 %v3318
    %v6146 = vpop.f32.mrf.mxu0
    %v6147 = vadd.f32 %v6106, %v6146
    %v6148 = vpop.f32.mrf.mxu0
    %v6149 = vadd.f32 %v6108, %v6148
    %v6150 = vpop.f32.mrf.mxu0
    %v6151 = vpop.f32.mrf.mxu0
    %6152 = vdwg.mxu0
    %6153 = vmatprep.subr.bf16.mxu0 0
    %6154 = vmatpush1.bf16.msra.mxu0 %v4820
    %6155 = vmatprep.subr.bf16.mxu0 0
    %6156 = vmatpush1.bf16.msra.mxu0 %v4813
    %6157 = vmatprep.subr.bf16.mxu0 0
    %6158 = vmatpush1.bf16.msra.mxu0 %v4806
    %6159 = vmatprep.subr.bf16.mxu0 0
    %6160 = vmatpush1.bf16.msra.mxu0 %v4799
    %6161 = vmatprep.subr.bf16.mxu0 0
    %6162 = vmatpush1.bf16.msra.mxu0 %v4792
    %6163 = vmatprep.subr.bf16.mxu0 0
    %6164 = vmatpush1.bf16.msra.mxu0 %v4785
    %6165 = vmatprep.subr.bf16.mxu0 0
    %6166 = vmatpush1.bf16.msra.mxu0 %v4778
    %6167 = vmatprep.subr.bf16.mxu0 0
    %6168 = vmatpush1.bf16.msra.mxu0 %v4771
    %6169 = vmatprep.subr.bf16.mxu0 0
    %6170 = vmatpush2.bf16.msra.mxu0 %v4876
    %6171 = vmatprep.subr.bf16.mxu0 0
    %6172 = vmatpush2.bf16.msra.mxu0 %v4869
    %6173 = vmatprep.subr.bf16.mxu0 0
    %6174 = vmatpush2.bf16.msra.mxu0 %v4862
    %6175 = vmatprep.subr.bf16.mxu0 0
    %6176 = vmatpush2.bf16.msra.mxu0 %v4855
    %6177 = vmatprep.subr.bf16.mxu0 0
    %6178 = vmatpush2.bf16.msra.mxu0 %v4848
    %6179 = vmatprep.subr.bf16.mxu0 0
    %6180 = vmatpush2.bf16.msra.mxu0 %v4841
    %6181 = vmatprep.subr.bf16.mxu0 0
    %6182 = vmatpush2.bf16.msra.mxu0 %v4834
    %6183 = vmatprep.subr.bf16.mxu0 0
    %6184 = vmatpush2.bf16.msra.mxu0 %v4827
    %6185 = vmatprep.mubr.bf16.mxu0 %v3313
    %6186 = vmatmul.mubr.bf16.gmra.mxu0 %v3312
    %v6187 = vpop.f32.mrf.mxu0
    %v6188 = vadd.f32 %v3349, %v6187
    %v6189 = vpop.f32.mrf.mxu0
    %v6190 = vpop.f32.mrf.mxu0
    %v6191 = vpop.f32.mrf.mxu0
    %6192 = vdwg.mxu0
    %6193 = vmatprep.subr.bf16.mxu0 0
    %6194 = vmatpush1.bf16.msra.mxu0 %v4932
    %6195 = vmatprep.subr.bf16.mxu0 0
    %6196 = vmatpush1.bf16.msra.mxu0 %v4925
    %6197 = vmatprep.subr.bf16.mxu0 0
    %6198 = vmatpush1.bf16.msra.mxu0 %v4918
    %6199 = vmatprep.subr.bf16.mxu0 0
    %6200 = vmatpush1.bf16.msra.mxu0 %v4911
    %6201 = vmatprep.subr.bf16.mxu0 0
    %6202 = vmatpush1.bf16.msra.mxu0 %v4904
    %6203 = vmatprep.subr.bf16.mxu0 0
    %6204 = vmatpush1.bf16.msra.mxu0 %v4897
    %6205 = vmatprep.subr.bf16.mxu0 0
    %6206 = vmatpush1.bf16.msra.mxu0 %v4890
    %6207 = vmatprep.subr.bf16.mxu0 0
    %6208 = vmatpush1.bf16.msra.mxu0 %v4883
    %6209 = vmatprep.subr.bf16.mxu0 0
    %6210 = vmatpush2.bf16.msra.mxu0 %v4988
    %6211 = vmatprep.subr.bf16.mxu0 0
    %6212 = vmatpush2.bf16.msra.mxu0 %v4981
    %6213 = vmatprep.subr.bf16.mxu0 0
    %6214 = vmatpush2.bf16.msra.mxu0 %v4974
    %6215 = vmatprep.subr.bf16.mxu0 0
    %6216 = vmatpush2.bf16.msra.mxu0 %v4967
    %6217 = vmatprep.subr.bf16.mxu0 0
    %6218 = vmatpush2.bf16.msra.mxu0 %v4960
    %6219 = vmatprep.subr.bf16.mxu0 0
    %6220 = vmatpush2.bf16.msra.mxu0 %v4953
    %6221 = vmatprep.subr.bf16.mxu0 0
    %6222 = vmatpush2.bf16.msra.mxu0 %v4946
    %6223 = vmatprep.subr.bf16.mxu0 0
    %6224 = vmatpush2.bf16.msra.mxu0 %v4939
    %6225 = vmatprep.mubr.bf16.mxu0 %v3315
    %6226 = vmatmul.mubr.bf16.gmra.mxu0 %v3314
    %v6227 = vpop.f32.mrf.mxu0
    %v6228 = vadd.f32 %v6188, %v6227
    %v6229 = vpop.f32.mrf.mxu0
    %v6230 = vpop.f32.mrf.mxu0
    %v6231 = vpop.f32.mrf.mxu0
    %6232 = vdwg.mxu0
    %6233 = vmatprep.subr.bf16.mxu0 0
    %6234 = vmatpush1.bf16.msra.mxu0 %v5044
    %6235 = vmatprep.subr.bf16.mxu0 0
    %6236 = vmatpush1.bf16.msra.mxu0 %v5037
    %6237 = vmatprep.subr.bf16.mxu0 0
    %6238 = vmatpush1.bf16.msra.mxu0 %v5030
    %6239 = vmatprep.subr.bf16.mxu0 0
    %6240 = vmatpush1.bf16.msra.mxu0 %v5023
    %6241 = vmatprep.subr.bf16.mxu0 0
    %6242 = vmatpush1.bf16.msra.mxu0 %v5016
    %6243 = vmatprep.subr.bf16.mxu0 0
    %6244 = vmatpush1.bf16.msra.mxu0 %v5009
    %6245 = vmatprep.subr.bf16.mxu0 0
    %6246 = vmatpush1.bf16.msra.mxu0 %v5002
    %6247 = vmatprep.subr.bf16.mxu0 0
    %6248 = vmatpush1.bf16.msra.mxu0 %v4995
    %6249 = vmatprep.subr.bf16.mxu0 0
    %6250 = vmatpush2.bf16.msra.mxu0 %v5100
    %6251 = vmatprep.subr.bf16.mxu0 0
    %6252 = vmatpush2.bf16.msra.mxu0 %v5093
    %6253 = vmatprep.subr.bf16.mxu0 0
    %6254 = vmatpush2.bf16.msra.mxu0 %v5086
    %6255 = vmatprep.subr.bf16.mxu0 0
    %6256 = vmatpush2.bf16.msra.mxu0 %v5079
    %6257 = vmatprep.subr.bf16.mxu0 0
    %6258 = vmatpush2.bf16.msra.mxu0 %v5072
    %6259 = vmatprep.subr.bf16.mxu0 0
    %6260 = vmatpush2.bf16.msra.mxu0 %v5065
    %6261 = vmatprep.subr.bf16.mxu0 0
    %6262 = vmatpush2.bf16.msra.mxu0 %v5058
    %6263 = vmatprep.subr.bf16.mxu0 0
    %6264 = vmatpush2.bf16.msra.mxu0 %v5051
    %6265 = vmatprep.mubr.bf16.mxu0 %v3317
    %6266 = vmatmul.mubr.bf16.gmra.mxu0 %v3316
    %v6267 = vpop.f32.mrf.mxu0
    %v6268 = vadd.f32 %v6228, %v6267
    %v6269 = vpop.f32.mrf.mxu0
    %v6270 = vpop.f32.mrf.mxu0
    %v6271 = vpop.f32.mrf.mxu0
    %6272 = vdwg.mxu0
    %6273 = vmatprep.subr.bf16.mxu0 0
    %6274 = vmatpush1.bf16.msra.mxu0 %v5156
    %6275 = vmatprep.subr.bf16.mxu0 0
    %6276 = vmatpush1.bf16.msra.mxu0 %v5149
    %6277 = vmatprep.subr.bf16.mxu0 0
    %6278 = vmatpush1.bf16.msra.mxu0 %v5142
    %6279 = vmatprep.subr.bf16.mxu0 0
    %6280 = vmatpush1.bf16.msra.mxu0 %v5135
    %6281 = vmatprep.subr.bf16.mxu0 0
    %6282 = vmatpush1.bf16.msra.mxu0 %v5128
    %6283 = vmatprep.subr.bf16.mxu0 0
    %6284 = vmatpush1.bf16.msra.mxu0 %v5121
    %6285 = vmatprep.subr.bf16.mxu0 0
    %6286 = vmatpush1.bf16.msra.mxu0 %v5114
    %6287 = vmatprep.subr.bf16.mxu0 0
    %6288 = vmatpush1.bf16.msra.mxu0 %v5107
    %6289 = vmatprep.subr.bf16.mxu0 0
    %6290 = vmatpush2.bf16.msra.mxu0 %v5212
    %6291 = vmatprep.subr.bf16.mxu0 0
    %6292 = vmatpush2.bf16.msra.mxu0 %v5205
    %6293 = vmatprep.subr.bf16.mxu0 0
    %6294 = vmatpush2.bf16.msra.mxu0 %v5198
    %6295 = vmatprep.subr.bf16.mxu0 0
    %6296 = vmatpush2.bf16.msra.mxu0 %v5191
    %6297 = vmatprep.subr.bf16.mxu0 0
    %6298 = vmatpush2.bf16.msra.mxu0 %v5184
    %6299 = vmatprep.subr.bf16.mxu0 0
    %6300 = vmatpush2.bf16.msra.mxu0 %v5177
    %6301 = vmatprep.subr.bf16.mxu0 0
    %6302 = vmatpush2.bf16.msra.mxu0 %v5170
    %6303 = vmatprep.subr.bf16.mxu0 0
    %6304 = vmatpush2.bf16.msra.mxu0 %v5163
    %6305 = vmatprep.mubr.bf16.mxu0 %v3319
    %6306 = vmatmul.mubr.bf16.gmra.mxu0 %v3318
    %v6307 = vpop.f32.mrf.mxu0
    %v6308 = vadd.f32 %v6268, %v6307
    %v6309 = vpop.f32.mrf.mxu0
    %v6310 = vpop.f32.mrf.mxu0
    %v6311 = vpop.f32.mrf.mxu0
    %6312 = vdwg.mxu0
    %v6313 = vtanh.pop %v5819
    %v6314 = vtanh.pop %v5821
    %v6315 = vtanh.pop %v5983
    %v6316 = vtanh.pop %v5985
    %v6317 = vtanh.pop %v6147
    %v6318 = vtanh.pop %v6149
    %v6319 = vtanh.pop %v6308
    %v6320 = vpack.c.bf16 %v6313, %v6313
    %v6321 = vpack.c.bf16 %v6314, %v6314
    %v6322 = vpack.c.bf16 %v6315, %v6315
    %v6323 = vpack.c.bf16 %v6316, %v6316
    %v6324 = vpack.c.bf16 %v6317, %v6317
    %v6325 = vpack.c.bf16 %v6318, %v6318
    %v6326 = vpack.c.bf16 %v6319, %v6319
    %v6334 = vunpack.c.l.b16 %v6320
    %v6335 = vunpack.c.l.b16 %v6321
    %v6336 = vunpack.c.l.b16 %v6322
    %v6337 = vunpack.c.l.b16 %v6323
    %v6338 = vunpack.c.l.b16 %v6324
    %v6339 = vunpack.c.l.b16 %v6325
    %v6340 = vunpack.c.l.b16 %v6326
    %v6341 = vpack.c.b16 %v6335, %v6334
    %v6342 = vpack.c.b16 %v6337, %v6336
    %v6343 = vpack.c.b16 %v6339, %v6338
    %v6344 = vpack.c.b16 %v6340, %v6340
    %6349 = vst [vmem:[%s11] sm:$0xff] %v6341
    %6350 = vst [vmem:[%s11 + $0x8] sm:$0xff] %v6342
    %6351 = vst [vmem:[%s11 + $0x10] sm:$0xff] %v6343
    %6352 = vst [vmem:[%s11 + $0x18] sm:$0xf] %v6344
    // Predicated region
    $region82: #{generator_forward.1} parent=1 // pred_check
      _
    $region83: #{generator_forward.1} parent=1 // pred_check_branch
      %6354 = sbr.rel (0) target = $region85
    $region84: #{generator_forward.1} parent=1 // pred_region
      _
    $region85: #{generator_forward.1} parent=1 // pred_fallthru
      _
    // Predicated region
    $region86: #{generator_forward.1} parent=1 // pred_check
      _
    $region87: #{generator_forward.1} parent=1 // pred_check_branch
      %6356 = sbr.rel (0) target = $region89
    $region88: #{generator_forward.1} parent=1 // pred_region
      _
    $region89: #{generator_forward.1} parent=1 // pred_fallthru
      _
    %6357 = vsyncpa [#allocation6], 1
    %6358 = vsyncpa [#allocation8], 1
    %6359 = vsyncpa [#allocation11], 1
    %6360 = vsyncpa [#allocation14], 1
    %6361 = vsyncpa [#allocation17], 1
  %6362 = vsyncmov [#allocation4]
  %s6363 = vpop.sfrf %6362
  %p6364 = scmp.eq.s32.totalorder %s6363, 0
  %p6365 = pneg %p6364
  %6367 = shalt.err (%p6365)
  %s6368 = scalar_lea.sflag [#allocation4], 1
  %6369 = vsyncmov %s6368
  %s6370 = vpop.sfrf %6369
  %p6371 = scmp.eq.s32.totalorder %s6370, 0
  %p6372 = pneg %p6371
  %6374 = shalt.err (%p6372)

</llo_original>
